<compile_context>
chip_gen: v5e
topology: v5e:2x2
jax: 0.10.0
libtpu: 0.0.40
codegen_flags: <defaults>
</compile_context>

<pallas_src>
import functools
import math

import jax
import jax.numpy as jnp
from jax import lax
from jax.experimental import pallas as pl
from jax.experimental.pallas import tpu as pltpu  # noqa: F401 (kept for parity with other kernels)

# ----------------------------- configuration --------------------------------
B = 2            # batch
SEQ = 8          # T (sequence length)
N_EMBD = 128     # D (model width; lane-dense)
N_HEAD = 4
N_LAYER = 2
MLP_HIDDEN = 4   # mlp_hidden_times
LN_EPS = 1e-5

WEIGHT_DTYPE = jnp.bfloat16   # MXU operand dtype; accumulation is always f32


# ----------------------------- in-kernel helpers -----------------------------

def _layer_norm(x, eps):
    mu = jnp.mean(x, axis=-1, keepdims=True)
    var = jnp.mean(jnp.square(x - mu), axis=-1, keepdims=True)
    return (x - mu) * lax.rsqrt(var + eps)


def _gelu_tanh(x):
    # TODO(synk): tanh-approx GELU (EUP) instead of torch.nn.GELU()'s exact erf;
    # ~1e-3 relative drift vs PyTorch bit-parity.
    return 0.5 * x * (1.0 + jnp.tanh(0.7978845608028654 *
                                     (x + 0.044715 * x * x * x)))


# ----------------------------- fused encoder kernel --------------------------

def encoder_kernel(x_ref, emb_ref,
                   w_ada_ref, b_ada_ref,
                   w_qkv_ref, b_qkv_ref,
                   w_proj_ref, b_proj_ref,
                   ln2_w_ref, ln2_b_ref,
                   w_mlp1_ref, b_mlp1_ref,
                   w_mlp2_ref, b_mlp2_ref,
                   o_ref, *, n_layer, n_head, d_model, batch, seq, eps):
    x = x_ref[...]          # (B*T, D) f32, rows ordered (b, t)
    emb = emb_ref[...]      # (B*T, D) f32 = silu(sin-emb(t)) broadcast over T

    # All layers' AdaLN scale/shift in ONE lane-dense batched matmul.
    ada = jnp.dot(emb.astype(w_ada_ref.dtype), w_ada_ref[...],
                  preferred_element_type=jnp.float32) + b_ada_ref[...]

    dh = d_model // n_head
    att_scale = 1.0 / math.sqrt(dh)

    def stack_heads(z):
        # (B*T, D) -> (H*B, T, dh); head-major batch index g = h*B + b.
        z3 = z.reshape(batch, seq, d_model)
        return jnp.concatenate(
            [z3[:, :, i * dh:(i + 1) * dh] for i in range(n_head)], axis=0)

    for l in range(n_layer):                     # unrolled: L is small, static
        # ---------------- AdaLayerNorm (elementwise_affine=False) ----------
        sc = ada[:, 2 * l * d_model:(2 * l + 1) * d_model]
        sh = ada[:, (2 * l + 1) * d_model:(2 * l + 2) * d_model]
        h = _layer_norm(x, eps) * (1.0 + sc) + sh                # (B*T, D)

        # ---------------- fused Q|K|V projection ---------------------------
        qkv = jnp.dot(h.astype(w_qkv_ref.dtype), w_qkv_ref[l],
                      preferred_element_type=jnp.float32) + b_qkv_ref[l]

        # ---------------- head-batched attention ---------------------------
        qh = stack_heads(qkv[:, :d_model])                       # (H*B, T, dh)
        kh = stack_heads(qkv[:, d_model:2 * d_model])
        vh = stack_heads(qkv[:, 2 * d_model:])

        att = jnp.einsum('gtd,gsd->gts', qh, kh,
                         preferred_element_type=jnp.float32) * att_scale
        att = jnp.exp(att - jnp.max(att, axis=-1, keepdims=True))
        att = att / jnp.sum(att, axis=-1, keepdims=True)         # exact softmax
        yh = jnp.einsum('gts,gsd->gtd', att, vh,
                        preferred_element_type=jnp.float32)      # (H*B, T, dh)

        # merge heads back onto lanes: (H*B, T, dh) -> (B*T, D)
        y = jnp.concatenate(
            [yh[i * batch:(i + 1) * batch] for i in range(n_head)], axis=-1)
        y = y.reshape(batch * seq, d_model)

        y = jnp.dot(y.astype(w_proj_ref.dtype), w_proj_ref[l],
                    preferred_element_type=jnp.float32) + b_proj_ref[l]
        x = x + y

        # ---------------- LayerNorm + MLP (GELU) + residual -----------------
        xn = _layer_norm(x, eps) * ln2_w_ref[l] + ln2_b_ref[l]
        h1 = jnp.dot(xn.astype(w_mlp1_ref.dtype), w_mlp1_ref[l],
                     preferred_element_type=jnp.float32) + b_mlp1_ref[l]
        h1 = _gelu_tanh(h1)
        h2 = jnp.dot(h1.astype(w_mlp2_ref.dtype), w_mlp2_ref[l],
                     preferred_element_type=jnp.float32) + b_mlp2_ref[l]
        x = x + h2

    o_ref[...] = x.astype(o_ref.dtype)


# ----------------------------- wrapper ---------------------------------------

def sinusoidal_emb(t, dim):
    half = dim // 2
    freqs = jnp.exp(jnp.arange(half, dtype=jnp.float32) *
                    (-math.log(10000.0) / (half - 1)))
    e = t.astype(jnp.float32)[:, None] * freqs[None, :]
    return jnp.concatenate([jnp.sin(e), jnp.cos(e)], axis=-1)


def encoder_forward(x, t, params, label_emb=None):
    """x:(B,T,D)  t:(B,)  -> (B,T,D). Matches Encoder.forward (eval, no mask)."""
    Bv, T, D = x.shape

    emb = sinusoidal_emb(t, D)
    if label_emb is not None:
        emb = emb + label_emb
    emb = jax.nn.silu(emb)                                        # (B, D)
    # Broadcast over T in the wrapper so AdaLN rows align with activation rows.
    emb = jnp.broadcast_to(emb[:, None, :], (Bv, T, D)).reshape(Bv * T, D)

    x_flat = x.reshape(Bv * T, D).astype(jnp.float32)

    weights = (params['w_ada'], params['b_ada'],
               params['w_qkv'], params['b_qkv'],
               params['w_proj'], params['b_proj'],
               params['ln2_w'], params['ln2_b'],
               params['w_mlp1'], params['b_mlp1'],
               params['w_mlp2'], params['b_mlp2'])

    kernel = functools.partial(encoder_kernel, n_layer=N_LAYER, n_head=N_HEAD,
                               d_model=D, batch=Bv, seq=T, eps=LN_EPS)

    # Single invocation (no grid): every input is a full block, VMEM-resident,
    # DMA'd exactly once. Output stays f32 for parity with the PyTorch module
    # (switch to bf16 if downstream accepts it to halve v5e store traffic).
    out = pl.pallas_call(
        kernel,
        out_shape=jax.ShapeDtypeStruct((Bv * T, D), jnp.float32),
    )(x_flat, emb.astype(jnp.float32), *weights)
    return out.reshape(Bv, T, D)


# ----------------------------- parameter init --------------------------------

def init_params(key):
    keys = iter(jax.random.split(key, 64))

    def nk():
        return next(keys)

    def w(shape):  # matmul weights stored in bf16 (native MXU operand dtype)
        return (jax.random.normal(nk(), shape, jnp.float32) * 0.02).astype(WEIGHT_DTYPE)

    def b(shape):  # biases / LN params kept in f32 (added to f32 accumulators)
        return jax.random.normal(nk(), shape, jnp.float32) * 0.02

    D, L, H = N_EMBD, N_LAYER, MLP_HIDDEN
    return {
        # all layers' AdaLN projections concatenated along the output axis,
        # per-layer layout [scale(D) | shift(D)] matching torch.chunk order
        'w_ada':  w((D, L * 2 * D)),
        'b_ada':  b((1, L * 2 * D)),
        # fused q|k|v weights per layer (columns ordered q|k|v, head-major)
        'w_qkv':  w((L, D, 3 * D)),
        'b_qkv':  b((L, 1, 3 * D)),
        'w_proj': w((L, D, D)),
        'b_proj': b((L, 1, D)),
        'ln2_w':  jnp.ones((L, 1, D), jnp.float32),
        'ln2_b':  jnp.zeros((L, 1, D), jnp.float32),
        'w_mlp1': w((L, D, H * D)),
        'b_mlp1': b((L, 1, H * D)),
        'w_mlp2': w((L, H * D, D)),
        'b_mlp2': b((L, 1, D)),
    }


# --------------------------------- main ---------------------------------------

if __name__ == "__main__":
    key = jax.random.PRNGKey(0)
    kx, kt, kp = jax.random.split(key, 3)
    x = jax.random.normal(kx, (B, SEQ, N_EMBD), jnp.float32)
    t = jax.random.randint(kt, (B,), 0, 100).astype(jnp.float32)
    params = init_params(kp)

    out = jax.jit(encoder_forward)(x, t, params)
    jax.block_until_ready(out)

    assert out.shape == (B, SEQ, N_EMBD)
    assert bool(jnp.all(jnp.isfinite(out)))
    print("KERNEL_OK")
</pallas_src>

<mosaic_0001>
module attributes {stable_mosaic.version = 11 : i64} {
  func.func @encoder_kernel(%arg0: memref<16x128xf32, #tpu.memory_space<vmem>>, %arg1: memref<16x128xf32, #tpu.memory_space<vmem>>, %arg2: memref<128x512xbf16, #tpu.memory_space<vmem>>, %arg3: memref<1x512xf32, #tpu.memory_space<vmem>>, %arg4: memref<2x128x384xbf16, #tpu.memory_space<vmem>>, %arg5: memref<2x1x384xf32, #tpu.memory_space<vmem>>, %arg6: memref<2x128x128xbf16, #tpu.memory_space<vmem>>, %arg7: memref<2x1x128xf32, #tpu.memory_space<vmem>>, %arg8: memref<2x1x128xf32, #tpu.memory_space<vmem>>, %arg9: memref<2x1x128xf32, #tpu.memory_space<vmem>>, %arg10: memref<2x128x512xbf16, #tpu.memory_space<vmem>>, %arg11: memref<2x1x512xf32, #tpu.memory_space<vmem>>, %arg12: memref<2x512x128xbf16, #tpu.memory_space<vmem>>, %arg13: memref<2x1x128xf32, #tpu.memory_space<vmem>>, %arg14: memref<16x128xf32, #tpu.memory_space<vmem>>) attributes {dimension_semantics = [], scalar_prefetch = 0 : i64, scratch_operands = 0 : i64, tpu.core_type = #tpu.core_type<tc>} {
    %c0 = arith.constant 0 : index
    %c0_0 = arith.constant 0 : index
    %0 = vector.load %arg0[%c0, %c0_0] : memref<16x128xf32, #tpu.memory_space<vmem>>, vector<16x128xf32>
    %c0_1 = arith.constant 0 : index
    %c0_2 = arith.constant 0 : index
    %1 = vector.load %arg1[%c0_1, %c0_2] : memref<16x128xf32, #tpu.memory_space<vmem>>, vector<16x128xf32>
    %2 = arith.truncf %1 : vector<16x128xf32> to vector<16x128xbf16>
    %c0_3 = arith.constant 0 : index
    %c0_4 = arith.constant 0 : index
    %3 = vector.load %arg2[%c0_3, %c0_4] : memref<128x512xbf16, #tpu.memory_space<vmem>>, vector<128x512xbf16>
    %cst = arith.constant dense<0.000000e+00> : vector<16x512xf32>
    %4 = tpu.matmul %2, %3, %cst {dimension_numbers = #tpu.dot_dimension_numbers<[1], [0], [0], [1], [0, 0, 1, 1], [], []>} : vector<16x128xbf16>, vector<128x512xbf16>, vector<16x512xf32> -> vector<16x512xf32>
    %c0_5 = arith.constant 0 : index
    %c0_6 = arith.constant 0 : index
    %5 = vector.load %arg3[%c0_5, %c0_6] : memref<1x512xf32, #tpu.memory_space<vmem>>, vector<1x512xf32>
    %6 = vector.broadcast %5 : vector<1x512xf32> to vector<16x512xf32>
    %7 = arith.addf %4, %6 : vector<16x512xf32>
    %8 = vector.extract_strided_slice %7 {offsets = [0, 0], sizes = [16, 128], strides = [1, 1]} : vector<16x512xf32> to vector<16x128xf32>
    %9 = vector.extract_strided_slice %7 {offsets = [0, 128], sizes = [16, 128], strides = [1, 1]} : vector<16x512xf32> to vector<16x128xf32>
    %cst_7 = arith.constant dense<0.000000e+00> : vector<16xf32>
    %10 = vector.multi_reduction <add>, %0, %cst_7 [1] : vector<16x128xf32> to vector<16xf32>
    %11 = vector.shape_cast %10 : vector<16xf32> to vector<16x1xf32>
    %cst_8 = arith.constant 1.280000e+02 : f32
    %12 = vector.broadcast %cst_8 : f32 to vector<16x1xf32>
    %13 = arith.divf %11, %12 : vector<16x1xf32>
    %14 = vector.broadcast %13 : vector<16x1xf32> to vector<16x128xf32>
    %15 = arith.subf %0, %14 : vector<16x128xf32>
    %16 = arith.mulf %15, %15 : vector<16x128xf32>
    %cst_9 = arith.constant dense<0.000000e+00> : vector<16xf32>
    %17 = vector.multi_reduction <add>, %16, %cst_9 [1] : vector<16x128xf32> to vector<16xf32>
    %18 = vector.shape_cast %17 : vector<16xf32> to vector<16x1xf32>
    %cst_10 = arith.constant 1.280000e+02 : f32
    %19 = vector.broadcast %cst_10 : f32 to vector<16x1xf32>
    %20 = arith.divf %18, %19 : vector<16x1xf32>
    %21 = vector.broadcast %13 : vector<16x1xf32> to vector<16x128xf32>
    %22 = arith.subf %0, %21 : vector<16x128xf32>
    %cst_11 = arith.constant 9.99999974E-6 : f32
    %23 = vector.broadcast %cst_11 : f32 to vector<16x1xf32>
    %24 = arith.addf %20, %23 : vector<16x1xf32>
    %25 = math.rsqrt %24 : vector<16x1xf32>
    %26 = vector.broadcast %25 : vector<16x1xf32> to vector<16x128xf32>
    %27 = arith.mulf %22, %26 : vector<16x128xf32>
    %cst_12 = arith.constant 1.000000e+00 : f32
    %28 = vector.broadcast %cst_12 : f32 to vector<16x128xf32>
    %29 = arith.addf %28, %8 : vector<16x128xf32>
    %30 = arith.mulf %27, %29 : vector<16x128xf32>
    %31 = arith.addf %30, %9 : vector<16x128xf32>
    %32 = arith.truncf %31 : vector<16x128xf32> to vector<16x128xbf16>
    %c0_13 = arith.constant 0 : index
    %c0_14 = arith.constant 0 : index
    %c0_15 = arith.constant 0 : index
    %33 = vector.load %arg4[%c0_13, %c0_14, %c0_15] : memref<2x128x384xbf16, #tpu.memory_space<vmem>>, vector<1x128x384xbf16>
    %34 = vector.shape_cast %33 : vector<1x128x384xbf16> to vector<128x384xbf16>
    %cst_16 = arith.constant dense<0.000000e+00> : vector<16x384xf32>
    %35 = tpu.matmul %32, %34, %cst_16 {dimension_numbers = #tpu.dot_dimension_numbers<[1], [0], [0], [1], [0, 0, 1, 1], [], []>} : vector<16x128xbf16>, vector<128x384xbf16>, vector<16x384xf32> -> vector<16x384xf32>
    %c0_17 = arith.constant 0 : index
    %c0_18 = arith.constant 0 : index
    %c0_19 = arith.constant 0 : index
    %36 = vector.load %arg5[%c0_17, %c0_18, %c0_19] : memref<2x1x384xf32, #tpu.memory_space<vmem>>, vector<1x1x384xf32>
    %37 = vector.shape_cast %36 : vector<1x1x384xf32> to vector<1x384xf32>
    %38 = vector.broadcast %37 : vector<1x384xf32> to vector<16x384xf32>
    %39 = arith.addf %35, %38 : vector<16x384xf32>
    %40 = vector.extract_strided_slice %39 {offsets = [0, 0], sizes = [16, 128], strides = [1, 1]} : vector<16x384xf32> to vector<16x128xf32>
    %41 = vector.shape_cast %40 : vector<16x128xf32> to vector<2x8x128xf32>
    %42 = vector.extract_strided_slice %41 {offsets = [0, 0, 0], sizes = [2, 8, 32], strides = [1, 1, 1]} : vector<2x8x128xf32> to vector<2x8x32xf32>
    %43 = vector.extract_strided_slice %41 {offsets = [0, 0, 32], sizes = [2, 8, 32], strides = [1, 1, 1]} : vector<2x8x128xf32> to vector<2x8x32xf32>
    %44 = vector.extract_strided_slice %41 {offsets = [0, 0, 64], sizes = [2, 8, 32], strides = [1, 1, 1]} : vector<2x8x128xf32> to vector<2x8x32xf32>
    %45 = vector.extract_strided_slice %41 {offsets = [0, 0, 96], sizes = [2, 8, 32], strides = [1, 1, 1]} : vector<2x8x128xf32> to vector<2x8x32xf32>
    %46 = tpu.concatenate %42, %43, %44, %45 in 0 : vector<2x8x32xf32>, vector<2x8x32xf32>, vector<2x8x32xf32>, vector<2x8x32xf32> -> vector<8x8x32xf32>
    %47 = vector.extract_strided_slice %39 {offsets = [0, 128], sizes = [16, 128], strides = [1, 1]} : vector<16x384xf32> to vector<16x128xf32>
    %48 = vector.shape_cast %47 : vector<16x128xf32> to vector<2x8x128xf32>
    %49 = vector.extract_strided_slice %48 {offsets = [0, 0, 0], sizes = [2, 8, 32], strides = [1, 1, 1]} : vector<2x8x128xf32> to vector<2x8x32xf32>
    %50 = vector.extract_strided_slice %48 {offsets = [0, 0, 32], sizes = [2, 8, 32], strides = [1, 1, 1]} : vector<2x8x128xf32> to vector<2x8x32xf32>
    %51 = vector.extract_strided_slice %48 {offsets = [0, 0, 64], sizes = [2, 8, 32], strides = [1, 1, 1]} : vector<2x8x128xf32> to vector<2x8x32xf32>
    %52 = vector.extract_strided_slice %48 {offsets = [0, 0, 96], sizes = [2, 8, 32], strides = [1, 1, 1]} : vector<2x8x128xf32> to vector<2x8x32xf32>
    %53 = tpu.concatenate %49, %50, %51, %52 in 0 : vector<2x8x32xf32>, vector<2x8x32xf32>, vector<2x8x32xf32>, vector<2x8x32xf32> -> vector<8x8x32xf32>
    %54 = vector.extract_strided_slice %39 {offsets = [0, 256], sizes = [16, 128], strides = [1, 1]} : vector<16x384xf32> to vector<16x128xf32>
    %55 = vector.shape_cast %54 : vector<16x128xf32> to vector<2x8x128xf32>
    %56 = vector.extract_strided_slice %55 {offsets = [0, 0, 0], sizes = [2, 8, 32], strides = [1, 1, 1]} : vector<2x8x128xf32> to vector<2x8x32xf32>
    %57 = vector.extract_strided_slice %55 {offsets = [0, 0, 32], sizes = [2, 8, 32], strides = [1, 1, 1]} : vector<2x8x128xf32> to vector<2x8x32xf32>
    %58 = vector.extract_strided_slice %55 {offsets = [0, 0, 64], sizes = [2, 8, 32], strides = [1, 1, 1]} : vector<2x8x128xf32> to vector<2x8x32xf32>
    %59 = vector.extract_strided_slice %55 {offsets = [0, 0, 96], sizes = [2, 8, 32], strides = [1, 1, 1]} : vector<2x8x128xf32> to vector<2x8x32xf32>
    %60 = tpu.concatenate %56, %57, %58, %59 in 0 : vector<2x8x32xf32>, vector<2x8x32xf32>, vector<2x8x32xf32>, vector<2x8x32xf32> -> vector<8x8x32xf32>
    "tpu.trace_start"() <{level = 10 : i32, message = "gtd,gsd->gts"}> : () -> ()
    %cst_20 = arith.constant dense<0.000000e+00> : vector<8x8x8xf32>
    %61 = tpu.matmul %46, %53, %cst_20 {dimension_numbers = #tpu.dot_dimension_numbers<[2], [2], [1], [1], [0, 0, 0, 1, 1, 1], [0], [0]>} : vector<8x8x32xf32>, vector<8x8x32xf32>, vector<8x8x8xf32> -> vector<8x8x8xf32>
    "tpu.trace_stop"() : () -> ()
    %cst_21 = arith.constant 0.176776692 : f32
    %62 = vector.broadcast %cst_21 : f32 to vector<8x8x8xf32>
    %63 = arith.mulf %61, %62 : vector<8x8x8xf32>
    %cst_22 = arith.constant dense<0xFF800000> : vector<8x8xf32>
    %64 = vector.multi_reduction <maximumf>, %63, %cst_22 [2] : vector<8x8x8xf32> to vector<8x8xf32>
    %65 = vector.shape_cast %64 : vector<8x8xf32> to vector<8x8x1xf32>
    %66 = vector.broadcast %65 : vector<8x8x1xf32> to vector<8x8x8xf32>
    %67 = arith.subf %63, %66 : vector<8x8x8xf32>
    %68 = math.exp %67 : vector<8x8x8xf32>
    %cst_23 = arith.constant dense<0.000000e+00> : vector<8x8xf32>
    %69 = vector.multi_reduction <add>, %68, %cst_23 [2] : vector<8x8x8xf32> to vector<8x8xf32>
    %70 = vector.shape_cast %69 : vector<8x8xf32> to vector<8x8x1xf32>
    %71 = vector.broadcast %70 : vector<8x8x1xf32> to vector<8x8x8xf32>
    %72 = arith.divf %68, %71 : vector<8x8x8xf32>
    "tpu.trace_start"() <{level = 10 : i32, message = "gts,gsd->gtd"}> : () -> ()
    %cst_24 = arith.constant dense<0.000000e+00> : vector<8x8x32xf32>
    %73 = tpu.matmul %72, %60, %cst_24 {dimension_numbers = #tpu.dot_dimension_numbers<[2], [1], [1], [2], [0, 0, 0, 1, 1, 2], [0], [0]>} : vector<8x8x8xf32>, vector<8x8x32xf32>, vector<8x8x32xf32> -> vector<8x8x32xf32>
    "tpu.trace_stop"() : () -> ()
    %74 = vector.extract_strided_slice %73 {offsets = [0, 0, 0], sizes = [2, 8, 32], strides = [1, 1, 1]} : vector<8x8x32xf32> to vector<2x8x32xf32>
    %75 = vector.extract_strided_slice %73 {offsets = [2, 0, 0], sizes = [2, 8, 32], strides = [1, 1, 1]} : vector<8x8x32xf32> to vector<2x8x32xf32>
    %76 = vector.extract_strided_slice %73 {offsets = [4, 0, 0], sizes = [2, 8, 32], strides = [1, 1, 1]} : vector<8x8x32xf32> to vector<2x8x32xf32>
    %77 = vector.extract_strided_slice %73 {offsets = [6, 0, 0], sizes = [2, 8, 32], strides = [1, 1, 1]} : vector<8x8x32xf32> to vector<2x8x32xf32>
    %78 = tpu.concatenate %74, %75, %76, %77 in 2 : vector<2x8x32xf32>, vector<2x8x32xf32>, vector<2x8x32xf32>, vector<2x8x32xf32> -> vector<2x8x128xf32>
    %79 = vector.shape_cast %78 : vector<2x8x128xf32> to vector<16x128xf32>
    %80 = arith.truncf %79 : vector<16x128xf32> to vector<16x128xbf16>
    %c0_25 = arith.constant 0 : index
    %c0_26 = arith.constant 0 : index
    %c0_27 = arith.constant 0 : index
    %81 = vector.load %arg6[%c0_25, %c0_26, %c0_27] : memref<2x128x128xbf16, #tpu.memory_space<vmem>>, vector<1x128x128xbf16>
    %82 = vector.shape_cast %81 : vector<1x128x128xbf16> to vector<128x128xbf16>
    %cst_28 = arith.constant dense<0.000000e+00> : vector<16x128xf32>
    %83 = tpu.matmul %80, %82, %cst_28 {dimension_numbers = #tpu.dot_dimension_numbers<[1], [0], [0], [1], [0, 0, 1, 1], [], []>} : vector<16x128xbf16>, vector<128x128xbf16>, vector<16x128xf32> -> vector<16x128xf32>
    %c0_29 = arith.constant 0 : index
    %c0_30 = arith.constant 0 : index
    %c0_31 = arith.constant 0 : index
    %84 = vector.load %arg7[%c0_29, %c0_30, %c0_31] : memref<2x1x128xf32, #tpu.memory_space<vmem>>, vector<1x1x128xf32>
    %85 = vector.shape_cast %84 : vector<1x1x128xf32> to vector<1x128xf32>
    %86 = vector.broadcast %85 : vector<1x128xf32> to vector<16x128xf32>
    %87 = arith.addf %83, %86 : vector<16x128xf32>
    %88 = arith.addf %0, %87 : vector<16x128xf32>
    %cst_32 = arith.constant dense<0.000000e+00> : vector<16xf32>
    %89 = vector.multi_reduction <add>, %88, %cst_32 [1] : vector<16x128xf32> to vector<16xf32>
    %90 = vector.shape_cast %89 : vector<16xf32> to vector<16x1xf32>
    %cst_33 = arith.constant 1.280000e+02 : f32
    %91 = vector.broadcast %cst_33 : f32 to vector<16x1xf32>
    %92 = arith.divf %90, %91 : vector<16x1xf32>
    %93 = vector.broadcast %92 : vector<16x1xf32> to vector<16x128xf32>
    %94 = arith.subf %88, %93 : vector<16x128xf32>
    %95 = arith.mulf %94, %94 : vector<16x128xf32>
    %cst_34 = arith.constant dense<0.000000e+00> : vector<16xf32>
    %96 = vector.multi_reduction <add>, %95, %cst_34 [1] : vector<16x128xf32> to vector<16xf32>
    %97 = vector.shape_cast %96 : vector<16xf32> to vector<16x1xf32>
    %cst_35 = arith.constant 1.280000e+02 : f32
    %98 = vector.broadcast %cst_35 : f32 to vector<16x1xf32>
    %99 = arith.divf %97, %98 : vector<16x1xf32>
    %100 = vector.broadcast %92 : vector<16x1xf32> to vector<16x128xf32>
    %101 = arith.subf %88, %100 : vector<16x128xf32>
    %cst_36 = arith.constant 9.99999974E-6 : f32
    %102 = vector.broadcast %cst_36 : f32 to vector<16x1xf32>
    %103 = arith.addf %99, %102 : vector<16x1xf32>
    %104 = math.rsqrt %103 : vector<16x1xf32>
    %105 = vector.broadcast %104 : vector<16x1xf32> to vector<16x128xf32>
    %106 = arith.mulf %101, %105 : vector<16x128xf32>
    %c0_37 = arith.constant 0 : index
    %c0_38 = arith.constant 0 : index
    %c0_39 = arith.constant 0 : index
    %107 = vector.load %arg8[%c0_37, %c0_38, %c0_39] : memref<2x1x128xf32, #tpu.memory_space<vmem>>, vector<1x1x128xf32>
    %108 = vector.shape_cast %107 : vector<1x1x128xf32> to vector<1x128xf32>
    %109 = vector.broadcast %108 : vector<1x128xf32> to vector<16x128xf32>
    %110 = arith.mulf %106, %109 : vector<16x128xf32>
    %c0_40 = arith.constant 0 : index
    %c0_41 = arith.constant 0 : index
    %c0_42 = arith.constant 0 : index
    %111 = vector.load %arg9[%c0_40, %c0_41, %c0_42] : memref<2x1x128xf32, #tpu.memory_space<vmem>>, vector<1x1x128xf32>
    %112 = vector.shape_cast %111 : vector<1x1x128xf32> to vector<1x128xf32>
    %113 = vector.broadcast %112 : vector<1x128xf32> to vector<16x128xf32>
    %114 = arith.addf %110, %113 : vector<16x128xf32>
    %115 = arith.truncf %114 : vector<16x128xf32> to vector<16x128xbf16>
    %c0_43 = arith.constant 0 : index
    %c0_44 = arith.constant 0 : index
    %c0_45 = arith.constant 0 : index
    %116 = vector.load %arg10[%c0_43, %c0_44, %c0_45] : memref<2x128x512xbf16, #tpu.memory_space<vmem>>, vector<1x128x512xbf16>
    %117 = vector.shape_cast %116 : vector<1x128x512xbf16> to vector<128x512xbf16>
    %cst_46 = arith.constant dense<0.000000e+00> : vector<16x512xf32>
    %118 = tpu.matmul %115, %117, %cst_46 {dimension_numbers = #tpu.dot_dimension_numbers<[1], [0], [0], [1], [0, 0, 1, 1], [], []>} : vector<16x128xbf16>, vector<128x512xbf16>, vector<16x512xf32> -> vector<16x512xf32>
    %c0_47 = arith.constant 0 : index
    %c0_48 = arith.constant 0 : index
    %c0_49 = arith.constant 0 : index
    %119 = vector.load %arg11[%c0_47, %c0_48, %c0_49] : memref<2x1x512xf32, #tpu.memory_space<vmem>>, vector<1x1x512xf32>
    %120 = vector.shape_cast %119 : vector<1x1x512xf32> to vector<1x512xf32>
    %121 = vector.broadcast %120 : vector<1x512xf32> to vector<16x512xf32>
    %122 = arith.addf %118, %121 : vector<16x512xf32>
    %cst_50 = arith.constant 5.000000e-01 : f32
    %123 = vector.broadcast %cst_50 : f32 to vector<16x512xf32>
    %124 = arith.mulf %123, %122 : vector<16x512xf32>
    %cst_51 = arith.constant 4.471500e-02 : f32
    %125 = vector.broadcast %cst_51 : f32 to vector<16x512xf32>
    %126 = arith.mulf %125, %122 : vector<16x512xf32>
    %127 = arith.mulf %126, %122 : vector<16x512xf32>
    %128 = arith.mulf %127, %122 : vector<16x512xf32>
    %129 = arith.addf %122, %128 : vector<16x512xf32>
    %cst_52 = arith.constant 0.797884583 : f32
    %130 = vector.broadcast %cst_52 : f32 to vector<16x512xf32>
    %131 = arith.mulf %130, %129 : vector<16x512xf32>
    %132 = math.tanh %131 : vector<16x512xf32>
    %cst_53 = arith.constant 1.000000e+00 : f32
    %133 = vector.broadcast %cst_53 : f32 to vector<16x512xf32>
    %134 = arith.addf %133, %132 : vector<16x512xf32>
    %135 = arith.mulf %124, %134 : vector<16x512xf32>
    %136 = arith.truncf %135 : vector<16x512xf32> to vector<16x512xbf16>
    %c0_54 = arith.constant 0 : index
    %c0_55 = arith.constant 0 : index
    %c0_56 = arith.constant 0 : index
    %137 = vector.load %arg12[%c0_54, %c0_55, %c0_56] : memref<2x512x128xbf16, #tpu.memory_space<vmem>>, vector<1x512x128xbf16>
    %138 = vector.shape_cast %137 : vector<1x512x128xbf16> to vector<512x128xbf16>
    %cst_57 = arith.constant dense<0.000000e+00> : vector<16x128xf32>
    %139 = tpu.matmul %136, %138, %cst_57 {dimension_numbers = #tpu.dot_dimension_numbers<[1], [0], [0], [1], [0, 0, 1, 1], [], []>} : vector<16x512xbf16>, vector<512x128xbf16>, vector<16x128xf32> -> vector<16x128xf32>
    %c0_58 = arith.constant 0 : index
    %c0_59 = arith.constant 0 : index
    %c0_60 = arith.constant 0 : index
    %140 = vector.load %arg13[%c0_58, %c0_59, %c0_60] : memref<2x1x128xf32, #tpu.memory_space<vmem>>, vector<1x1x128xf32>
    %141 = vector.shape_cast %140 : vector<1x1x128xf32> to vector<1x128xf32>
    %142 = vector.broadcast %141 : vector<1x128xf32> to vector<16x128xf32>
    %143 = arith.addf %139, %142 : vector<16x128xf32>
    %144 = arith.addf %88, %143 : vector<16x128xf32>
    %145 = vector.extract_strided_slice %7 {offsets = [0, 256], sizes = [16, 128], strides = [1, 1]} : vector<16x512xf32> to vector<16x128xf32>
    %146 = vector.extract_strided_slice %7 {offsets = [0, 384], sizes = [16, 128], strides = [1, 1]} : vector<16x512xf32> to vector<16x128xf32>
    %cst_61 = arith.constant dense<0.000000e+00> : vector<16xf32>
    %147 = vector.multi_reduction <add>, %144, %cst_61 [1] : vector<16x128xf32> to vector<16xf32>
    %148 = vector.shape_cast %147 : vector<16xf32> to vector<16x1xf32>
    %cst_62 = arith.constant 1.280000e+02 : f32
    %149 = vector.broadcast %cst_62 : f32 to vector<16x1xf32>
    %150 = arith.divf %148, %149 : vector<16x1xf32>
    %151 = vector.broadcast %150 : vector<16x1xf32> to vector<16x128xf32>
    %152 = arith.subf %144, %151 : vector<16x128xf32>
    %153 = arith.mulf %152, %152 : vector<16x128xf32>
    %cst_63 = arith.constant dense<0.000000e+00> : vector<16xf32>
    %154 = vector.multi_reduction <add>, %153, %cst_63 [1] : vector<16x128xf32> to vector<16xf32>
    %155 = vector.shape_cast %154 : vector<16xf32> to vector<16x1xf32>
    %cst_64 = arith.constant 1.280000e+02 : f32
    %156 = vector.broadcast %cst_64 : f32 to vector<16x1xf32>
    %157 = arith.divf %155, %156 : vector<16x1xf32>
    %158 = vector.broadcast %150 : vector<16x1xf32> to vector<16x128xf32>
    %159 = arith.subf %144, %158 : vector<16x128xf32>
    %cst_65 = arith.constant 9.99999974E-6 : f32
    %160 = vector.broadcast %cst_65 : f32 to vector<16x1xf32>
    %161 = arith.addf %157, %160 : vector<16x1xf32>
    %162 = math.rsqrt %161 : vector<16x1xf32>
    %163 = vector.broadcast %162 : vector<16x1xf32> to vector<16x128xf32>
    %164 = arith.mulf %159, %163 : vector<16x128xf32>
    %cst_66 = arith.constant 1.000000e+00 : f32
    %165 = vector.broadcast %cst_66 : f32 to vector<16x128xf32>
    %166 = arith.addf %165, %145 : vector<16x128xf32>
    %167 = arith.mulf %164, %166 : vector<16x128xf32>
    %168 = arith.addf %167, %146 : vector<16x128xf32>
    %169 = arith.truncf %168 : vector<16x128xf32> to vector<16x128xbf16>
    %c1 = arith.constant 1 : index
    %c0_67 = arith.constant 0 : index
    %c0_68 = arith.constant 0 : index
    %170 = vector.load %arg4[%c1, %c0_67, %c0_68] : memref<2x128x384xbf16, #tpu.memory_space<vmem>>, vector<1x128x384xbf16>
    %171 = vector.shape_cast %170 : vector<1x128x384xbf16> to vector<128x384xbf16>
    %cst_69 = arith.constant dense<0.000000e+00> : vector<16x384xf32>
    %172 = tpu.matmul %169, %171, %cst_69 {dimension_numbers = #tpu.dot_dimension_numbers<[1], [0], [0], [1], [0, 0, 1, 1], [], []>} : vector<16x128xbf16>, vector<128x384xbf16>, vector<16x384xf32> -> vector<16x384xf32>
    %c1_70 = arith.constant 1 : index
    %c0_71 = arith.constant 0 : index
    %c0_72 = arith.constant 0 : index
    %173 = vector.load %arg5[%c1_70, %c0_71, %c0_72] : memref<2x1x384xf32, #tpu.memory_space<vmem>>, vector<1x1x384xf32>
    %174 = vector.shape_cast %173 : vector<1x1x384xf32> to vector<1x384xf32>
    %175 = vector.broadcast %174 : vector<1x384xf32> to vector<16x384xf32>
    %176 = arith.addf %172, %175 : vector<16x384xf32>
    %177 = vector.extract_strided_slice %176 {offsets = [0, 0], sizes = [16, 128], strides = [1, 1]} : vector<16x384xf32> to vector<16x128xf32>
    %178 = vector.shape_cast %177 : vector<16x128xf32> to vector<2x8x128xf32>
    %179 = vector.extract_strided_slice %178 {offsets = [0, 0, 0], sizes = [2, 8, 32], strides = [1, 1, 1]} : vector<2x8x128xf32> to vector<2x8x32xf32>
    %180 = vector.extract_strided_slice %178 {offsets = [0, 0, 32], sizes = [2, 8, 32], strides = [1, 1, 1]} : vector<2x8x128xf32> to vector<2x8x32xf32>
    %181 = vector.extract_strided_slice %178 {offsets = [0, 0, 64], sizes = [2, 8, 32], strides = [1, 1, 1]} : vector<2x8x128xf32> to vector<2x8x32xf32>
    %182 = vector.extract_strided_slice %178 {offsets = [0, 0, 96], sizes = [2, 8, 32], strides = [1, 1, 1]} : vector<2x8x128xf32> to vector<2x8x32xf32>
    %183 = tpu.concatenate %179, %180, %181, %182 in 0 : vector<2x8x32xf32>, vector<2x8x32xf32>, vector<2x8x32xf32>, vector<2x8x32xf32> -> vector<8x8x32xf32>
    %184 = vector.extract_strided_slice %176 {offsets = [0, 128], sizes = [16, 128], strides = [1, 1]} : vector<16x384xf32> to vector<16x128xf32>
    %185 = vector.shape_cast %184 : vector<16x128xf32> to vector<2x8x128xf32>
    %186 = vector.extract_strided_slice %185 {offsets = [0, 0, 0], sizes = [2, 8, 32], strides = [1, 1, 1]} : vector<2x8x128xf32> to vector<2x8x32xf32>
    %187 = vector.extract_strided_slice %185 {offsets = [0, 0, 32], sizes = [2, 8, 32], strides = [1, 1, 1]} : vector<2x8x128xf32> to vector<2x8x32xf32>
    %188 = vector.extract_strided_slice %185 {offsets = [0, 0, 64], sizes = [2, 8, 32], strides = [1, 1, 1]} : vector<2x8x128xf32> to vector<2x8x32xf32>
    %189 = vector.extract_strided_slice %185 {offsets = [0, 0, 96], sizes = [2, 8, 32], strides = [1, 1, 1]} : vector<2x8x128xf32> to vector<2x8x32xf32>
    %190 = tpu.concatenate %186, %187, %188, %189 in 0 : vector<2x8x32xf32>, vector<2x8x32xf32>, vector<2x8x32xf32>, vector<2x8x32xf32> -> vector<8x8x32xf32>
    %191 = vector.extract_strided_slice %176 {offsets = [0, 256], sizes = [16, 128], strides = [1, 1]} : vector<16x384xf32> to vector<16x128xf32>
    %192 = vector.shape_cast %191 : vector<16x128xf32> to vector<2x8x128xf32>
    %193 = vector.extract_strided_slice %192 {offsets = [0, 0, 0], sizes = [2, 8, 32], strides = [1, 1, 1]} : vector<2x8x128xf32> to vector<2x8x32xf32>
    %194 = vector.extract_strided_slice %192 {offsets = [0, 0, 32], sizes = [2, 8, 32], strides = [1, 1, 1]} : vector<2x8x128xf32> to vector<2x8x32xf32>
    %195 = vector.extract_strided_slice %192 {offsets = [0, 0, 64], sizes = [2, 8, 32], strides = [1, 1, 1]} : vector<2x8x128xf32> to vector<2x8x32xf32>
    %196 = vector.extract_strided_slice %192 {offsets = [0, 0, 96], sizes = [2, 8, 32], strides = [1, 1, 1]} : vector<2x8x128xf32> to vector<2x8x32xf32>
    %197 = tpu.concatenate %193, %194, %195, %196 in 0 : vector<2x8x32xf32>, vector<2x8x32xf32>, vector<2x8x32xf32>, vector<2x8x32xf32> -> vector<8x8x32xf32>
    "tpu.trace_start"() <{level = 10 : i32, message = "gtd,gsd->gts"}> : () -> ()
    %cst_73 = arith.constant dense<0.000000e+00> : vector<8x8x8xf32>
    %198 = tpu.matmul %183, %190, %cst_73 {dimension_numbers = #tpu.dot_dimension_numbers<[2], [2], [1], [1], [0, 0, 0, 1, 1, 1], [0], [0]>} : vector<8x8x32xf32>, vector<8x8x32xf32>, vector<8x8x8xf32> -> vector<8x8x8xf32>
    "tpu.trace_stop"() : () -> ()
    %cst_74 = arith.constant 0.176776692 : f32
    %199 = vector.broadcast %cst_74 : f32 to vector<8x8x8xf32>
    %200 = arith.mulf %198, %199 : vector<8x8x8xf32>
    %cst_75 = arith.constant dense<0xFF800000> : vector<8x8xf32>
    %201 = vector.multi_reduction <maximumf>, %200, %cst_75 [2] : vector<8x8x8xf32> to vector<8x8xf32>
    %202 = vector.shape_cast %201 : vector<8x8xf32> to vector<8x8x1xf32>
    %203 = vector.broadcast %202 : vector<8x8x1xf32> to vector<8x8x8xf32>
    %204 = arith.subf %200, %203 : vector<8x8x8xf32>
    %205 = math.exp %204 : vector<8x8x8xf32>
    %cst_76 = arith.constant dense<0.000000e+00> : vector<8x8xf32>
    %206 = vector.multi_reduction <add>, %205, %cst_76 [2] : vector<8x8x8xf32> to vector<8x8xf32>
    %207 = vector.shape_cast %206 : vector<8x8xf32> to vector<8x8x1xf32>
    %208 = vector.broadcast %207 : vector<8x8x1xf32> to vector<8x8x8xf32>
    %209 = arith.divf %205, %208 : vector<8x8x8xf32>
    "tpu.trace_start"() <{level = 10 : i32, message = "gts,gsd->gtd"}> : () -> ()
    %cst_77 = arith.constant dense<0.000000e+00> : vector<8x8x32xf32>
    %210 = tpu.matmul %209, %197, %cst_77 {dimension_numbers = #tpu.dot_dimension_numbers<[2], [1], [1], [2], [0, 0, 0, 1, 1, 2], [0], [0]>} : vector<8x8x8xf32>, vector<8x8x32xf32>, vector<8x8x32xf32> -> vector<8x8x32xf32>
    "tpu.trace_stop"() : () -> ()
    %211 = vector.extract_strided_slice %210 {offsets = [0, 0, 0], sizes = [2, 8, 32], strides = [1, 1, 1]} : vector<8x8x32xf32> to vector<2x8x32xf32>
    %212 = vector.extract_strided_slice %210 {offsets = [2, 0, 0], sizes = [2, 8, 32], strides = [1, 1, 1]} : vector<8x8x32xf32> to vector<2x8x32xf32>
    %213 = vector.extract_strided_slice %210 {offsets = [4, 0, 0], sizes = [2, 8, 32], strides = [1, 1, 1]} : vector<8x8x32xf32> to vector<2x8x32xf32>
    %214 = vector.extract_strided_slice %210 {offsets = [6, 0, 0], sizes = [2, 8, 32], strides = [1, 1, 1]} : vector<8x8x32xf32> to vector<2x8x32xf32>
    %215 = tpu.concatenate %211, %212, %213, %214 in 2 : vector<2x8x32xf32>, vector<2x8x32xf32>, vector<2x8x32xf32>, vector<2x8x32xf32> -> vector<2x8x128xf32>
    %216 = vector.shape_cast %215 : vector<2x8x128xf32> to vector<16x128xf32>
    %217 = arith.truncf %216 : vector<16x128xf32> to vector<16x128xbf16>
    %c1_78 = arith.constant 1 : index
    %c0_79 = arith.constant 0 : index
    %c0_80 = arith.constant 0 : index
    %218 = vector.load %arg6[%c1_78, %c0_79, %c0_80] : memref<2x128x128xbf16, #tpu.memory_space<vmem>>, vector<1x128x128xbf16>
    %219 = vector.shape_cast %218 : vector<1x128x128xbf16> to vector<128x128xbf16>
    %cst_81 = arith.constant dense<0.000000e+00> : vector<16x128xf32>
    %220 = tpu.matmul %217, %219, %cst_81 {dimension_numbers = #tpu.dot_dimension_numbers<[1], [0], [0], [1], [0, 0, 1, 1], [], []>} : vector<16x128xbf16>, vector<128x128xbf16>, vector<16x128xf32> -> vector<16x128xf32>
    %c1_82 = arith.constant 1 : index
    %c0_83 = arith.constant 0 : index
    %c0_84 = arith.constant 0 : index
    %221 = vector.load %arg7[%c1_82, %c0_83, %c0_84] : memref<2x1x128xf32, #tpu.memory_space<vmem>>, vector<1x1x128xf32>
    %222 = vector.shape_cast %221 : vector<1x1x128xf32> to vector<1x128xf32>
    %223 = vector.broadcast %222 : vector<1x128xf32> to vector<16x128xf32>
    %224 = arith.addf %220, %223 : vector<16x128xf32>
    %225 = arith.addf %144, %224 : vector<16x128xf32>
    %cst_85 = arith.constant dense<0.000000e+00> : vector<16xf32>
    %226 = vector.multi_reduction <add>, %225, %cst_85 [1] : vector<16x128xf32> to vector<16xf32>
    %227 = vector.shape_cast %226 : vector<16xf32> to vector<16x1xf32>
    %cst_86 = arith.constant 1.280000e+02 : f32
    %228 = vector.broadcast %cst_86 : f32 to vector<16x1xf32>
    %229 = arith.divf %227, %228 : vector<16x1xf32>
    %230 = vector.broadcast %229 : vector<16x1xf32> to vector<16x128xf32>
    %231 = arith.subf %225, %230 : vector<16x128xf32>
    %232 = arith.mulf %231, %231 : vector<16x128xf32>
    %cst_87 = arith.constant dense<0.000000e+00> : vector<16xf32>
    %233 = vector.multi_reduction <add>, %232, %cst_87 [1] : vector<16x128xf32> to vector<16xf32>
    %234 = vector.shape_cast %233 : vector<16xf32> to vector<16x1xf32>
    %cst_88 = arith.constant 1.280000e+02 : f32
    %235 = vector.broadcast %cst_88 : f32 to vector<16x1xf32>
    %236 = arith.divf %234, %235 : vector<16x1xf32>
    %237 = vector.broadcast %229 : vector<16x1xf32> to vector<16x128xf32>
    %238 = arith.subf %225, %237 : vector<16x128xf32>
    %cst_89 = arith.constant 9.99999974E-6 : f32
    %239 = vector.broadcast %cst_89 : f32 to vector<16x1xf32>
    %240 = arith.addf %236, %239 : vector<16x1xf32>
    %241 = math.rsqrt %240 : vector<16x1xf32>
    %242 = vector.broadcast %241 : vector<16x1xf32> to vector<16x128xf32>
    %243 = arith.mulf %238, %242 : vector<16x128xf32>
    %c1_90 = arith.constant 1 : index
    %c0_91 = arith.constant 0 : index
    %c0_92 = arith.constant 0 : index
    %244 = vector.load %arg8[%c1_90, %c0_91, %c0_92] : memref<2x1x128xf32, #tpu.memory_space<vmem>>, vector<1x1x128xf32>
    %245 = vector.shape_cast %244 : vector<1x1x128xf32> to vector<1x128xf32>
    %246 = vector.broadcast %245 : vector<1x128xf32> to vector<16x128xf32>
    %247 = arith.mulf %243, %246 : vector<16x128xf32>
    %c1_93 = arith.constant 1 : index
    %c0_94 = arith.constant 0 : index
    %c0_95 = arith.constant 0 : index
    %248 = vector.load %arg9[%c1_93, %c0_94, %c0_95] : memref<2x1x128xf32, #tpu.memory_space<vmem>>, vector<1x1x128xf32>
    %249 = vector.shape_cast %248 : vector<1x1x128xf32> to vector<1x128xf32>
    %250 = vector.broadcast %249 : vector<1x128xf32> to vector<16x128xf32>
    %251 = arith.addf %247, %250 : vector<16x128xf32>
    %252 = arith.truncf %251 : vector<16x128xf32> to vector<16x128xbf16>
    %c1_96 = arith.constant 1 : index
    %c0_97 = arith.constant 0 : index
    %c0_98 = arith.constant 0 : index
    %253 = vector.load %arg10[%c1_96, %c0_97, %c0_98] : memref<2x128x512xbf16, #tpu.memory_space<vmem>>, vector<1x128x512xbf16>
    %254 = vector.shape_cast %253 : vector<1x128x512xbf16> to vector<128x512xbf16>
    %cst_99 = arith.constant dense<0.000000e+00> : vector<16x512xf32>
    %255 = tpu.matmul %252, %254, %cst_99 {dimension_numbers = #tpu.dot_dimension_numbers<[1], [0], [0], [1], [0, 0, 1, 1], [], []>} : vector<16x128xbf16>, vector<128x512xbf16>, vector<16x512xf32> -> vector<16x512xf32>
    %c1_100 = arith.constant 1 : index
    %c0_101 = arith.constant 0 : index
    %c0_102 = arith.constant 0 : index
    %256 = vector.load %arg11[%c1_100, %c0_101, %c0_102] : memref<2x1x512xf32, #tpu.memory_space<vmem>>, vector<1x1x512xf32>
    %257 = vector.shape_cast %256 : vector<1x1x512xf32> to vector<1x512xf32>
    %258 = vector.broadcast %257 : vector<1x512xf32> to vector<16x512xf32>
    %259 = arith.addf %255, %258 : vector<16x512xf32>
    %cst_103 = arith.constant 5.000000e-01 : f32
    %260 = vector.broadcast %cst_103 : f32 to vector<16x512xf32>
    %261 = arith.mulf %260, %259 : vector<16x512xf32>
    %cst_104 = arith.constant 4.471500e-02 : f32
    %262 = vector.broadcast %cst_104 : f32 to vector<16x512xf32>
    %263 = arith.mulf %262, %259 : vector<16x512xf32>
    %264 = arith.mulf %263, %259 : vector<16x512xf32>
    %265 = arith.mulf %264, %259 : vector<16x512xf32>
    %266 = arith.addf %259, %265 : vector<16x512xf32>
    %cst_105 = arith.constant 0.797884583 : f32
    %267 = vector.broadcast %cst_105 : f32 to vector<16x512xf32>
    %268 = arith.mulf %267, %266 : vector<16x512xf32>
    %269 = math.tanh %268 : vector<16x512xf32>
    %cst_106 = arith.constant 1.000000e+00 : f32
    %270 = vector.broadcast %cst_106 : f32 to vector<16x512xf32>
    %271 = arith.addf %270, %269 : vector<16x512xf32>
    %272 = arith.mulf %261, %271 : vector<16x512xf32>
    %273 = arith.truncf %272 : vector<16x512xf32> to vector<16x512xbf16>
    %c1_107 = arith.constant 1 : index
    %c0_108 = arith.constant 0 : index
    %c0_109 = arith.constant 0 : index
    %274 = vector.load %arg12[%c1_107, %c0_108, %c0_109] : memref<2x512x128xbf16, #tpu.memory_space<vmem>>, vector<1x512x128xbf16>
    %275 = vector.shape_cast %274 : vector<1x512x128xbf16> to vector<512x128xbf16>
    %cst_110 = arith.constant dense<0.000000e+00> : vector<16x128xf32>
    %276 = tpu.matmul %273, %275, %cst_110 {dimension_numbers = #tpu.dot_dimension_numbers<[1], [0], [0], [1], [0, 0, 1, 1], [], []>} : vector<16x512xbf16>, vector<512x128xbf16>, vector<16x128xf32> -> vector<16x128xf32>
    %c1_111 = arith.constant 1 : index
    %c0_112 = arith.constant 0 : index
    %c0_113 = arith.constant 0 : index
    %277 = vector.load %arg13[%c1_111, %c0_112, %c0_113] : memref<2x1x128xf32, #tpu.memory_space<vmem>>, vector<1x1x128xf32>
    %278 = vector.shape_cast %277 : vector<1x1x128xf32> to vector<1x128xf32>
    %279 = vector.broadcast %278 : vector<1x128xf32> to vector<16x128xf32>
    %280 = arith.addf %276, %279 : vector<16x128xf32>
    %281 = arith.addf %225, %280 : vector<16x128xf32>
    %c0_114 = arith.constant 0 : index
    %c0_115 = arith.constant 0 : index
    %282 = vector.load %arg14[%c0_114, %c0_115] : memref<16x128xf32, #tpu.memory_space<vmem>>, vector<16x128xf32>
    tpu.vector_store %arg14[%c0_114, %c0_115], %281 {strides = array<i32>} : memref<16x128xf32, #tpu.memory_space<vmem>>, vector<16x128xf32>,
    return
  }
}

</mosaic_0001>

<llo_original>
// kernel: encoder_forward.1
$region0: #{encoder_forward.1}
  #allocation0 [shape = 'u32[]', space=smem, size = 0x4, offset = 0x4, fixed_abs, tag = 'smem constant byte address 0x4 - core index']
  #allocation1 [shape = 'u32[72,128]{1,0:T(1,128)}', space=vmem, size = 0x9000, scoped, tag = 'internal scratch']
  %s0 = inlined_call_operand.vmem [shape: f32[16,128], index: 0, kind: input, shape index: {}]
  %s1 = inlined_call_operand.vmem [shape: f32[16,128], index: 1, kind: input, shape index: {}]
  %s2 = inlined_call_operand.hbm [shape: bf16[128,512], index: 2, kind: input, shape index: {}]
  %s3 = inlined_call_operand.hbm [shape: f32[1,512], index: 3, kind: input, shape index: {}]
  %s4 = inlined_call_operand.hbm [shape: bf16[2,128,384], index: 4, kind: input, shape index: {}]
  %s5 = inlined_call_operand.vmem [shape: f32[2,1,384], index: 5, kind: input, shape index: {}]
  %s6 = inlined_call_operand.hbm [shape: bf16[2,128,128], index: 6, kind: input, shape index: {}]
  %s7 = inlined_call_operand.vmem [shape: f32[2,1,128], index: 7, kind: input, shape index: {}]
  %s8 = inlined_call_operand.vmem [shape: f32[2,1,128], index: 8, kind: input, shape index: {}]
  %s9 = inlined_call_operand.vmem [shape: f32[2,1,128], index: 9, kind: input, shape index: {}]
  %s10 = inlined_call_operand.hbm [shape: bf16[2,128,512], index: 10, kind: input, shape index: {}]
  %s11 = inlined_call_operand.vmem [shape: f32[2,1,512], index: 11, kind: input, shape index: {}]
  %s12 = inlined_call_operand.hbm [shape: bf16[2,512,128], index: 12, kind: input, shape index: {}]
  %s13 = inlined_call_operand.hbm [shape: f32[2,1,128], index: 13, kind: input, shape index: {}]
  %s14 = inlined_call_operand.hbm [shape: f32[16,128], index: 14, kind: output, shape index: {}]
  %s15 = sld [smem:[#allocation0]]
  $region94: #{encoder_forward.1} parent=0
    _
  %s17 = ssub.s32 1, %s15
  %s18 = scalar_select 0, %s17, %s15
  $region1: #{encoder_forward.1} parent=0
    #allocation2 [shape = 'u8[131072]{0}', space=vmem, size = 0x20000, scoped, tag = 'input window, operand 2, single buffered']
    #allocation3 [shape = 's32[1]{0}', space=sflag, size = 0x4, scoped, tag = 'scoped memory for encoder_forward.1']
    #allocation4 [shape = 's32[1]{0}', space=sflag, size = 0x4, scoped, tag = 'scoped memory for encoder_forward.1']
    #allocation5 [shape = 'u8[2048]{0}', space=vmem, size = 0x800, scoped, tag = 'input window, operand 3, single buffered']
    #allocation6 [shape = 's32[1]{0}', space=sflag, size = 0x4, scoped, tag = 'scoped memory for encoder_forward.1']
    #allocation7 [shape = 'u8[196608]{0}', space=vmem, size = 0x30000, scoped, tag = 'input window, operand 4, single buffered']
    #allocation8 [shape = 'u8[65536]{0}', space=vmem, size = 0x10000, scoped, tag = 'input window, operand 6, single buffered']
    #allocation9 [shape = 's32[1]{0}', space=sflag, size = 0x4, scoped, tag = 'scoped memory for encoder_forward.1']
    #allocation10 [shape = 'u8[262144]{0}', space=vmem, size = 0x40000, scoped, tag = 'input window, operand 10, single buffered']
    #allocation11 [shape = 'u8[262144]{0}', space=vmem, size = 0x40000, scoped, tag = 'input window, operand 12, single buffered']
    #allocation12 [shape = 's32[1]{0}', space=sflag, size = 0x4, scoped, tag = 'scoped memory for encoder_forward.1']
    #allocation13 [shape = 'u8[1024]{0}', space=vmem, size = 0x400, scoped, tag = 'input window, operand 13, single buffered']
    #allocation14 [shape = 'u8[8192]{0}', space=vmem, size = 0x2000, scoped, tag = 'output window, operand 0, single buffered']
    %19 = vsyncpa [#allocation3], 0
    %20 = vsyncpa [#allocation6], 0
    %21 = vsyncpa [#allocation9], 0
    %22 = vsyncpa [#allocation12], 0
    %23 = vsyncpa [#allocation4], 0
    // Predicated region
    $region2: #{encoder_forward.1} parent=1 // pred_check
      _
    $region3: #{encoder_forward.1} parent=1 // pred_check_branch
      %25 = sbr.rel (0) target = $region5
    $region4: #{encoder_forward.1} parent=1 // pred_region
      _
    $region5: #{encoder_forward.1} parent=1 // pred_fallthru
      _
    // Predicated region
    $region6: #{encoder_forward.1} parent=1 // pred_check
      _
    $region7: #{encoder_forward.1} parent=1 // pred_check_branch
      %27 = sbr.rel (0) target = $region9
    $region8: #{encoder_forward.1} parent=1 // pred_region
      _
    $region9: #{encoder_forward.1} parent=1 // pred_fallthru
      _
    // Predicated region
    $region10: #{encoder_forward.1} parent=1 // pred_check
      _
    $region11: #{encoder_forward.1} parent=1 // pred_check_branch
      %29 = sbr.rel (0) target = $region13
    $region12: #{encoder_forward.1} parent=1 // pred_region
      %31 = vsyncadd [#allocation3], 0
      %s32 = sshll.u32 %s2, 4
      %s33 = int_to_ptr.hbm [resolvable:$true] %s32
      %s34 = sshll.u32 [#allocation2], 4
      %s35 = int_to_ptr.vmem [resolvable:$true] %s34
      %40 = dma.hbm_to_vmem [thread:$0]  %s33, 4096, %s35, [#allocation3], 256, 256, 16
    $region13: #{encoder_forward.1} parent=1 // pred_fallthru
      _
    // Predicated region
    $region14: #{encoder_forward.1} parent=1 // pred_check
      _
    $region15: #{encoder_forward.1} parent=1 // pred_check_branch
      %42 = sbr.rel (0) target = $region17
    $region16: #{encoder_forward.1} parent=1 // pred_region
      %44 = vsyncadd [#allocation6], 0
      %s46 = sshll.u32 %s3, 4
      %s47 = int_to_ptr.hbm [resolvable:$true] %s46
      %s48 = sshll.u32 [#allocation5], 4
      %s49 = int_to_ptr.vmem [resolvable:$true] %s48
      %51 = dma.hbm_to_vmem [thread:$0]  %s47, 64, %s49, [#allocation6]
    $region17: #{encoder_forward.1} parent=1 // pred_fallthru
      _
    // Predicated region
    $region18: #{encoder_forward.1} parent=1 // pred_check
      _
    $region19: #{encoder_forward.1} parent=1 // pred_check_branch
      %53 = sbr.rel (0) target = $region21
    $region20: #{encoder_forward.1} parent=1 // pred_region
      %55 = vsyncadd [#allocation6], 0
      %s56 = sshll.u32 %s4, 4
      %s57 = int_to_ptr.hbm [resolvable:$true] %s56
      %s58 = sshll.u32 [#allocation7], 4
      %s59 = int_to_ptr.vmem [resolvable:$true] %s58
      %64 = dma.hbm_to_vmem [thread:$0]  %s57, 6144, %s59, [#allocation6], 192, 192, 12
    $region21: #{encoder_forward.1} parent=1 // pred_fallthru
      _
    // Predicated region
    $region22: #{encoder_forward.1} parent=1 // pred_check
      _
    $region23: #{encoder_forward.1} parent=1 // pred_check_branch
      %66 = sbr.rel (0) target = $region25
    $region24: #{encoder_forward.1} parent=1 // pred_region
      _
    $region25: #{encoder_forward.1} parent=1 // pred_fallthru
      _
    // Predicated region
    $region26: #{encoder_forward.1} parent=1 // pred_check
      _
    $region27: #{encoder_forward.1} parent=1 // pred_check_branch
      %68 = sbr.rel (0) target = $region29
    $region28: #{encoder_forward.1} parent=1 // pred_region
      %70 = vsyncadd [#allocation9], 0
      %s71 = sshll.u32 %s6, 4
      %s72 = int_to_ptr.hbm [resolvable:$true] %s71
      %s73 = sshll.u32 [#allocation8], 4
      %s74 = int_to_ptr.vmem [resolvable:$true] %s73
      %79 = dma.hbm_to_vmem [thread:$0]  %s72, 2048, %s74, [#allocation9], 64, 64, 4
    $region29: #{encoder_forward.1} parent=1 // pred_fallthru
      _
    // Predicated region
    $region30: #{encoder_forward.1} parent=1 // pred_check
      _
    $region31: #{encoder_forward.1} parent=1 // pred_check_branch
      %81 = sbr.rel (0) target = $region33
    $region32: #{encoder_forward.1} parent=1 // pred_region
      _
    $region33: #{encoder_forward.1} parent=1 // pred_fallthru
      _
    // Predicated region
    $region34: #{encoder_forward.1} parent=1 // pred_check
      _
    $region35: #{encoder_forward.1} parent=1 // pred_check_branch
      %83 = sbr.rel (0) target = $region37
    $region36: #{encoder_forward.1} parent=1 // pred_region
      _
    $region37: #{encoder_forward.1} parent=1 // pred_fallthru
      _
    // Predicated region
    $region38: #{encoder_forward.1} parent=1 // pred_check
      _
    $region39: #{encoder_forward.1} parent=1 // pred_check_branch
      %85 = sbr.rel (0) target = $region41
    $region40: #{encoder_forward.1} parent=1 // pred_region
      _
    $region41: #{encoder_forward.1} parent=1 // pred_fallthru
      _
    // Predicated region
    $region42: #{encoder_forward.1} parent=1 // pred_check
      _
    $region43: #{encoder_forward.1} parent=1 // pred_check_branch
      %87 = sbr.rel (0) target = $region45
    $region44: #{encoder_forward.1} parent=1 // pred_region
      %89 = vsyncadd [#allocation9], 0
      %s90 = sshll.u32 %s10, 4
      %s91 = int_to_ptr.hbm [resolvable:$true] %s90
      %s92 = sshll.u32 [#allocation10], 4
      %s93 = int_to_ptr.vmem [resolvable:$true] %s92
      %98 = dma.hbm_to_vmem [thread:$0]  %s91, 8192, %s93, [#allocation9], 256, 256, 16
    $region45: #{encoder_forward.1} parent=1 // pred_fallthru
      _
    // Predicated region
    $region46: #{encoder_forward.1} parent=1 // pred_check
      _
    $region47: #{encoder_forward.1} parent=1 // pred_check_branch
      %100 = sbr.rel (0) target = $region49
    $region48: #{encoder_forward.1} parent=1 // pred_region
      _
    $region49: #{encoder_forward.1} parent=1 // pred_fallthru
      _
    // Predicated region
    $region50: #{encoder_forward.1} parent=1 // pred_check
      _
    $region51: #{encoder_forward.1} parent=1 // pred_check_branch
      %102 = sbr.rel (0) target = $region53
    $region52: #{encoder_forward.1} parent=1 // pred_region
      %104 = vsyncadd [#allocation12], 0
      %s105 = sshll.u32 %s12, 4
      %s106 = int_to_ptr.hbm [resolvable:$true] %s105
      %s107 = sshll.u32 [#allocation11], 4
      %s108 = int_to_ptr.vmem [resolvable:$true] %s107
      %113 = dma.hbm_to_vmem [thread:$0]  %s106, 8192, %s108, [#allocation12], 64, 64, 4
    $region53: #{encoder_forward.1} parent=1 // pred_fallthru
      _
    // Predicated region
    $region54: #{encoder_forward.1} parent=1 // pred_check
      _
    $region55: #{encoder_forward.1} parent=1 // pred_check_branch
      %115 = sbr.rel (0) target = $region57
    $region56: #{encoder_forward.1} parent=1 // pred_region
      %117 = vsyncadd [#allocation12], 0
      %s118 = sshll.u32 %s13, 4
      %s119 = int_to_ptr.hbm [resolvable:$true] %s118
      %s120 = sshll.u32 [#allocation13], 4
      %s121 = int_to_ptr.vmem [resolvable:$true] %s120
      %126 = dma.hbm_to_vmem [thread:$0]  %s119, 32, %s121, [#allocation12], 16, 16, 1
    $region57: #{encoder_forward.1} parent=1 // pred_fallthru
      _
    // Predicated region
    $region58: #{encoder_forward.1} parent=1 // pred_check
      _
    $region59: #{encoder_forward.1} parent=1 // pred_check_branch
      %128 = sbr.rel (0) target = $region61
    $region60: #{encoder_forward.1} parent=1 // pred_region
      %130 = dma.done [#allocation3], 4096
    $region61: #{encoder_forward.1} parent=1 // pred_fallthru
      _
    // Predicated region
    $region62: #{encoder_forward.1} parent=1 // pred_check
      _
    $region63: #{encoder_forward.1} parent=1 // pred_check_branch
      %132 = sbr.rel (0) target = $region65
    $region64: #{encoder_forward.1} parent=1 // pred_region
      %134 = dma.done [#allocation6], 64
    $region65: #{encoder_forward.1} parent=1 // pred_fallthru
      _
    // Predicated region
    $region66: #{encoder_forward.1} parent=1 // pred_check
      _
    $region67: #{encoder_forward.1} parent=1 // pred_check_branch
      %136 = sbr.rel (0) target = $region69
    $region68: #{encoder_forward.1} parent=1 // pred_region
      %138 = dma.done [#allocation6], 6144
    $region69: #{encoder_forward.1} parent=1 // pred_fallthru
      _
    // Predicated region
    $region70: #{encoder_forward.1} parent=1 // pred_check
      _
    $region71: #{encoder_forward.1} parent=1 // pred_check_branch
      %140 = sbr.rel (0) target = $region73
    $region72: #{encoder_forward.1} parent=1 // pred_region
      %142 = dma.done [#allocation9], 2048
    $region73: #{encoder_forward.1} parent=1 // pred_fallthru
      _
    // Predicated region
    $region74: #{encoder_forward.1} parent=1 // pred_check
      _
    $region75: #{encoder_forward.1} parent=1 // pred_check_branch
      %144 = sbr.rel (0) target = $region77
    $region76: #{encoder_forward.1} parent=1 // pred_region
      %146 = dma.done [#allocation9], 8192
    $region77: #{encoder_forward.1} parent=1 // pred_fallthru
      _
    // Predicated region
    $region78: #{encoder_forward.1} parent=1 // pred_check
      _
    $region79: #{encoder_forward.1} parent=1 // pred_check_branch
      %148 = sbr.rel (0) target = $region81
    $region80: #{encoder_forward.1} parent=1 // pred_region
      %150 = dma.done [#allocation12], 8192
    $region81: #{encoder_forward.1} parent=1 // pred_fallthru
      _
    // Predicated region
    $region82: #{encoder_forward.1} parent=1 // pred_check
      _
    $region83: #{encoder_forward.1} parent=1 // pred_check_branch
      %152 = sbr.rel (0) target = $region85
    $region84: #{encoder_forward.1} parent=1 // pred_region
      %154 = dma.done [#allocation12], 32
    $region85: #{encoder_forward.1} parent=1 // pred_fallthru
      _
    %v155 = vld [vmem:[%s0] sm:$0xff]
    %v156 = vld [vmem:[%s0 + $0x8] sm:$0xff]
    %v157 = vld [vmem:[%s1] sm:$0xff]
    %v158 = vld [vmem:[%s1 + $0x8] sm:$0xff]
    %v159 = vpack.c.bf16 %v158, %v157
    %v160 = vld [vmem:[#allocation2] sm:$0xff]
    %v161 = vld [vmem:[#allocation2 + $0x8] sm:$0xff]
    %v162 = vld [vmem:[#allocation2 + $0x10] sm:$0xff]
    %v163 = vld [vmem:[#allocation2 + $0x18] sm:$0xff]
    %v164 = vld [vmem:[#allocation2 + $0x20] sm:$0xff]
    %v165 = vld [vmem:[#allocation2 + $0x28] sm:$0xff]
    %v166 = vld [vmem:[#allocation2 + $0x30] sm:$0xff]
    %v167 = vld [vmem:[#allocation2 + $0x38] sm:$0xff]
    %v168 = vld [vmem:[#allocation2 + $0x40] sm:$0xff]
    %v169 = vld [vmem:[#allocation2 + $0x48] sm:$0xff]
    %v170 = vld [vmem:[#allocation2 + $0x50] sm:$0xff]
    %v171 = vld [vmem:[#allocation2 + $0x58] sm:$0xff]
    %v172 = vld [vmem:[#allocation2 + $0x60] sm:$0xff]
    %v173 = vld [vmem:[#allocation2 + $0x68] sm:$0xff]
    %v174 = vld [vmem:[#allocation2 + $0x70] sm:$0xff]
    %v175 = vld [vmem:[#allocation2 + $0x78] sm:$0xff]
    %v176 = vld [vmem:[#allocation2 + $0x80] sm:$0xff]
    %v177 = vld [vmem:[#allocation2 + $0x88] sm:$0xff]
    %v178 = vld [vmem:[#allocation2 + $0x90] sm:$0xff]
    %v179 = vld [vmem:[#allocation2 + $0x98] sm:$0xff]
    %v180 = vld [vmem:[#allocation2 + $0xa0] sm:$0xff]
    %v181 = vld [vmem:[#allocation2 + $0xa8] sm:$0xff]
    %v182 = vld [vmem:[#allocation2 + $0xb0] sm:$0xff]
    %v183 = vld [vmem:[#allocation2 + $0xb8] sm:$0xff]
    %v184 = vld [vmem:[#allocation2 + $0xc0] sm:$0xff]
    %v185 = vld [vmem:[#allocation2 + $0xc8] sm:$0xff]
    %v186 = vld [vmem:[#allocation2 + $0xd0] sm:$0xff]
    %v187 = vld [vmem:[#allocation2 + $0xd8] sm:$0xff]
    %v188 = vld [vmem:[#allocation2 + $0xe0] sm:$0xff]
    %v189 = vld [vmem:[#allocation2 + $0xe8] sm:$0xff]
    %v190 = vld [vmem:[#allocation2 + $0xf0] sm:$0xff]
    %v191 = vld [vmem:[#allocation2 + $0xf8] sm:$0xff]
    %v192 = vld [vmem:[#allocation5] sm:$0xf]
    %v194 = vperm.slane %v192, 0
    %v195 = vperm.slane %v192, 1
    %v196 = vperm.slane %v192, 2
    %v197 = vperm.slane %v192, 3
    %v234 = vunpack.c.l.b16 %v160
    %v235 = vunpack.c.h.b16 %v160
    %v236 = vunpack.c.l.b16 %v161
    %v237 = vunpack.c.h.b16 %v161
    %v238 = vunpack.c.l.b16 %v162
    %v239 = vunpack.c.h.b16 %v162
    %v240 = vunpack.c.l.b16 %v163
    %v241 = vunpack.c.h.b16 %v163
    %v242 = vunpack.c.l.b16 %v164
    %v243 = vunpack.c.h.b16 %v164
    %v244 = vunpack.c.l.b16 %v165
    %v245 = vunpack.c.h.b16 %v165
    %v246 = vunpack.c.l.b16 %v166
    %v247 = vunpack.c.h.b16 %v166
    %v248 = vunpack.c.l.b16 %v167
    %v249 = vunpack.c.h.b16 %v167
    %v250 = vunpack.c.l.b16 %v168
    %v251 = vunpack.c.h.b16 %v168
    %v252 = vunpack.c.l.b16 %v169
    %v253 = vunpack.c.h.b16 %v169
    %v254 = vunpack.c.l.b16 %v170
    %v255 = vunpack.c.h.b16 %v170
    %v256 = vunpack.c.l.b16 %v171
    %v257 = vunpack.c.h.b16 %v171
    %v258 = vunpack.c.l.b16 %v172
    %v259 = vunpack.c.h.b16 %v172
    %v260 = vunpack.c.l.b16 %v173
    %v261 = vunpack.c.h.b16 %v173
    %v262 = vunpack.c.l.b16 %v174
    %v263 = vunpack.c.h.b16 %v174
    %v264 = vunpack.c.l.b16 %v175
    %v265 = vunpack.c.h.b16 %v175
    %v266 = vunpack.c.l.b16 %v176
    %v267 = vunpack.c.h.b16 %v176
    %v268 = vunpack.c.l.b16 %v177
    %v269 = vunpack.c.h.b16 %v177
    %v270 = vunpack.c.l.b16 %v178
    %v271 = vunpack.c.h.b16 %v178
    %v272 = vunpack.c.l.b16 %v179
    %v273 = vunpack.c.h.b16 %v179
    %v274 = vunpack.c.l.b16 %v180
    %v275 = vunpack.c.h.b16 %v180
    %v276 = vunpack.c.l.b16 %v181
    %v277 = vunpack.c.h.b16 %v181
    %v278 = vunpack.c.l.b16 %v182
    %v279 = vunpack.c.h.b16 %v182
    %v280 = vunpack.c.l.b16 %v183
    %v281 = vunpack.c.h.b16 %v183
    %v282 = vunpack.c.l.b16 %v184
    %v283 = vunpack.c.h.b16 %v184
    %v284 = vunpack.c.l.b16 %v185
    %v285 = vunpack.c.h.b16 %v185
    %v286 = vunpack.c.l.b16 %v186
    %v287 = vunpack.c.h.b16 %v186
    %v288 = vunpack.c.l.b16 %v187
    %v289 = vunpack.c.h.b16 %v187
    %v290 = vunpack.c.l.b16 %v188
    %v291 = vunpack.c.h.b16 %v188
    %v292 = vunpack.c.l.b16 %v189
    %v293 = vunpack.c.h.b16 %v189
    %v294 = vunpack.c.l.b16 %v190
    %v295 = vunpack.c.h.b16 %v190
    %v296 = vunpack.c.l.b16 %v191
    %v297 = vunpack.c.h.b16 %v191
    %v298 = vpack.c.b16 %v238, %v234
    %v299 = vpack.c.b16 %v239, %v235
    %v300 = vpack.c.b16 %v240, %v236
    %v301 = vpack.c.b16 %v241, %v237
    %v302 = vpack.c.b16 %v246, %v242
    %v303 = vpack.c.b16 %v247, %v243
    %v304 = vpack.c.b16 %v248, %v244
    %v305 = vpack.c.b16 %v249, %v245
    %v306 = vpack.c.b16 %v254, %v250
    %v307 = vpack.c.b16 %v255, %v251
    %v308 = vpack.c.b16 %v256, %v252
    %v309 = vpack.c.b16 %v257, %v253
    %v310 = vpack.c.b16 %v262, %v258
    %v311 = vpack.c.b16 %v263, %v259
    %v312 = vpack.c.b16 %v264, %v260
    %v313 = vpack.c.b16 %v265, %v261
    %v314 = vpack.c.b16 %v270, %v266
    %v315 = vpack.c.b16 %v271, %v267
    %v316 = vpack.c.b16 %v272, %v268
    %v317 = vpack.c.b16 %v273, %v269
    %v318 = vpack.c.b16 %v278, %v274
    %v319 = vpack.c.b16 %v279, %v275
    %v320 = vpack.c.b16 %v280, %v276
    %v321 = vpack.c.b16 %v281, %v277
    %v322 = vpack.c.b16 %v286, %v282
    %v323 = vpack.c.b16 %v287, %v283
    %v324 = vpack.c.b16 %v288, %v284
    %v325 = vpack.c.b16 %v289, %v285
    %v326 = vpack.c.b16 %v294, %v290
    %v327 = vpack.c.b16 %v295, %v291
    %v328 = vpack.c.b16 %v296, %v292
    %v329 = vpack.c.b16 %v297, %v293
    %362 = vmatpush.bf16.msra.mxu0 %v326
    %363 = vmatpush.bf16.msra.mxu0 %v322
    %364 = vmatpush.bf16.msra.mxu0 %v318
    %365 = vmatpush.bf16.msra.mxu0 %v314
    %366 = vmatpush.bf16.msra.mxu0 %v310
    %367 = vmatpush.bf16.msra.mxu0 %v306
    %368 = vmatpush.bf16.msra.mxu0 %v302
    %369 = vmatpush.bf16.msra.mxu0 %v298
    %370 = vmatmul.bf16.gmra.mxu0 %v159
    %v371 = vpop.f32.mrf.mxu0
    %v372 = vadd.f32 %v194, %v371
    %v373 = vpop.f32.mrf.mxu0
    %v374 = vadd.f32 %v194, %v373
    %375 = vdwg.mxu0
    %376 = vmatpush.bf16.msra.mxu0 %v327
    %377 = vmatpush.bf16.msra.mxu0 %v323
    %378 = vmatpush.bf16.msra.mxu0 %v319
    %379 = vmatpush.bf16.msra.mxu0 %v315
    %380 = vmatpush.bf16.msra.mxu0 %v311
    %381 = vmatpush.bf16.msra.mxu0 %v307
    %382 = vmatpush.bf16.msra.mxu0 %v303
    %383 = vmatpush.bf16.msra.mxu0 %v299
    %384 = vmatmul.bf16.gmra.mxu0 %v159
    %v385 = vpop.f32.mrf.mxu0
    %v386 = vadd.f32 %v195, %v385
    %v387 = vpop.f32.mrf.mxu0
    %v388 = vadd.f32 %v195, %v387
    %389 = vdwg.mxu0
    %390 = vmatpush.bf16.msra.mxu0 %v328
    %391 = vmatpush.bf16.msra.mxu0 %v324
    %392 = vmatpush.bf16.msra.mxu0 %v320
    %393 = vmatpush.bf16.msra.mxu0 %v316
    %394 = vmatpush.bf16.msra.mxu0 %v312
    %395 = vmatpush.bf16.msra.mxu0 %v308
    %396 = vmatpush.bf16.msra.mxu0 %v304
    %397 = vmatpush.bf16.msra.mxu0 %v300
    %398 = vmatmul.bf16.gmra.mxu0 %v159
    %v399 = vpop.f32.mrf.mxu0
    %v400 = vadd.f32 %v196, %v399
    %v401 = vpop.f32.mrf.mxu0
    %v402 = vadd.f32 %v196, %v401
    %403 = vdwg.mxu0
    %404 = vmatpush.bf16.msra.mxu0 %v329
    %405 = vmatpush.bf16.msra.mxu0 %v325
    %406 = vmatpush.bf16.msra.mxu0 %v321
    %407 = vmatpush.bf16.msra.mxu0 %v317
    %408 = vmatpush.bf16.msra.mxu0 %v313
    %409 = vmatpush.bf16.msra.mxu0 %v309
    %410 = vmatpush.bf16.msra.mxu0 %v305
    %411 = vmatpush.bf16.msra.mxu0 %v301
    %412 = vmatmul.bf16.gmra.mxu0 %v159
    %v413 = vpop.f32.mrf.mxu0
    %v414 = vadd.f32 %v197, %v413
    %v415 = vpop.f32.mrf.mxu0
    %v416 = vadd.f32 %v197, %v415
    %417 = vdwg.mxu0
    %418 = vadd.xlane.f32.xlu0 %v155
    %v419 = vpop.xlane.xlu0 %418
    %420 = vadd.xlane.f32.xlu0 %v156
    %v421 = vpop.xlane.xlu0 %420
    %v422 = vrcp.pop 128.0
    %v423 = vmul.f32 128.0, %v422
    %v424 = vsub.f32 1.0, %v423
    %v425 = vmul.f32 %v422, %v424
    %v426 = vadd.f32 %v422, %v425
    %vm427 = vweird.f32 %v422
    %v428 = vsel %vm427, %v422, %v426
    %v429 = vmul.f32 %v419, %v428
    %v430 = vmul.f32 %v421, %v428
    %v431 = vsub.f32 %v155, %v429
    %v432 = vsub.f32 %v156, %v430
    %v433 = vmul.f32 %v431, %v431
    %v434 = vmul.f32 %v432, %v432
    %435 = vadd.xlane.f32.xlu0 %v433
    %v436 = vpop.xlane.xlu0 %435
    %437 = vadd.xlane.f32.xlu0 %v434
    %v438 = vpop.xlane.xlu0 %437
    %v439 = vmul.f32 %v436, %v428
    %v440 = vmul.f32 %v438, %v428
    %v441 = vadd.f32 %v439, 1e-05
    %v442 = vadd.f32 %v440, 1e-05
    %v443 = vrsqrt.pop %v441
    %v444 = vmul.f32 %v443, %v441
    %v445 = vmul.f32 %v444, %v443
    %v446 = vmul.f32 0.5, %v445
    %v447 = vsub.f32 1.5, %v446
    %v448 = vmul.f32 %v443, %v447
    %vm449 = vweird.f32 %v441
    %vm450 = vweird.f32 %v443
    %vm451 = vmor %vm449, %vm450
    %v452 = vsel %vm451, %v443, %v448
    %v453 = vrsqrt.pop %v442
    %v454 = vmul.f32 %v453, %v442
    %v455 = vmul.f32 %v454, %v453
    %v456 = vmul.f32 0.5, %v455
    %v457 = vsub.f32 1.5, %v456
    %v458 = vmul.f32 %v453, %v457
    %vm459 = vweird.f32 %v442
    %vm460 = vweird.f32 %v453
    %vm461 = vmor %vm459, %vm460
    %v462 = vsel %vm461, %v453, %v458
    %v463 = vmul.f32 %v431, %v452
    %v464 = vmul.f32 %v432, %v462
    %v465 = vadd.f32 %v372, 1.0
    %v466 = vadd.f32 %v374, 1.0
    %v467 = vmul.f32 %v463, %v465
    %v468 = vmul.f32 %v464, %v466
    %v469 = vadd.f32 %v467, %v386
    %v470 = vadd.f32 %v468, %v388
    %v471 = vpack.c.bf16 %v470, %v469
    %v472 = vld [vmem:[#allocation7] sm:$0xff]
    %v473 = vld [vmem:[#allocation7 + $0x8] sm:$0xf]
    %v474 = vld [vmem:[#allocation7 + $0xc] sm:$0xff]
    %v475 = vld [vmem:[#allocation7 + $0x14] sm:$0xf]
    %v476 = vld [vmem:[#allocation7 + $0x18] sm:$0xff]
    %v477 = vld [vmem:[#allocation7 + $0x20] sm:$0xf]
    %v478 = vld [vmem:[#allocation7 + $0x24] sm:$0xff]
    %v479 = vld [vmem:[#allocation7 + $0x2c] sm:$0xf]
    %v480 = vld [vmem:[#allocation7 + $0x30] sm:$0xff]
    %v481 = vld [vmem:[#allocation7 + $0x38] sm:$0xf]
    %v482 = vld [vmem:[#allocation7 + $0x3c] sm:$0xff]
    %v483 = vld [vmem:[#allocation7 + $0x44] sm:$0xf]
    %v484 = vld [vmem:[#allocation7 + $0x48] sm:$0xff]
    %v485 = vld [vmem:[#allocation7 + $0x50] sm:$0xf]
    %v486 = vld [vmem:[#allocation7 + $0x54] sm:$0xff]
    %v487 = vld [vmem:[#allocation7 + $0x5c] sm:$0xf]
    %v488 = vld [vmem:[#allocation7 + $0x60] sm:$0xff]
    %v489 = vld [vmem:[#allocation7 + $0x68] sm:$0xf]
    %v490 = vld [vmem:[#allocation7 + $0x6c] sm:$0xff]
    %v491 = vld [vmem:[#allocation7 + $0x74] sm:$0xf]
    %v492 = vld [vmem:[#allocation7 + $0x78] sm:$0xff]
    %v493 = vld [vmem:[#allocation7 + $0x80] sm:$0xf]
    %v494 = vld [vmem:[#allocation7 + $0x84] sm:$0xff]
    %v495 = vld [vmem:[#allocation7 + $0x8c] sm:$0xf]
    %v496 = vld [vmem:[#allocation7 + $0x90] sm:$0xff]
    %v497 = vld [vmem:[#allocation7 + $0x98] sm:$0xf]
    %v498 = vld [vmem:[#allocation7 + $0x9c] sm:$0xff]
    %v499 = vld [vmem:[#allocation7 + $0xa4] sm:$0xf]
    %v500 = vld [vmem:[#allocation7 + $0xa8] sm:$0xff]
    %v501 = vld [vmem:[#allocation7 + $0xb0] sm:$0xf]
    %v502 = vld [vmem:[#allocation7 + $0xb4] sm:$0xff]
    %v503 = vld [vmem:[#allocation7 + $0xbc] sm:$0xf]
    %v504 = vld [vmem:[%s5] sm:$0x7]
    %v506 = vperm.slane %v504, 0
    %v507 = vperm.slane %v504, 1
    %v508 = vperm.slane %v504, 2
    %v544 = vunpack.c.l.b16 %v472
    %v545 = vunpack.c.h.b16 %v472
    %v546 = vunpack.c.l.b16 %v473
    %v547 = vunpack.c.l.b16 %v474
    %v548 = vunpack.c.h.b16 %v474
    %v549 = vunpack.c.l.b16 %v475
    %v550 = vunpack.c.l.b16 %v476
    %v551 = vunpack.c.h.b16 %v476
    %v552 = vunpack.c.l.b16 %v477
    %v553 = vunpack.c.l.b16 %v478
    %v554 = vunpack.c.h.b16 %v478
    %v555 = vunpack.c.l.b16 %v479
    %v556 = vunpack.c.l.b16 %v480
    %v557 = vunpack.c.h.b16 %v480
    %v558 = vunpack.c.l.b16 %v481
    %v559 = vunpack.c.l.b16 %v482
    %v560 = vunpack.c.h.b16 %v482
    %v561 = vunpack.c.l.b16 %v483
    %v562 = vunpack.c.l.b16 %v484
    %v563 = vunpack.c.h.b16 %v484
    %v564 = vunpack.c.l.b16 %v485
    %v565 = vunpack.c.l.b16 %v486
    %v566 = vunpack.c.h.b16 %v486
    %v567 = vunpack.c.l.b16 %v487
    %v568 = vunpack.c.l.b16 %v488
    %v569 = vunpack.c.h.b16 %v488
    %v570 = vunpack.c.l.b16 %v489
    %v571 = vunpack.c.l.b16 %v490
    %v572 = vunpack.c.h.b16 %v490
    %v573 = vunpack.c.l.b16 %v491
    %v574 = vunpack.c.l.b16 %v492
    %v575 = vunpack.c.h.b16 %v492
    %v576 = vunpack.c.l.b16 %v493
    %v577 = vunpack.c.l.b16 %v494
    %v578 = vunpack.c.h.b16 %v494
    %v579 = vunpack.c.l.b16 %v495
    %v580 = vunpack.c.l.b16 %v496
    %v581 = vunpack.c.h.b16 %v496
    %v582 = vunpack.c.l.b16 %v497
    %v583 = vunpack.c.l.b16 %v498
    %v584 = vunpack.c.h.b16 %v498
    %v585 = vunpack.c.l.b16 %v499
    %v586 = vunpack.c.l.b16 %v500
    %v587 = vunpack.c.h.b16 %v500
    %v588 = vunpack.c.l.b16 %v501
    %v589 = vunpack.c.l.b16 %v502
    %v590 = vunpack.c.h.b16 %v502
    %v591 = vunpack.c.l.b16 %v503
    %v592 = vpack.c.b16 %v547, %v544
    %v593 = vpack.c.b16 %v548, %v545
    %v594 = vpack.c.b16 %v549, %v546
    %v595 = vpack.c.b16 %v553, %v550
    %v596 = vpack.c.b16 %v554, %v551
    %v597 = vpack.c.b16 %v555, %v552
    %v598 = vpack.c.b16 %v559, %v556
    %v599 = vpack.c.b16 %v560, %v557
    %v600 = vpack.c.b16 %v561, %v558
    %v601 = vpack.c.b16 %v565, %v562
    %v602 = vpack.c.b16 %v566, %v563
    %v603 = vpack.c.b16 %v567, %v564
    %v604 = vpack.c.b16 %v571, %v568
    %v605 = vpack.c.b16 %v572, %v569
    %v606 = vpack.c.b16 %v573, %v570
    %v607 = vpack.c.b16 %v577, %v574
    %v608 = vpack.c.b16 %v578, %v575
    %v609 = vpack.c.b16 %v579, %v576
    %v610 = vpack.c.b16 %v583, %v580
    %v611 = vpack.c.b16 %v584, %v581
    %v612 = vpack.c.b16 %v585, %v582
    %v613 = vpack.c.b16 %v589, %v586
    %v614 = vpack.c.b16 %v590, %v587
    %v615 = vpack.c.b16 %v591, %v588
    %640 = vmatpush.bf16.msra.mxu0 %v613
    %641 = vmatpush.bf16.msra.mxu0 %v610
    %642 = vmatpush.bf16.msra.mxu0 %v607
    %643 = vmatpush.bf16.msra.mxu0 %v604
    %644 = vmatpush.bf16.msra.mxu0 %v601
    %645 = vmatpush.bf16.msra.mxu0 %v598
    %646 = vmatpush.bf16.msra.mxu0 %v595
    %647 = vmatpush.bf16.msra.mxu0 %v592
    %648 = vmatmul.bf16.gmra.mxu0 %v471
    %v649 = vpop.f32.mrf.mxu0
    %v650 = vadd.f32 %v506, %v649
    %v651 = vpop.f32.mrf.mxu0
    %v652 = vadd.f32 %v506, %v651
    %653 = vdwg.mxu0
    %654 = vmatpush.bf16.msra.mxu0 %v614
    %655 = vmatpush.bf16.msra.mxu0 %v611
    %656 = vmatpush.bf16.msra.mxu0 %v608
    %657 = vmatpush.bf16.msra.mxu0 %v605
    %658 = vmatpush.bf16.msra.mxu0 %v602
    %659 = vmatpush.bf16.msra.mxu0 %v599
    %660 = vmatpush.bf16.msra.mxu0 %v596
    %661 = vmatpush.bf16.msra.mxu0 %v593
    %662 = vmatmul.bf16.gmra.mxu0 %v471
    %v663 = vpop.f32.mrf.mxu0
    %v664 = vadd.f32 %v507, %v663
    %v665 = vpop.f32.mrf.mxu0
    %v666 = vadd.f32 %v507, %v665
    %667 = vdwg.mxu0
    %668 = vmatpush.bf16.msra.mxu0 %v615
    %669 = vmatpush.bf16.msra.mxu0 %v612
    %670 = vmatpush.bf16.msra.mxu0 %v609
    %671 = vmatpush.bf16.msra.mxu0 %v606
    %672 = vmatpush.bf16.msra.mxu0 %v603
    %673 = vmatpush.bf16.msra.mxu0 %v600
    %674 = vmatpush.bf16.msra.mxu0 %v597
    %675 = vmatpush.bf16.msra.mxu0 %v594
    %676 = vmatmul.bf16.gmra.mxu0 %v471
    %v677 = vpop.f32.mrf.mxu0
    %v678 = vadd.f32 %v508, %v677
    %v679 = vpop.f32.mrf.mxu0
    %v680 = vadd.f32 %v508, %v679
    %681 = vdwg.mxu0
    %684 = vrot.lane.b32.xlu0 %v650, 96
    %v685 = vpop.permute.xlu0 %684
    %686 = vrot.lane.b32.xlu0 %v652, 96
    %v687 = vpop.permute.xlu0 %686
    %688 = vrot.lane.b32.xlu0 %v650, 64
    %v689 = vpop.permute.xlu0 %688
    %690 = vrot.lane.b32.xlu0 %v652, 64
    %v691 = vpop.permute.xlu0 %690
    %692 = vrot.lane.b32.xlu0 %v650, 32
    %v693 = vpop.permute.xlu0 %692
    %694 = vrot.lane.b32.xlu0 %v652, 32
    %v695 = vpop.permute.xlu0 %694
    %698 = vrot.lane.b32.xlu0 %v664, 96
    %v699 = vpop.permute.xlu0 %698
    %700 = vrot.lane.b32.xlu0 %v666, 96
    %v701 = vpop.permute.xlu0 %700
    %702 = vrot.lane.b32.xlu0 %v664, 64
    %v703 = vpop.permute.xlu0 %702
    %704 = vrot.lane.b32.xlu0 %v666, 64
    %v705 = vpop.permute.xlu0 %704
    %706 = vrot.lane.b32.xlu0 %v664, 32
    %v707 = vpop.permute.xlu0 %706
    %708 = vrot.lane.b32.xlu0 %v666, 32
    %v709 = vpop.permute.xlu0 %708
    %712 = vrot.lane.b32.xlu0 %v678, 96
    %v713 = vpop.permute.xlu0 %712
    %714 = vrot.lane.b32.xlu0 %v680, 96
    %v715 = vpop.permute.xlu0 %714
    %718 = vrot.lane.b32.xlu0 %v678, 64
    %v719 = vpop.permute.xlu0 %718
    %720 = vrot.lane.b32.xlu0 %v680, 64
    %v721 = vpop.permute.xlu0 %720
    %724 = vrot.lane.b32.xlu0 %v678, 32
    %v725 = vpop.permute.xlu0 %724
    %726 = vrot.lane.b32.xlu0 %v680, 32
    %v727 = vpop.permute.xlu0 %726
    %vm730 = vcmask 261120
    %v731 = vsel %vm730, %v650, 0
    %v733 = vsel %vm730, %v664, 0
    %735 = vmatpush.xpose.msra.mxu0 0.0
    %736 = vmatpush.xpose.msra.mxu0 0.0
    %737 = vmatpush.xpose.msra.mxu0 0.0
    %738 = vmatpush.xpose.msra.mxu0 0.0
    %739 = vmatpush.xpose.msra.mxu0 0.0
    %740 = vmatpush.xpose.msra.mxu0 0.0
    %741 = vmatpush.xpose.msra.mxu0 0.0
    %742 = vmatpush.xpose.msra.mxu0 0.0
    %743 = vmatpush.xpose.msra.mxu0 0.0
    %744 = vmatpush.xpose.msra.mxu0 0.0
    %745 = vmatpush.xpose.msra.mxu0 0.0
    %746 = vmatpush.xpose.msra.mxu0 0.0
    %747 = vmatpush.xpose.msra.mxu0 0.0
    %748 = vmatpush.xpose.msra.mxu0 0.0
    %749 = vmatpush.xpose.msra.mxu0 0.0
    %750 = vmatpush.xpose.msra.mxu0 %v733
    %751 = vmatmul.f32.gmra.mxu0 %v731
    %v752 = vpop.f32.mrf.mxu0
    %v753 = vadd.f32 0.0, %v752
    %754 = vdwg.mxu0
    %v755 = vsel %vm730, %v652, 0
    %v757 = vsel %vm730, %v666, 0
    %759 = vmatpush.xpose.msra.mxu0 0.0
    %760 = vmatpush.xpose.msra.mxu0 0.0
    %761 = vmatpush.xpose.msra.mxu0 0.0
    %762 = vmatpush.xpose.msra.mxu0 0.0
    %763 = vmatpush.xpose.msra.mxu0 0.0
    %764 = vmatpush.xpose.msra.mxu0 0.0
    %765 = vmatpush.xpose.msra.mxu0 0.0
    %766 = vmatpush.xpose.msra.mxu0 0.0
    %767 = vmatpush.xpose.msra.mxu0 0.0
    %768 = vmatpush.xpose.msra.mxu0 0.0
    %769 = vmatpush.xpose.msra.mxu0 0.0
    %770 = vmatpush.xpose.msra.mxu0 0.0
    %771 = vmatpush.xpose.msra.mxu0 0.0
    %772 = vmatpush.xpose.msra.mxu0 0.0
    %773 = vmatpush.xpose.msra.mxu0 0.0
    %774 = vmatpush.xpose.msra.mxu0 %v757
    %775 = vmatmul.f32.gmra.mxu0 %v755
    %v776 = vpop.f32.mrf.mxu0
    %v777 = vadd.f32 0.0, %v776
    %778 = vdwg.mxu0
    %v779 = vsel %vm730, %v685, 0
    %v781 = vsel %vm730, %v699, 0
    %783 = vmatpush.xpose.msra.mxu0 0.0
    %784 = vmatpush.xpose.msra.mxu0 0.0
    %785 = vmatpush.xpose.msra.mxu0 0.0
    %786 = vmatpush.xpose.msra.mxu0 0.0
    %787 = vmatpush.xpose.msra.mxu0 0.0
    %788 = vmatpush.xpose.msra.mxu0 0.0
    %789 = vmatpush.xpose.msra.mxu0 0.0
    %790 = vmatpush.xpose.msra.mxu0 0.0
    %791 = vmatpush.xpose.msra.mxu0 0.0
    %792 = vmatpush.xpose.msra.mxu0 0.0
    %793 = vmatpush.xpose.msra.mxu0 0.0
    %794 = vmatpush.xpose.msra.mxu0 0.0
    %795 = vmatpush.xpose.msra.mxu0 0.0
    %796 = vmatpush.xpose.msra.mxu0 0.0
    %797 = vmatpush.xpose.msra.mxu0 0.0
    %798 = vmatpush.xpose.msra.mxu0 %v781
    %799 = vmatmul.f32.gmra.mxu0 %v779
    %v800 = vpop.f32.mrf.mxu0
    %v801 = vadd.f32 0.0, %v800
    %802 = vdwg.mxu0
    %v803 = vsel %vm730, %v687, 0
    %v805 = vsel %vm730, %v701, 0
    %807 = vmatpush.xpose.msra.mxu0 0.0
    %808 = vmatpush.xpose.msra.mxu0 0.0
    %809 = vmatpush.xpose.msra.mxu0 0.0
    %810 = vmatpush.xpose.msra.mxu0 0.0
    %811 = vmatpush.xpose.msra.mxu0 0.0
    %812 = vmatpush.xpose.msra.mxu0 0.0
    %813 = vmatpush.xpose.msra.mxu0 0.0
    %814 = vmatpush.xpose.msra.mxu0 0.0
    %815 = vmatpush.xpose.msra.mxu0 0.0
    %816 = vmatpush.xpose.msra.mxu0 0.0
    %817 = vmatpush.xpose.msra.mxu0 0.0
    %818 = vmatpush.xpose.msra.mxu0 0.0
    %819 = vmatpush.xpose.msra.mxu0 0.0
    %820 = vmatpush.xpose.msra.mxu0 0.0
    %821 = vmatpush.xpose.msra.mxu0 0.0
    %822 = vmatpush.xpose.msra.mxu0 %v805
    %823 = vmatmul.f32.gmra.mxu0 %v803
    %v824 = vpop.f32.mrf.mxu0
    %v825 = vadd.f32 0.0, %v824
    %826 = vdwg.mxu0
    %v827 = vsel %vm730, %v689, 0
    %v829 = vsel %vm730, %v703, 0
    %831 = vmatpush.xpose.msra.mxu0 0.0
    %832 = vmatpush.xpose.msra.mxu0 0.0
    %833 = vmatpush.xpose.msra.mxu0 0.0
    %834 = vmatpush.xpose.msra.mxu0 0.0
    %835 = vmatpush.xpose.msra.mxu0 0.0
    %836 = vmatpush.xpose.msra.mxu0 0.0
    %837 = vmatpush.xpose.msra.mxu0 0.0
    %838 = vmatpush.xpose.msra.mxu0 0.0
    %839 = vmatpush.xpose.msra.mxu0 0.0
    %840 = vmatpush.xpose.msra.mxu0 0.0
    %841 = vmatpush.xpose.msra.mxu0 0.0
    %842 = vmatpush.xpose.msra.mxu0 0.0
    %843 = vmatpush.xpose.msra.mxu0 0.0
    %844 = vmatpush.xpose.msra.mxu0 0.0
    %845 = vmatpush.xpose.msra.mxu0 0.0
    %846 = vmatpush.xpose.msra.mxu0 %v829
    %847 = vmatmul.f32.gmra.mxu0 %v827
    %v848 = vpop.f32.mrf.mxu0
    %v849 = vadd.f32 0.0, %v848
    %850 = vdwg.mxu0
    %v851 = vsel %vm730, %v691, 0
    %v853 = vsel %vm730, %v705, 0
    %855 = vmatpush.xpose.msra.mxu0 0.0
    %856 = vmatpush.xpose.msra.mxu0 0.0
    %857 = vmatpush.xpose.msra.mxu0 0.0
    %858 = vmatpush.xpose.msra.mxu0 0.0
    %859 = vmatpush.xpose.msra.mxu0 0.0
    %860 = vmatpush.xpose.msra.mxu0 0.0
    %861 = vmatpush.xpose.msra.mxu0 0.0
    %862 = vmatpush.xpose.msra.mxu0 0.0
    %863 = vmatpush.xpose.msra.mxu0 0.0
    %864 = vmatpush.xpose.msra.mxu0 0.0
    %865 = vmatpush.xpose.msra.mxu0 0.0
    %866 = vmatpush.xpose.msra.mxu0 0.0
    %867 = vmatpush.xpose.msra.mxu0 0.0
    %868 = vmatpush.xpose.msra.mxu0 0.0
    %869 = vmatpush.xpose.msra.mxu0 0.0
    %870 = vmatpush.xpose.msra.mxu0 %v853
    %871 = vmatmul.f32.gmra.mxu0 %v851
    %v872 = vpop.f32.mrf.mxu0
    %v873 = vadd.f32 0.0, %v872
    %874 = vdwg.mxu0
    %v875 = vsel %vm730, %v693, 0
    %v877 = vsel %vm730, %v707, 0
    %879 = vmatpush.xpose.msra.mxu0 0.0
    %880 = vmatpush.xpose.msra.mxu0 0.0
    %881 = vmatpush.xpose.msra.mxu0 0.0
    %882 = vmatpush.xpose.msra.mxu0 0.0
    %883 = vmatpush.xpose.msra.mxu0 0.0
    %884 = vmatpush.xpose.msra.mxu0 0.0
    %885 = vmatpush.xpose.msra.mxu0 0.0
    %886 = vmatpush.xpose.msra.mxu0 0.0
    %887 = vmatpush.xpose.msra.mxu0 0.0
    %888 = vmatpush.xpose.msra.mxu0 0.0
    %889 = vmatpush.xpose.msra.mxu0 0.0
    %890 = vmatpush.xpose.msra.mxu0 0.0
    %891 = vmatpush.xpose.msra.mxu0 0.0
    %892 = vmatpush.xpose.msra.mxu0 0.0
    %893 = vmatpush.xpose.msra.mxu0 0.0
    %894 = vmatpush.xpose.msra.mxu0 %v877
    %895 = vmatmul.f32.gmra.mxu0 %v875
    %v896 = vpop.f32.mrf.mxu0
    %v897 = vadd.f32 0.0, %v896
    %898 = vdwg.mxu0
    %v899 = vsel %vm730, %v695, 0
    %v901 = vsel %vm730, %v709, 0
    %903 = vmatpush.xpose.msra.mxu0 0.0
    %904 = vmatpush.xpose.msra.mxu0 0.0
    %905 = vmatpush.xpose.msra.mxu0 0.0
    %906 = vmatpush.xpose.msra.mxu0 0.0
    %907 = vmatpush.xpose.msra.mxu0 0.0
    %908 = vmatpush.xpose.msra.mxu0 0.0
    %909 = vmatpush.xpose.msra.mxu0 0.0
    %910 = vmatpush.xpose.msra.mxu0 0.0
    %911 = vmatpush.xpose.msra.mxu0 0.0
    %912 = vmatpush.xpose.msra.mxu0 0.0
    %913 = vmatpush.xpose.msra.mxu0 0.0
    %914 = vmatpush.xpose.msra.mxu0 0.0
    %915 = vmatpush.xpose.msra.mxu0 0.0
    %916 = vmatpush.xpose.msra.mxu0 0.0
    %917 = vmatpush.xpose.msra.mxu0 0.0
    %918 = vmatpush.xpose.msra.mxu0 %v901
    %919 = vmatmul.f32.gmra.mxu0 %v899
    %v920 = vpop.f32.mrf.mxu0
    %v921 = vadd.f32 0.0, %v920
    %922 = vdwg.mxu0
    %v923 = vmul.f32 %v753, 0.17677669
    %v924 = vmul.f32 %v777, 0.17677669
    %v925 = vmul.f32 %v801, 0.17677669
    %v926 = vmul.f32 %v825, 0.17677669
    %v927 = vmul.f32 %v849, 0.17677669
    %v928 = vmul.f32 %v873, 0.17677669
    %v929 = vmul.f32 %v897, 0.17677669
    %v930 = vmul.f32 %v921, 0.17677669
    %vm931 = vcmask 64512
    %v932 = vsel %vm931, %v923, -inf
    %933 = vmax.xlane.f32.xlu0 %v932
    %v934 = vpop.xlane.xlu0 %933
    %v935 = vsel %vm931, %v924, -inf
    %936 = vmax.xlane.f32.xlu0 %v935
    %v937 = vpop.xlane.xlu0 %936
    %v938 = vsel %vm931, %v925, -inf
    %939 = vmax.xlane.f32.xlu0 %v938
    %v940 = vpop.xlane.xlu0 %939
    %v941 = vsel %vm931, %v926, -inf
    %942 = vmax.xlane.f32.xlu0 %v941
    %v943 = vpop.xlane.xlu0 %942
    %v944 = vsel %vm931, %v927, -inf
    %945 = vmax.xlane.f32.xlu0 %v944
    %v946 = vpop.xlane.xlu0 %945
    %v947 = vsel %vm931, %v928, -inf
    %948 = vmax.xlane.f32.xlu0 %v947
    %v949 = vpop.xlane.xlu0 %948
    %v950 = vsel %vm931, %v929, -inf
    %951 = vmax.xlane.f32.xlu0 %v950
    %v952 = vpop.xlane.xlu0 %951
    %v953 = vsel %vm931, %v930, -inf
    %954 = vmax.xlane.f32.xlu0 %v953
    %v955 = vpop.xlane.xlu0 %954
    %v956 = vsub.f32 %v923, %v934
    %v957 = vsub.f32 %v924, %v937
    %v958 = vsub.f32 %v925, %v940
    %v959 = vsub.f32 %v926, %v943
    %v960 = vsub.f32 %v927, %v946
    %v961 = vsub.f32 %v928, %v949
    %v962 = vsub.f32 %v929, %v952
    %v963 = vsub.f32 %v930, %v955
    %v964 = vmul.f32 %v956, 1.442695
    %v965 = vpow.pop %v964
    %v966 = vmul.f32 %v957, 1.442695
    %v967 = vpow.pop %v966
    %v968 = vmul.f32 %v958, 1.442695
    %v969 = vpow.pop %v968
    %v970 = vmul.f32 %v959, 1.442695
    %v971 = vpow.pop %v970
    %v972 = vmul.f32 %v960, 1.442695
    %v973 = vpow.pop %v972
    %v974 = vmul.f32 %v961, 1.442695
    %v975 = vpow.pop %v974
    %v976 = vmul.f32 %v962, 1.442695
    %v977 = vpow.pop %v976
    %v978 = vmul.f32 %v963, 1.442695
    %v979 = vpow.pop %v978
    %v980 = vsel %vm931, %v965, 0.0
    %981 = vadd.xlane.f32.xlu0 %v980
    %v982 = vpop.xlane.xlu0 %981
    %v983 = vsel %vm931, %v967, 0.0
    %984 = vadd.xlane.f32.xlu0 %v983
    %v985 = vpop.xlane.xlu0 %984
    %v986 = vsel %vm931, %v969, 0.0
    %987 = vadd.xlane.f32.xlu0 %v986
    %v988 = vpop.xlane.xlu0 %987
    %v989 = vsel %vm931, %v971, 0.0
    %990 = vadd.xlane.f32.xlu0 %v989
    %v991 = vpop.xlane.xlu0 %990
    %v992 = vsel %vm931, %v973, 0.0
    %993 = vadd.xlane.f32.xlu0 %v992
    %v994 = vpop.xlane.xlu0 %993
    %v995 = vsel %vm931, %v975, 0.0
    %996 = vadd.xlane.f32.xlu0 %v995
    %v997 = vpop.xlane.xlu0 %996
    %v998 = vsel %vm931, %v977, 0.0
    %999 = vadd.xlane.f32.xlu0 %v998
    %v1000 = vpop.xlane.xlu0 %999
    %v1001 = vsel %vm931, %v979, 0.0
    %1002 = vadd.xlane.f32.xlu0 %v1001
    %v1003 = vpop.xlane.xlu0 %1002
    %v1004 = vrcp.pop %v982
    %v1005 = vmul.f32 %v982, %v1004
    %v1006 = vsub.f32 1.0, %v1005
    %v1007 = vmul.f32 %v1004, %v1006
    %v1008 = vadd.f32 %v1004, %v1007
    %vm1009 = vweird.f32 %v982
    %vm1010 = vweird.f32 %v1004
    %vm1011 = vmor %vm1009, %vm1010
    %v1012 = vsel %vm1011, %v1004, %v1008
    %v1013 = vand.u32 2147483647, %v982
    %vm1014 = vcmp.eq.f32.partialorder %v1013, 8.507059e+37
    %v1015 = vand.u32 %v982, 2147483648
    %v1016 = vor.u32 1.1754944e-38, %v1015
    %v1017 = vsel %vm1014, %v1016, %v1012
    %v1018 = vmul.f32 %v965, %v1017
    %v1019 = vrcp.pop %v985
    %v1020 = vmul.f32 %v985, %v1019
    %v1021 = vsub.f32 1.0, %v1020
    %v1022 = vmul.f32 %v1019, %v1021
    %v1023 = vadd.f32 %v1019, %v1022
    %vm1024 = vweird.f32 %v985
    %vm1025 = vweird.f32 %v1019
    %vm1026 = vmor %vm1024, %vm1025
    %v1027 = vsel %vm1026, %v1019, %v1023
    %v1028 = vand.u32 2147483647, %v985
    %vm1029 = vcmp.eq.f32.partialorder %v1028, 8.507059e+37
    %v1030 = vand.u32 %v985, 2147483648
    %v1031 = vor.u32 1.1754944e-38, %v1030
    %v1032 = vsel %vm1029, %v1031, %v1027
    %v1033 = vmul.f32 %v967, %v1032
    %v1034 = vrcp.pop %v988
    %v1035 = vmul.f32 %v988, %v1034
    %v1036 = vsub.f32 1.0, %v1035
    %v1037 = vmul.f32 %v1034, %v1036
    %v1038 = vadd.f32 %v1034, %v1037
    %vm1039 = vweird.f32 %v988
    %vm1040 = vweird.f32 %v1034
    %vm1041 = vmor %vm1039, %vm1040
    %v1042 = vsel %vm1041, %v1034, %v1038
    %v1043 = vand.u32 2147483647, %v988
    %vm1044 = vcmp.eq.f32.partialorder %v1043, 8.507059e+37
    %v1045 = vand.u32 %v988, 2147483648
    %v1046 = vor.u32 1.1754944e-38, %v1045
    %v1047 = vsel %vm1044, %v1046, %v1042
    %v1048 = vmul.f32 %v969, %v1047
    %v1049 = vrcp.pop %v991
    %v1050 = vmul.f32 %v991, %v1049
    %v1051 = vsub.f32 1.0, %v1050
    %v1052 = vmul.f32 %v1049, %v1051
    %v1053 = vadd.f32 %v1049, %v1052
    %vm1054 = vweird.f32 %v991
    %vm1055 = vweird.f32 %v1049
    %vm1056 = vmor %vm1054, %vm1055
    %v1057 = vsel %vm1056, %v1049, %v1053
    %v1058 = vand.u32 2147483647, %v991
    %vm1059 = vcmp.eq.f32.partialorder %v1058, 8.507059e+37
    %v1060 = vand.u32 %v991, 2147483648
    %v1061 = vor.u32 1.1754944e-38, %v1060
    %v1062 = vsel %vm1059, %v1061, %v1057
    %v1063 = vmul.f32 %v971, %v1062
    %v1064 = vrcp.pop %v994
    %v1065 = vmul.f32 %v994, %v1064
    %v1066 = vsub.f32 1.0, %v1065
    %v1067 = vmul.f32 %v1064, %v1066
    %v1068 = vadd.f32 %v1064, %v1067
    %vm1069 = vweird.f32 %v994
    %vm1070 = vweird.f32 %v1064
    %vm1071 = vmor %vm1069, %vm1070
    %v1072 = vsel %vm1071, %v1064, %v1068
    %v1073 = vand.u32 2147483647, %v994
    %vm1074 = vcmp.eq.f32.partialorder %v1073, 8.507059e+37
    %v1075 = vand.u32 %v994, 2147483648
    %v1076 = vor.u32 1.1754944e-38, %v1075
    %v1077 = vsel %vm1074, %v1076, %v1072
    %v1078 = vmul.f32 %v973, %v1077
    %v1079 = vrcp.pop %v997
    %v1080 = vmul.f32 %v997, %v1079
    %v1081 = vsub.f32 1.0, %v1080
    %v1082 = vmul.f32 %v1079, %v1081
    %v1083 = vadd.f32 %v1079, %v1082
    %vm1084 = vweird.f32 %v997
    %vm1085 = vweird.f32 %v1079
    %vm1086 = vmor %vm1084, %vm1085
    %v1087 = vsel %vm1086, %v1079, %v1083
    %v1088 = vand.u32 2147483647, %v997
    %vm1089 = vcmp.eq.f32.partialorder %v1088, 8.507059e+37
    %v1090 = vand.u32 %v997, 2147483648
    %v1091 = vor.u32 1.1754944e-38, %v1090
    %v1092 = vsel %vm1089, %v1091, %v1087
    %v1093 = vmul.f32 %v975, %v1092
    %v1094 = vrcp.pop %v1000
    %v1095 = vmul.f32 %v1000, %v1094
    %v1096 = vsub.f32 1.0, %v1095
    %v1097 = vmul.f32 %v1094, %v1096
    %v1098 = vadd.f32 %v1094, %v1097
    %vm1099 = vweird.f32 %v1000
    %vm1100 = vweird.f32 %v1094
    %vm1101 = vmor %vm1099, %vm1100
    %v1102 = vsel %vm1101, %v1094, %v1098
    %v1103 = vand.u32 2147483647, %v1000
    %vm1104 = vcmp.eq.f32.partialorder %v1103, 8.507059e+37
    %v1105 = vand.u32 %v1000, 2147483648
    %v1106 = vor.u32 1.1754944e-38, %v1105
    %v1107 = vsel %vm1104, %v1106, %v1102
    %v1108 = vmul.f32 %v977, %v1107
    %v1109 = vrcp.pop %v1003
    %v1110 = vmul.f32 %v1003, %v1109
    %v1111 = vsub.f32 1.0, %v1110
    %v1112 = vmul.f32 %v1109, %v1111
    %v1113 = vadd.f32 %v1109, %v1112
    %vm1114 = vweird.f32 %v1003
    %vm1115 = vweird.f32 %v1109
    %vm1116 = vmor %vm1114, %vm1115
    %v1117 = vsel %vm1116, %v1109, %v1113
    %v1118 = vand.u32 2147483647, %v1003
    %vm1119 = vcmp.eq.f32.partialorder %v1118, 8.507059e+37
    %v1120 = vand.u32 %v1003, 2147483648
    %v1121 = vor.u32 1.1754944e-38, %v1120
    %v1122 = vsel %vm1119, %v1121, %v1117
    %v1123 = vmul.f32 %v979, %v1122
    %v1125 = vsel %vm931, %v1018, 0
    %1127 = vmatpush.msra.mxu0 0.0
    %1128 = vmatpush.msra.mxu0 0.0
    %1129 = vmatpush.msra.mxu0 0.0
    %1130 = vmatpush.msra.mxu0 0.0
    %1131 = vmatpush.msra.mxu0 0.0
    %1132 = vmatpush.msra.mxu0 0.0
    %1133 = vmatpush.msra.mxu0 0.0
    %1134 = vmatpush.msra.mxu0 0.0
    %1135 = vmatpush.msra.mxu0 0.0
    %1136 = vmatpush.msra.mxu0 0.0
    %1137 = vmatpush.msra.mxu0 0.0
    %1138 = vmatpush.msra.mxu0 0.0
    %1139 = vmatpush.msra.mxu0 0.0
    %1140 = vmatpush.msra.mxu0 0.0
    %1141 = vmatpush.msra.mxu0 0.0
    %1142 = vmatpush.msra.mxu0 %v678
    %1143 = vmatmul.f32.gmra.mxu0 %v1125
    %v1144 = vpop.f32.mrf.mxu0
    %v1145 = vadd.f32 0.0, %v1144
    %1146 = vdwg.mxu0
    %v1148 = vsel %vm931, %v1033, 0
    %1150 = vmatpush.msra.mxu0 0.0
    %1151 = vmatpush.msra.mxu0 0.0
    %1152 = vmatpush.msra.mxu0 0.0
    %1153 = vmatpush.msra.mxu0 0.0
    %1154 = vmatpush.msra.mxu0 0.0
    %1155 = vmatpush.msra.mxu0 0.0
    %1156 = vmatpush.msra.mxu0 0.0
    %1157 = vmatpush.msra.mxu0 0.0
    %1158 = vmatpush.msra.mxu0 0.0
    %1159 = vmatpush.msra.mxu0 0.0
    %1160 = vmatpush.msra.mxu0 0.0
    %1161 = vmatpush.msra.mxu0 0.0
    %1162 = vmatpush.msra.mxu0 0.0
    %1163 = vmatpush.msra.mxu0 0.0
    %1164 = vmatpush.msra.mxu0 0.0
    %1165 = vmatpush.msra.mxu0 %v680
    %1166 = vmatmul.f32.gmra.mxu0 %v1148
    %v1167 = vpop.f32.mrf.mxu0
    %v1168 = vadd.f32 0.0, %v1167
    %1169 = vdwg.mxu0
    %v1171 = vsel %vm931, %v1048, 0
    %1173 = vmatpush.msra.mxu0 0.0
    %1174 = vmatpush.msra.mxu0 0.0
    %1175 = vmatpush.msra.mxu0 0.0
    %1176 = vmatpush.msra.mxu0 0.0
    %1177 = vmatpush.msra.mxu0 0.0
    %1178 = vmatpush.msra.mxu0 0.0
    %1179 = vmatpush.msra.mxu0 0.0
    %1180 = vmatpush.msra.mxu0 0.0
    %1181 = vmatpush.msra.mxu0 0.0
    %1182 = vmatpush.msra.mxu0 0.0
    %1183 = vmatpush.msra.mxu0 0.0
    %1184 = vmatpush.msra.mxu0 0.0
    %1185 = vmatpush.msra.mxu0 0.0
    %1186 = vmatpush.msra.mxu0 0.0
    %1187 = vmatpush.msra.mxu0 0.0
    %1188 = vmatpush.msra.mxu0 %v713
    %1189 = vmatmul.f32.gmra.mxu0 %v1171
    %v1190 = vpop.f32.mrf.mxu0
    %v1191 = vadd.f32 0.0, %v1190
    %1192 = vdwg.mxu0
    %v1194 = vsel %vm931, %v1063, 0
    %1196 = vmatpush.msra.mxu0 0.0
    %1197 = vmatpush.msra.mxu0 0.0
    %1198 = vmatpush.msra.mxu0 0.0
    %1199 = vmatpush.msra.mxu0 0.0
    %1200 = vmatpush.msra.mxu0 0.0
    %1201 = vmatpush.msra.mxu0 0.0
    %1202 = vmatpush.msra.mxu0 0.0
    %1203 = vmatpush.msra.mxu0 0.0
    %1204 = vmatpush.msra.mxu0 0.0
    %1205 = vmatpush.msra.mxu0 0.0
    %1206 = vmatpush.msra.mxu0 0.0
    %1207 = vmatpush.msra.mxu0 0.0
    %1208 = vmatpush.msra.mxu0 0.0
    %1209 = vmatpush.msra.mxu0 0.0
    %1210 = vmatpush.msra.mxu0 0.0
    %1211 = vmatpush.msra.mxu0 %v715
    %1212 = vmatmul.f32.gmra.mxu0 %v1194
    %v1213 = vpop.f32.mrf.mxu0
    %v1214 = vadd.f32 0.0, %v1213
    %1215 = vdwg.mxu0
    %v1217 = vsel %vm931, %v1078, 0
    %1219 = vmatpush.msra.mxu0 0.0
    %1220 = vmatpush.msra.mxu0 0.0
    %1221 = vmatpush.msra.mxu0 0.0
    %1222 = vmatpush.msra.mxu0 0.0
    %1223 = vmatpush.msra.mxu0 0.0
    %1224 = vmatpush.msra.mxu0 0.0
    %1225 = vmatpush.msra.mxu0 0.0
    %1226 = vmatpush.msra.mxu0 0.0
    %1227 = vmatpush.msra.mxu0 0.0
    %1228 = vmatpush.msra.mxu0 0.0
    %1229 = vmatpush.msra.mxu0 0.0
    %1230 = vmatpush.msra.mxu0 0.0
    %1231 = vmatpush.msra.mxu0 0.0
    %1232 = vmatpush.msra.mxu0 0.0
    %1233 = vmatpush.msra.mxu0 0.0
    %1234 = vmatpush.msra.mxu0 %v719
    %1235 = vmatmul.f32.gmra.mxu0 %v1217
    %v1236 = vpop.f32.mrf.mxu0
    %v1237 = vadd.f32 0.0, %v1236
    %1238 = vdwg.mxu0
    %v1240 = vsel %vm931, %v1093, 0
    %1242 = vmatpush.msra.mxu0 0.0
    %1243 = vmatpush.msra.mxu0 0.0
    %1244 = vmatpush.msra.mxu0 0.0
    %1245 = vmatpush.msra.mxu0 0.0
    %1246 = vmatpush.msra.mxu0 0.0
    %1247 = vmatpush.msra.mxu0 0.0
    %1248 = vmatpush.msra.mxu0 0.0
    %1249 = vmatpush.msra.mxu0 0.0
    %1250 = vmatpush.msra.mxu0 0.0
    %1251 = vmatpush.msra.mxu0 0.0
    %1252 = vmatpush.msra.mxu0 0.0
    %1253 = vmatpush.msra.mxu0 0.0
    %1254 = vmatpush.msra.mxu0 0.0
    %1255 = vmatpush.msra.mxu0 0.0
    %1256 = vmatpush.msra.mxu0 0.0
    %1257 = vmatpush.msra.mxu0 %v721
    %1258 = vmatmul.f32.gmra.mxu0 %v1240
    %v1259 = vpop.f32.mrf.mxu0
    %v1260 = vadd.f32 0.0, %v1259
    %1261 = vdwg.mxu0
    %v1263 = vsel %vm931, %v1108, 0
    %1265 = vmatpush.msra.mxu0 0.0
    %1266 = vmatpush.msra.mxu0 0.0
    %1267 = vmatpush.msra.mxu0 0.0
    %1268 = vmatpush.msra.mxu0 0.0
    %1269 = vmatpush.msra.mxu0 0.0
    %1270 = vmatpush.msra.mxu0 0.0
    %1271 = vmatpush.msra.mxu0 0.0
    %1272 = vmatpush.msra.mxu0 0.0
    %1273 = vmatpush.msra.mxu0 0.0
    %1274 = vmatpush.msra.mxu0 0.0
    %1275 = vmatpush.msra.mxu0 0.0
    %1276 = vmatpush.msra.mxu0 0.0
    %1277 = vmatpush.msra.mxu0 0.0
    %1278 = vmatpush.msra.mxu0 0.0
    %1279 = vmatpush.msra.mxu0 0.0
    %1280 = vmatpush.msra.mxu0 %v725
    %1281 = vmatmul.f32.gmra.mxu0 %v1263
    %v1282 = vpop.f32.mrf.mxu0
    %v1283 = vadd.f32 0.0, %v1282
    %1284 = vdwg.mxu0
    %v1286 = vsel %vm931, %v1123, 0
    %1288 = vmatpush.msra.mxu0 0.0
    %1289 = vmatpush.msra.mxu0 0.0
    %1290 = vmatpush.msra.mxu0 0.0
    %1291 = vmatpush.msra.mxu0 0.0
    %1292 = vmatpush.msra.mxu0 0.0
    %1293 = vmatpush.msra.mxu0 0.0
    %1294 = vmatpush.msra.mxu0 0.0
    %1295 = vmatpush.msra.mxu0 0.0
    %1296 = vmatpush.msra.mxu0 0.0
    %1297 = vmatpush.msra.mxu0 0.0
    %1298 = vmatpush.msra.mxu0 0.0
    %1299 = vmatpush.msra.mxu0 0.0
    %1300 = vmatpush.msra.mxu0 0.0
    %1301 = vmatpush.msra.mxu0 0.0
    %1302 = vmatpush.msra.mxu0 0.0
    %1303 = vmatpush.msra.mxu0 %v727
    %1304 = vmatmul.f32.gmra.mxu0 %v1286
    %v1305 = vpop.f32.mrf.mxu0
    %v1306 = vadd.f32 0.0, %v1305
    %1307 = vdwg.mxu0
    %1310 = vrot.lane.b32.xlu0 %v1191, 32
    %v1311 = vpop.permute.xlu0 %1310
    %1312 = vrot.lane.b32.xlu0 %v1214, 32
    %v1313 = vpop.permute.xlu0 %1312
    %1318 = vrot.lane.b32.xlu0 %v1237, 64
    %v1319 = vpop.permute.xlu0 %1318
    %1320 = vrot.lane.b32.xlu0 %v1260, 64
    %v1321 = vpop.permute.xlu0 %1320
    %1326 = vrot.lane.b32.xlu0 %v1283, 96
    %v1327 = vpop.permute.xlu0 %1326
    %1328 = vrot.lane.b32.xlu0 %v1306, 96
    %v1329 = vpop.permute.xlu0 %1328
    %v1332 = vsel %vm730, %v1145, %v1311
    %v1333 = vsel %vm730, %v1168, %v1313
    %vm1334 = vcmask 523264
    %v1335 = vsel %vm1334, %v1332, %v1319
    %v1336 = vsel %vm1334, %v1333, %v1321
    %vm1337 = vcmask 785408
    %v1338 = vsel %vm1337, %v1335, %v1327
    %v1339 = vsel %vm1337, %v1336, %v1329
    %v1340 = vpack.c.bf16 %v1339, %v1338
    %v1341 = vld [vmem:[#allocation8] sm:$0xf]
    %v1342 = vld [vmem:[#allocation8 + $0x4] sm:$0xf]
    %v1343 = vld [vmem:[#allocation8 + $0x8] sm:$0xf]
    %v1344 = vld [vmem:[#allocation8 + $0xc] sm:$0xf]
    %v1345 = vld [vmem:[#allocation8 + $0x10] sm:$0xf]
    %v1346 = vld [vmem:[#allocation8 + $0x14] sm:$0xf]
    %v1347 = vld [vmem:[#allocation8 + $0x18] sm:$0xf]
    %v1348 = vld [vmem:[#allocation8 + $0x1c] sm:$0xf]
    %v1349 = vld [vmem:[#allocation8 + $0x20] sm:$0xf]
    %v1350 = vld [vmem:[#allocation8 + $0x24] sm:$0xf]
    %v1351 = vld [vmem:[#allocation8 + $0x28] sm:$0xf]
    %v1352 = vld [vmem:[#allocation8 + $0x2c] sm:$0xf]
    %v1353 = vld [vmem:[#allocation8 + $0x30] sm:$0xf]
    %v1354 = vld [vmem:[#allocation8 + $0x34] sm:$0xf]
    %v1355 = vld [vmem:[#allocation8 + $0x38] sm:$0xf]
    %v1356 = vld [vmem:[#allocation8 + $0x3c] sm:$0xf]
    %v1357 = vld [vmem:[%s7] sm:$0x1]
    %v1359 = vperm.slane %v1357, 0
    %v1377 = vunpack.c.l.b16 %v1341
    %v1378 = vunpack.c.l.b16 %v1342
    %v1379 = vunpack.c.l.b16 %v1343
    %v1380 = vunpack.c.l.b16 %v1344
    %v1381 = vunpack.c.l.b16 %v1345
    %v1382 = vunpack.c.l.b16 %v1346
    %v1383 = vunpack.c.l.b16 %v1347
    %v1384 = vunpack.c.l.b16 %v1348
    %v1385 = vunpack.c.l.b16 %v1349
    %v1386 = vunpack.c.l.b16 %v1350
    %v1387 = vunpack.c.l.b16 %v1351
    %v1388 = vunpack.c.l.b16 %v1352
    %v1389 = vunpack.c.l.b16 %v1353
    %v1390 = vunpack.c.l.b16 %v1354
    %v1391 = vunpack.c.l.b16 %v1355
    %v1392 = vunpack.c.l.b16 %v1356
    %v1393 = vpack.c.b16 %v1378, %v1377
    %v1394 = vpack.c.b16 %v1380, %v1379
    %v1395 = vpack.c.b16 %v1382, %v1381
    %v1396 = vpack.c.b16 %v1384, %v1383
    %v1397 = vpack.c.b16 %v1386, %v1385
    %v1398 = vpack.c.b16 %v1388, %v1387
    %v1399 = vpack.c.b16 %v1390, %v1389
    %v1400 = vpack.c.b16 %v1392, %v1391
    %1409 = vmatpush.bf16.msra.mxu0 %v1400
    %1410 = vmatpush.bf16.msra.mxu0 %v1399
    %1411 = vmatpush.bf16.msra.mxu0 %v1398
    %1412 = vmatpush.bf16.msra.mxu0 %v1397
    %1413 = vmatpush.bf16.msra.mxu0 %v1396
    %1414 = vmatpush.bf16.msra.mxu0 %v1395
    %1415 = vmatpush.bf16.msra.mxu0 %v1394
    %1416 = vmatpush.bf16.msra.mxu0 %v1393
    %1417 = vmatmul.bf16.gmra.mxu0 %v1340
    %v1418 = vpop.f32.mrf.mxu0
    %v1419 = vadd.f32 %v1359, %v1418
    %v1420 = vpop.f32.mrf.mxu0
    %v1421 = vadd.f32 %v1359, %v1420
    %1422 = vdwg.mxu0
    %v1423 = vadd.f32 %v155, %v1419
    %v1424 = vadd.f32 %v156, %v1421
    %1425 = vadd.xlane.f32.xlu0 %v1423
    %v1426 = vpop.xlane.xlu0 %1425
    %1427 = vadd.xlane.f32.xlu0 %v1424
    %v1428 = vpop.xlane.xlu0 %1427
    %v1429 = vmul.f32 %v1426, %v428
    %v1430 = vmul.f32 %v1428, %v428
    %v1431 = vsub.f32 %v1423, %v1429
    %v1432 = vsub.f32 %v1424, %v1430
    %v1433 = vmul.f32 %v1431, %v1431
    %v1434 = vmul.f32 %v1432, %v1432
    %1435 = vadd.xlane.f32.xlu0 %v1433
    %v1436 = vpop.xlane.xlu0 %1435
    %1437 = vadd.xlane.f32.xlu0 %v1434
    %v1438 = vpop.xlane.xlu0 %1437
    %v1439 = vmul.f32 %v1436, %v428
    %v1440 = vmul.f32 %v1438, %v428
    %v1441 = vadd.f32 %v1439, 1e-05
    %v1442 = vadd.f32 %v1440, 1e-05
    %v1443 = vrsqrt.pop %v1441
    %v1444 = vmul.f32 %v1443, %v1441
    %v1445 = vmul.f32 %v1444, %v1443
    %v1446 = vmul.f32 0.5, %v1445
    %v1447 = vsub.f32 1.5, %v1446
    %v1448 = vmul.f32 %v1443, %v1447
    %vm1449 = vweird.f32 %v1441
    %vm1450 = vweird.f32 %v1443
    %vm1451 = vmor %vm1449, %vm1450
    %v1452 = vsel %vm1451, %v1443, %v1448
    %v1453 = vrsqrt.pop %v1442
    %v1454 = vmul.f32 %v1453, %v1442
    %v1455 = vmul.f32 %v1454, %v1453
    %v1456 = vmul.f32 0.5, %v1455
    %v1457 = vsub.f32 1.5, %v1456
    %v1458 = vmul.f32 %v1453, %v1457
    %vm1459 = vweird.f32 %v1442
    %vm1460 = vweird.f32 %v1453
    %vm1461 = vmor %vm1459, %vm1460
    %v1462 = vsel %vm1461, %v1453, %v1458
    %v1463 = vmul.f32 %v1431, %v1452
    %v1464 = vmul.f32 %v1432, %v1462
    %v1465 = vld [vmem:[%s8] sm:$0x1]
    %v1467 = vperm.slane %v1465, 0
    %v1469 = vmul.f32 %v1463, %v1467
    %v1470 = vmul.f32 %v1464, %v1467
    %v1471 = vld [vmem:[%s9] sm:$0x1]
    %v1473 = vperm.slane %v1471, 0
    %v1475 = vadd.f32 %v1469, %v1473
    %v1476 = vadd.f32 %v1470, %v1473
    %v1477 = vpack.c.bf16 %v1476, %v1475
    %v1478 = vld [vmem:[#allocation10] sm:$0xff]
    %v1479 = vld [vmem:[#allocation10 + $0x8] sm:$0xff]
    %v1480 = vld [vmem:[#allocation10 + $0x10] sm:$0xff]
    %v1481 = vld [vmem:[#allocation10 + $0x18] sm:$0xff]
    %v1482 = vld [vmem:[#allocation10 + $0x20] sm:$0xff]
    %v1483 = vld [vmem:[#allocation10 + $0x28] sm:$0xff]
    %v1484 = vld [vmem:[#allocation10 + $0x30] sm:$0xff]
    %v1485 = vld [vmem:[#allocation10 + $0x38] sm:$0xff]
    %v1486 = vld [vmem:[#allocation10 + $0x40] sm:$0xff]
    %v1487 = vld [vmem:[#allocation10 + $0x48] sm:$0xff]
    %v1488 = vld [vmem:[#allocation10 + $0x50] sm:$0xff]
    %v1489 = vld [vmem:[#allocation10 + $0x58] sm:$0xff]
    %v1490 = vld [vmem:[#allocation10 + $0x60] sm:$0xff]
    %v1491 = vld [vmem:[#allocation10 + $0x68] sm:$0xff]
    %v1492 = vld [vmem:[#allocation10 + $0x70] sm:$0xff]
    %v1493 = vld [vmem:[#allocation10 + $0x78] sm:$0xff]
    %v1494 = vld [vmem:[#allocation10 + $0x80] sm:$0xff]
    %v1495 = vld [vmem:[#allocation10 + $0x88] sm:$0xff]
    %v1496 = vld [vmem:[#allocation10 + $0x90] sm:$0xff]
    %v1497 = vld [vmem:[#allocation10 + $0x98] sm:$0xff]
    %v1498 = vld [vmem:[#allocation10 + $0xa0] sm:$0xff]
    %v1499 = vld [vmem:[#allocation10 + $0xa8] sm:$0xff]
    %v1500 = vld [vmem:[#allocation10 + $0xb0] sm:$0xff]
    %v1501 = vld [vmem:[#allocation10 + $0xb8] sm:$0xff]
    %v1502 = vld [vmem:[#allocation10 + $0xc0] sm:$0xff]
    %v1503 = vld [vmem:[#allocation10 + $0xc8] sm:$0xff]
    %v1504 = vld [vmem:[#allocation10 + $0xd0] sm:$0xff]
    %v1505 = vld [vmem:[#allocation10 + $0xd8] sm:$0xff]
    %v1506 = vld [vmem:[#allocation10 + $0xe0] sm:$0xff]
    %v1507 = vld [vmem:[#allocation10 + $0xe8] sm:$0xff]
    %v1508 = vld [vmem:[#allocation10 + $0xf0] sm:$0xff]
    %v1509 = vld [vmem:[#allocation10 + $0xf8] sm:$0xff]
    %v1510 = vld [vmem:[%s11] sm:$0xf]
    %v1512 = vperm.slane %v1510, 0
    %v1513 = vperm.slane %v1510, 1
    %v1514 = vperm.slane %v1510, 2
    %v1515 = vperm.slane %v1510, 3
    %v1552 = vunpack.c.l.b16 %v1478
    %v1553 = vunpack.c.h.b16 %v1478
    %v1554 = vunpack.c.l.b16 %v1479
    %v1555 = vunpack.c.h.b16 %v1479
    %v1556 = vunpack.c.l.b16 %v1480
    %v1557 = vunpack.c.h.b16 %v1480
    %v1558 = vunpack.c.l.b16 %v1481
    %v1559 = vunpack.c.h.b16 %v1481
    %v1560 = vunpack.c.l.b16 %v1482
    %v1561 = vunpack.c.h.b16 %v1482
    %v1562 = vunpack.c.l.b16 %v1483
    %v1563 = vunpack.c.h.b16 %v1483
    %v1564 = vunpack.c.l.b16 %v1484
    %v1565 = vunpack.c.h.b16 %v1484
    %v1566 = vunpack.c.l.b16 %v1485
    %v1567 = vunpack.c.h.b16 %v1485
    %v1568 = vunpack.c.l.b16 %v1486
    %v1569 = vunpack.c.h.b16 %v1486
    %v1570 = vunpack.c.l.b16 %v1487
    %v1571 = vunpack.c.h.b16 %v1487
    %v1572 = vunpack.c.l.b16 %v1488
    %v1573 = vunpack.c.h.b16 %v1488
    %v1574 = vunpack.c.l.b16 %v1489
    %v1575 = vunpack.c.h.b16 %v1489
    %v1576 = vunpack.c.l.b16 %v1490
    %v1577 = vunpack.c.h.b16 %v1490
    %v1578 = vunpack.c.l.b16 %v1491
    %v1579 = vunpack.c.h.b16 %v1491
    %v1580 = vunpack.c.l.b16 %v1492
    %v1581 = vunpack.c.h.b16 %v1492
    %v1582 = vunpack.c.l.b16 %v1493
    %v1583 = vunpack.c.h.b16 %v1493
    %v1584 = vunpack.c.l.b16 %v1494
    %v1585 = vunpack.c.h.b16 %v1494
    %v1586 = vunpack.c.l.b16 %v1495
    %v1587 = vunpack.c.h.b16 %v1495
    %v1588 = vunpack.c.l.b16 %v1496
    %v1589 = vunpack.c.h.b16 %v1496
    %v1590 = vunpack.c.l.b16 %v1497
    %v1591 = vunpack.c.h.b16 %v1497
    %v1592 = vunpack.c.l.b16 %v1498
    %v1593 = vunpack.c.h.b16 %v1498
    %v1594 = vunpack.c.l.b16 %v1499
    %v1595 = vunpack.c.h.b16 %v1499
    %v1596 = vunpack.c.l.b16 %v1500
    %v1597 = vunpack.c.h.b16 %v1500
    %v1598 = vunpack.c.l.b16 %v1501
    %v1599 = vunpack.c.h.b16 %v1501
    %v1600 = vunpack.c.l.b16 %v1502
    %v1601 = vunpack.c.h.b16 %v1502
    %v1602 = vunpack.c.l.b16 %v1503
    %v1603 = vunpack.c.h.b16 %v1503
    %v1604 = vunpack.c.l.b16 %v1504
    %v1605 = vunpack.c.h.b16 %v1504
    %v1606 = vunpack.c.l.b16 %v1505
    %v1607 = vunpack.c.h.b16 %v1505
    %v1608 = vunpack.c.l.b16 %v1506
    %v1609 = vunpack.c.h.b16 %v1506
    %v1610 = vunpack.c.l.b16 %v1507
    %v1611 = vunpack.c.h.b16 %v1507
    %v1612 = vunpack.c.l.b16 %v1508
    %v1613 = vunpack.c.h.b16 %v1508
    %v1614 = vunpack.c.l.b16 %v1509
    %v1615 = vunpack.c.h.b16 %v1509
    %v1616 = vpack.c.b16 %v1556, %v1552
    %v1617 = vpack.c.b16 %v1557, %v1553
    %v1618 = vpack.c.b16 %v1558, %v1554
    %v1619 = vpack.c.b16 %v1559, %v1555
    %v1620 = vpack.c.b16 %v1564, %v1560
    %v1621 = vpack.c.b16 %v1565, %v1561
    %v1622 = vpack.c.b16 %v1566, %v1562
    %v1623 = vpack.c.b16 %v1567, %v1563
    %v1624 = vpack.c.b16 %v1572, %v1568
    %v1625 = vpack.c.b16 %v1573, %v1569
    %v1626 = vpack.c.b16 %v1574, %v1570
    %v1627 = vpack.c.b16 %v1575, %v1571
    %v1628 = vpack.c.b16 %v1580, %v1576
    %v1629 = vpack.c.b16 %v1581, %v1577
    %v1630 = vpack.c.b16 %v1582, %v1578
    %v1631 = vpack.c.b16 %v1583, %v1579
    %v1632 = vpack.c.b16 %v1588, %v1584
    %v1633 = vpack.c.b16 %v1589, %v1585
    %v1634 = vpack.c.b16 %v1590, %v1586
    %v1635 = vpack.c.b16 %v1591, %v1587
    %v1636 = vpack.c.b16 %v1596, %v1592
    %v1637 = vpack.c.b16 %v1597, %v1593
    %v1638 = vpack.c.b16 %v1598, %v1594
    %v1639 = vpack.c.b16 %v1599, %v1595
    %v1640 = vpack.c.b16 %v1604, %v1600
    %v1641 = vpack.c.b16 %v1605, %v1601
    %v1642 = vpack.c.b16 %v1606, %v1602
    %v1643 = vpack.c.b16 %v1607, %v1603
    %v1644 = vpack.c.b16 %v1612, %v1608
    %v1645 = vpack.c.b16 %v1613, %v1609
    %v1646 = vpack.c.b16 %v1614, %v1610
    %v1647 = vpack.c.b16 %v1615, %v1611
    %1680 = vmatpush.bf16.msra.mxu0 %v1644
    %1681 = vmatpush.bf16.msra.mxu0 %v1640
    %1682 = vmatpush.bf16.msra.mxu0 %v1636
    %1683 = vmatpush.bf16.msra.mxu0 %v1632
    %1684 = vmatpush.bf16.msra.mxu0 %v1628
    %1685 = vmatpush.bf16.msra.mxu0 %v1624
    %1686 = vmatpush.bf16.msra.mxu0 %v1620
    %1687 = vmatpush.bf16.msra.mxu0 %v1616
    %1688 = vmatmul.bf16.gmra.mxu0 %v1477
    %v1689 = vpop.f32.mrf.mxu0
    %v1690 = vadd.f32 %v1512, %v1689
    %v1691 = vpop.f32.mrf.mxu0
    %v1692 = vadd.f32 %v1512, %v1691
    %1693 = vdwg.mxu0
    %1694 = vmatpush.bf16.msra.mxu0 %v1645
    %1695 = vmatpush.bf16.msra.mxu0 %v1641
    %1696 = vmatpush.bf16.msra.mxu0 %v1637
    %1697 = vmatpush.bf16.msra.mxu0 %v1633
    %1698 = vmatpush.bf16.msra.mxu0 %v1629
    %1699 = vmatpush.bf16.msra.mxu0 %v1625
    %1700 = vmatpush.bf16.msra.mxu0 %v1621
    %1701 = vmatpush.bf16.msra.mxu0 %v1617
    %1702 = vmatmul.bf16.gmra.mxu0 %v1477
    %v1703 = vpop.f32.mrf.mxu0
    %v1704 = vadd.f32 %v1513, %v1703
    %v1705 = vpop.f32.mrf.mxu0
    %v1706 = vadd.f32 %v1513, %v1705
    %1707 = vdwg.mxu0
    %1708 = vmatpush.bf16.msra.mxu0 %v1646
    %1709 = vmatpush.bf16.msra.mxu0 %v1642
    %1710 = vmatpush.bf16.msra.mxu0 %v1638
    %1711 = vmatpush.bf16.msra.mxu0 %v1634
    %1712 = vmatpush.bf16.msra.mxu0 %v1630
    %1713 = vmatpush.bf16.msra.mxu0 %v1626
    %1714 = vmatpush.bf16.msra.mxu0 %v1622
    %1715 = vmatpush.bf16.msra.mxu0 %v1618
    %1716 = vmatmul.bf16.gmra.mxu0 %v1477
    %v1717 = vpop.f32.mrf.mxu0
    %v1718 = vadd.f32 %v1514, %v1717
    %v1719 = vpop.f32.mrf.mxu0
    %v1720 = vadd.f32 %v1514, %v1719
    %1721 = vdwg.mxu0
    %1722 = vmatpush.bf16.msra.mxu0 %v1647
    %1723 = vmatpush.bf16.msra.mxu0 %v1643
    %1724 = vmatpush.bf16.msra.mxu0 %v1639
    %1725 = vmatpush.bf16.msra.mxu0 %v1635
    %1726 = vmatpush.bf16.msra.mxu0 %v1631
    %1727 = vmatpush.bf16.msra.mxu0 %v1627
    %1728 = vmatpush.bf16.msra.mxu0 %v1623
    %1729 = vmatpush.bf16.msra.mxu0 %v1619
    %1730 = vmatmul.bf16.gmra.mxu0 %v1477
    %v1731 = vpop.f32.mrf.mxu0
    %v1732 = vadd.f32 %v1515, %v1731
    %v1733 = vpop.f32.mrf.mxu0
    %v1734 = vadd.f32 %v1515, %v1733
    %1735 = vdwg.mxu0
    %v1736 = vmul.f32 %v1690, 0.5
    %v1737 = vmul.f32 %v1704, 0.5
    %v1738 = vmul.f32 %v1718, 0.5
    %v1739 = vmul.f32 %v1732, 0.5
    %v1740 = vmul.f32 %v1692, 0.5
    %v1741 = vmul.f32 %v1706, 0.5
    %v1742 = vmul.f32 %v1720, 0.5
    %v1743 = vmul.f32 %v1734, 0.5
    %v1744 = vmul.f32 %v1690, 0.044715
    %v1745 = vmul.f32 %v1704, 0.044715
    %v1746 = vmul.f32 %v1718, 0.044715
    %v1747 = vmul.f32 %v1732, 0.044715
    %v1748 = vmul.f32 %v1692, 0.044715
    %v1749 = vmul.f32 %v1706, 0.044715
    %v1750 = vmul.f32 %v1720, 0.044715
    %v1751 = vmul.f32 %v1734, 0.044715
    %v1752 = vmul.f32 %v1744, %v1690
    %v1753 = vmul.f32 %v1745, %v1704
    %v1754 = vmul.f32 %v1746, %v1718
    %v1755 = vmul.f32 %v1747, %v1732
    %v1756 = vmul.f32 %v1748, %v1692
    %v1757 = vmul.f32 %v1749, %v1706
    %v1758 = vmul.f32 %v1750, %v1720
    %v1759 = vmul.f32 %v1751, %v1734
    %v1760 = vmul.f32 %v1752, %v1690
    %v1761 = vmul.f32 %v1753, %v1704
    %v1762 = vmul.f32 %v1754, %v1718
    %v1763 = vmul.f32 %v1755, %v1732
    %v1764 = vmul.f32 %v1756, %v1692
    %v1765 = vmul.f32 %v1757, %v1706
    %v1766 = vmul.f32 %v1758, %v1720
    %v1767 = vmul.f32 %v1759, %v1734
    %v1768 = vadd.f32 %v1690, %v1760
    %v1769 = vadd.f32 %v1704, %v1761
    %v1770 = vadd.f32 %v1718, %v1762
    %v1771 = vadd.f32 %v1732, %v1763
    %v1772 = vadd.f32 %v1692, %v1764
    %v1773 = vadd.f32 %v1706, %v1765
    %v1774 = vadd.f32 %v1720, %v1766
    %v1775 = vadd.f32 %v1734, %v1767
    %v1776 = vmul.f32 %v1768, 0.7978846
    %v1777 = vmul.f32 %v1769, 0.7978846
    %v1778 = vmul.f32 %v1770, 0.7978846
    %v1779 = vmul.f32 %v1771, 0.7978846
    %v1780 = vmul.f32 %v1772, 0.7978846
    %v1781 = vmul.f32 %v1773, 0.7978846
    %v1782 = vmul.f32 %v1774, 0.7978846
    %v1783 = vmul.f32 %v1775, 0.7978846
    %v1784 = vtanh.pop %v1776
    %v1785 = vtanh.pop %v1777
    %v1786 = vtanh.pop %v1778
    %v1787 = vtanh.pop %v1779
    %v1788 = vtanh.pop %v1780
    %v1789 = vtanh.pop %v1781
    %v1790 = vtanh.pop %v1782
    %v1791 = vtanh.pop %v1783
    %v1792 = vadd.f32 %v1784, 1.0
    %v1793 = vadd.f32 %v1785, 1.0
    %v1794 = vadd.f32 %v1786, 1.0
    %v1795 = vadd.f32 %v1787, 1.0
    %v1796 = vadd.f32 %v1788, 1.0
    %v1797 = vadd.f32 %v1789, 1.0
    %v1798 = vadd.f32 %v1790, 1.0
    %v1799 = vadd.f32 %v1791, 1.0
    %v1800 = vmul.f32 %v1736, %v1792
    %v1801 = vmul.f32 %v1737, %v1793
    %v1802 = vmul.f32 %v1738, %v1794
    %v1803 = vmul.f32 %v1739, %v1795
    %v1804 = vmul.f32 %v1740, %v1796
    %v1805 = vmul.f32 %v1741, %v1797
    %v1806 = vmul.f32 %v1742, %v1798
    %v1807 = vmul.f32 %v1743, %v1799
    %v1808 = vpack.c.bf16 %v1804, %v1800
    %v1809 = vpack.c.bf16 %v1805, %v1801
    %v1810 = vpack.c.bf16 %v1806, %v1802
    %v1811 = vpack.c.bf16 %v1807, %v1803
    %v1812 = vld [vmem:[#allocation11] sm:$0xf]
    %v1813 = vld [vmem:[#allocation11 + $0x4] sm:$0xf]
    %v1814 = vld [vmem:[#allocation11 + $0x8] sm:$0xf]
    %v1815 = vld [vmem:[#allocation11 + $0xc] sm:$0xf]
    %v1816 = vld [vmem:[#allocation11 + $0x10] sm:$0xf]
    %v1817 = vld [vmem:[#allocation11 + $0x14] sm:$0xf]
    %v1818 = vld [vmem:[#allocation11 + $0x18] sm:$0xf]
    %v1819 = vld [vmem:[#allocation11 + $0x1c] sm:$0xf]
    %v1820 = vld [vmem:[#allocation11 + $0x20] sm:$0xf]
    %v1821 = vld [vmem:[#allocation11 + $0x24] sm:$0xf]
    %v1822 = vld [vmem:[#allocation11 + $0x28] sm:$0xf]
    %v1823 = vld [vmem:[#allocation11 + $0x2c] sm:$0xf]
    %v1824 = vld [vmem:[#allocation11 + $0x30] sm:$0xf]
    %v1825 = vld [vmem:[#allocation11 + $0x34] sm:$0xf]
    %v1826 = vld [vmem:[#allocation11 + $0x38] sm:$0xf]
    %v1827 = vld [vmem:[#allocation11 + $0x3c] sm:$0xf]
    %v1828 = vld [vmem:[#allocation11 + $0x40] sm:$0xf]
    %v1829 = vld [vmem:[#allocation11 + $0x44] sm:$0xf]
    %v1830 = vld [vmem:[#allocation11 + $0x48] sm:$0xf]
    %v1831 = vld [vmem:[#allocation11 + $0x4c] sm:$0xf]
    %v1832 = vld [vmem:[#allocation11 + $0x50] sm:$0xf]
    %v1833 = vld [vmem:[#allocation11 + $0x54] sm:$0xf]
    %v1834 = vld [vmem:[#allocation11 + $0x58] sm:$0xf]
    %v1835 = vld [vmem:[#allocation11 + $0x5c] sm:$0xf]
    %v1836 = vld [vmem:[#allocation11 + $0x60] sm:$0xf]
    %v1837 = vld [vmem:[#allocation11 + $0x64] sm:$0xf]
    %v1838 = vld [vmem:[#allocation11 + $0x68] sm:$0xf]
    %v1839 = vld [vmem:[#allocation11 + $0x6c] sm:$0xf]
    %v1840 = vld [vmem:[#allocation11 + $0x70] sm:$0xf]
    %v1841 = vld [vmem:[#allocation11 + $0x74] sm:$0xf]
    %v1842 = vld [vmem:[#allocation11 + $0x78] sm:$0xf]
    %v1843 = vld [vmem:[#allocation11 + $0x7c] sm:$0xf]
    %v1844 = vld [vmem:[#allocation11 + $0x80] sm:$0xf]
    %v1845 = vld [vmem:[#allocation11 + $0x84] sm:$0xf]
    %v1846 = vld [vmem:[#allocation11 + $0x88] sm:$0xf]
    %v1847 = vld [vmem:[#allocation11 + $0x8c] sm:$0xf]
    %v1848 = vld [vmem:[#allocation11 + $0x90] sm:$0xf]
    %v1849 = vld [vmem:[#allocation11 + $0x94] sm:$0xf]
    %v1850 = vld [vmem:[#allocation11 + $0x98] sm:$0xf]
    %v1851 = vld [vmem:[#allocation11 + $0x9c] sm:$0xf]
    %v1852 = vld [vmem:[#allocation11 + $0xa0] sm:$0xf]
    %v1853 = vld [vmem:[#allocation11 + $0xa4] sm:$0xf]
    %v1854 = vld [vmem:[#allocation11 + $0xa8] sm:$0xf]
    %v1855 = vld [vmem:[#allocation11 + $0xac] sm:$0xf]
    %v1856 = vld [vmem:[#allocation11 + $0xb0] sm:$0xf]
    %v1857 = vld [vmem:[#allocation11 + $0xb4] sm:$0xf]
    %v1858 = vld [vmem:[#allocation11 + $0xb8] sm:$0xf]
    %v1859 = vld [vmem:[#allocation11 + $0xbc] sm:$0xf]
    %v1860 = vld [vmem:[#allocation11 + $0xc0] sm:$0xf]
    %v1861 = vld [vmem:[#allocation11 + $0xc4] sm:$0xf]
    %v1862 = vld [vmem:[#allocation11 + $0xc8] sm:$0xf]
    %v1863 = vld [vmem:[#allocation11 + $0xcc] sm:$0xf]
    %v1864 = vld [vmem:[#allocation11 + $0xd0] sm:$0xf]
    %v1865 = vld [vmem:[#allocation11 + $0xd4] sm:$0xf]
    %v1866 = vld [vmem:[#allocation11 + $0xd8] sm:$0xf]
    %v1867 = vld [vmem:[#allocation11 + $0xdc] sm:$0xf]
    %v1868 = vld [vmem:[#allocation11 + $0xe0] sm:$0xf]
    %v1869 = vld [vmem:[#allocation11 + $0xe4] sm:$0xf]
    %v1870 = vld [vmem:[#allocation11 + $0xe8] sm:$0xf]
    %v1871 = vld [vmem:[#allocation11 + $0xec] sm:$0xf]
    %v1872 = vld [vmem:[#allocation11 + $0xf0] sm:$0xf]
    %v1873 = vld [vmem:[#allocation11 + $0xf4] sm:$0xf]
    %v1874 = vld [vmem:[#allocation11 + $0xf8] sm:$0xf]
    %v1875 = vld [vmem:[#allocation11 + $0xfc] sm:$0xf]
    %v1876 = vld [vmem:[#allocation13] sm:$0x1]
    %v1878 = vperm.slane %v1876, 0
    %v1944 = vunpack.c.l.b16 %v1812
    %v1945 = vunpack.c.l.b16 %v1813
    %v1946 = vunpack.c.l.b16 %v1814
    %v1947 = vunpack.c.l.b16 %v1815
    %v1948 = vunpack.c.l.b16 %v1816
    %v1949 = vunpack.c.l.b16 %v1817
    %v1950 = vunpack.c.l.b16 %v1818
    %v1951 = vunpack.c.l.b16 %v1819
    %v1952 = vunpack.c.l.b16 %v1820
    %v1953 = vunpack.c.l.b16 %v1821
    %v1954 = vunpack.c.l.b16 %v1822
    %v1955 = vunpack.c.l.b16 %v1823
    %v1956 = vunpack.c.l.b16 %v1824
    %v1957 = vunpack.c.l.b16 %v1825
    %v1958 = vunpack.c.l.b16 %v1826
    %v1959 = vunpack.c.l.b16 %v1827
    %v1960 = vunpack.c.l.b16 %v1828
    %v1961 = vunpack.c.l.b16 %v1829
    %v1962 = vunpack.c.l.b16 %v1830
    %v1963 = vunpack.c.l.b16 %v1831
    %v1964 = vunpack.c.l.b16 %v1832
    %v1965 = vunpack.c.l.b16 %v1833
    %v1966 = vunpack.c.l.b16 %v1834
    %v1967 = vunpack.c.l.b16 %v1835
    %v1968 = vunpack.c.l.b16 %v1836
    %v1969 = vunpack.c.l.b16 %v1837
    %v1970 = vunpack.c.l.b16 %v1838
    %v1971 = vunpack.c.l.b16 %v1839
    %v1972 = vunpack.c.l.b16 %v1840
    %v1973 = vunpack.c.l.b16 %v1841
    %v1974 = vunpack.c.l.b16 %v1842
    %v1975 = vunpack.c.l.b16 %v1843
    %v1976 = vunpack.c.l.b16 %v1844
    %v1977 = vunpack.c.l.b16 %v1845
    %v1978 = vunpack.c.l.b16 %v1846
    %v1979 = vunpack.c.l.b16 %v1847
    %v1980 = vunpack.c.l.b16 %v1848
    %v1981 = vunpack.c.l.b16 %v1849
    %v1982 = vunpack.c.l.b16 %v1850
    %v1983 = vunpack.c.l.b16 %v1851
    %v1984 = vunpack.c.l.b16 %v1852
    %v1985 = vunpack.c.l.b16 %v1853
    %v1986 = vunpack.c.l.b16 %v1854
    %v1987 = vunpack.c.l.b16 %v1855
    %v1988 = vunpack.c.l.b16 %v1856
    %v1989 = vunpack.c.l.b16 %v1857
    %v1990 = vunpack.c.l.b16 %v1858
    %v1991 = vunpack.c.l.b16 %v1859
    %v1992 = vunpack.c.l.b16 %v1860
    %v1993 = vunpack.c.l.b16 %v1861
    %v1994 = vunpack.c.l.b16 %v1862
    %v1995 = vunpack.c.l.b16 %v1863
    %v1996 = vunpack.c.l.b16 %v1864
    %v1997 = vunpack.c.l.b16 %v1865
    %v1998 = vunpack.c.l.b16 %v1866
    %v1999 = vunpack.c.l.b16 %v1867
    %v2000 = vunpack.c.l.b16 %v1868
    %v2001 = vunpack.c.l.b16 %v1869
    %v2002 = vunpack.c.l.b16 %v1870
    %v2003 = vunpack.c.l.b16 %v1871
    %v2004 = vunpack.c.l.b16 %v1872
    %v2005 = vunpack.c.l.b16 %v1873
    %v2006 = vunpack.c.l.b16 %v1874
    %v2007 = vunpack.c.l.b16 %v1875
    %v2008 = vpack.c.b16 %v1945, %v1944
    %v2009 = vpack.c.b16 %v1947, %v1946
    %v2010 = vpack.c.b16 %v1949, %v1948
    %v2011 = vpack.c.b16 %v1951, %v1950
    %v2012 = vpack.c.b16 %v1953, %v1952
    %v2013 = vpack.c.b16 %v1955, %v1954
    %v2014 = vpack.c.b16 %v1957, %v1956
    %v2015 = vpack.c.b16 %v1959, %v1958
    %v2016 = vpack.c.b16 %v1961, %v1960
    %v2017 = vpack.c.b16 %v1963, %v1962
    %v2018 = vpack.c.b16 %v1965, %v1964
    %v2019 = vpack.c.b16 %v1967, %v1966
    %v2020 = vpack.c.b16 %v1969, %v1968
    %v2021 = vpack.c.b16 %v1971, %v1970
    %v2022 = vpack.c.b16 %v1973, %v1972
    %v2023 = vpack.c.b16 %v1975, %v1974
    %v2024 = vpack.c.b16 %v1977, %v1976
    %v2025 = vpack.c.b16 %v1979, %v1978
    %v2026 = vpack.c.b16 %v1981, %v1980
    %v2027 = vpack.c.b16 %v1983, %v1982
    %v2028 = vpack.c.b16 %v1985, %v1984
    %v2029 = vpack.c.b16 %v1987, %v1986
    %v2030 = vpack.c.b16 %v1989, %v1988
    %v2031 = vpack.c.b16 %v1991, %v1990
    %v2032 = vpack.c.b16 %v1993, %v1992
    %v2033 = vpack.c.b16 %v1995, %v1994
    %v2034 = vpack.c.b16 %v1997, %v1996
    %v2035 = vpack.c.b16 %v1999, %v1998
    %v2036 = vpack.c.b16 %v2001, %v2000
    %v2037 = vpack.c.b16 %v2003, %v2002
    %v2038 = vpack.c.b16 %v2005, %v2004
    %v2039 = vpack.c.b16 %v2007, %v2006
    %2072 = vmatpush.bf16.msra.mxu0 %v2015
    %2073 = vmatpush.bf16.msra.mxu0 %v2014
    %2074 = vmatpush.bf16.msra.mxu0 %v2013
    %2075 = vmatpush.bf16.msra.mxu0 %v2012
    %2076 = vmatpush.bf16.msra.mxu0 %v2011
    %2077 = vmatpush.bf16.msra.mxu0 %v2010
    %2078 = vmatpush.bf16.msra.mxu0 %v2009
    %2079 = vmatpush.bf16.msra.mxu0 %v2008
    %2080 = vmatmul.bf16.gmra.mxu0 %v1808
    %v2081 = vpop.f32.mrf.mxu0
    %v2082 = vadd.f32 %v1878, %v2081
    %v2083 = vpop.f32.mrf.mxu0
    %v2084 = vadd.f32 %v1878, %v2083
    %2085 = vdwg.mxu0
    %2086 = vmatpush.bf16.msra.mxu0 %v2023
    %2087 = vmatpush.bf16.msra.mxu0 %v2022
    %2088 = vmatpush.bf16.msra.mxu0 %v2021
    %2089 = vmatpush.bf16.msra.mxu0 %v2020
    %2090 = vmatpush.bf16.msra.mxu0 %v2019
    %2091 = vmatpush.bf16.msra.mxu0 %v2018
    %2092 = vmatpush.bf16.msra.mxu0 %v2017
    %2093 = vmatpush.bf16.msra.mxu0 %v2016
    %2094 = vmatmul.bf16.gmra.mxu0 %v1809
    %v2095 = vpop.f32.mrf.mxu0
    %v2096 = vadd.f32 %v2082, %v2095
    %v2097 = vpop.f32.mrf.mxu0
    %v2098 = vadd.f32 %v2084, %v2097
    %2099 = vdwg.mxu0
    %2100 = vmatpush.bf16.msra.mxu0 %v2031
    %2101 = vmatpush.bf16.msra.mxu0 %v2030
    %2102 = vmatpush.bf16.msra.mxu0 %v2029
    %2103 = vmatpush.bf16.msra.mxu0 %v2028
    %2104 = vmatpush.bf16.msra.mxu0 %v2027
    %2105 = vmatpush.bf16.msra.mxu0 %v2026
    %2106 = vmatpush.bf16.msra.mxu0 %v2025
    %2107 = vmatpush.bf16.msra.mxu0 %v2024
    %2108 = vmatmul.bf16.gmra.mxu0 %v1810
    %v2109 = vpop.f32.mrf.mxu0
    %v2110 = vadd.f32 %v2096, %v2109
    %v2111 = vpop.f32.mrf.mxu0
    %v2112 = vadd.f32 %v2098, %v2111
    %2113 = vdwg.mxu0
    %2114 = vmatpush.bf16.msra.mxu0 %v2039
    %2115 = vmatpush.bf16.msra.mxu0 %v2038
    %2116 = vmatpush.bf16.msra.mxu0 %v2037
    %2117 = vmatpush.bf16.msra.mxu0 %v2036
    %2118 = vmatpush.bf16.msra.mxu0 %v2035
    %2119 = vmatpush.bf16.msra.mxu0 %v2034
    %2120 = vmatpush.bf16.msra.mxu0 %v2033
    %2121 = vmatpush.bf16.msra.mxu0 %v2032
    %2122 = vmatmul.bf16.gmra.mxu0 %v1811
    %v2123 = vpop.f32.mrf.mxu0
    %v2124 = vadd.f32 %v2110, %v2123
    %v2125 = vpop.f32.mrf.mxu0
    %v2126 = vadd.f32 %v2112, %v2125
    %2127 = vdwg.mxu0
    %v2128 = vadd.f32 %v1423, %v2124
    %v2129 = vadd.f32 %v1424, %v2126
    %2130 = vadd.xlane.f32.xlu0 %v2128
    %v2131 = vpop.xlane.xlu0 %2130
    %2132 = vadd.xlane.f32.xlu0 %v2129
    %v2133 = vpop.xlane.xlu0 %2132
    %v2134 = vmul.f32 %v2131, %v428
    %v2135 = vmul.f32 %v2133, %v428
    %v2136 = vsub.f32 %v2128, %v2134
    %v2137 = vsub.f32 %v2129, %v2135
    %v2138 = vmul.f32 %v2136, %v2136
    %v2139 = vmul.f32 %v2137, %v2137
    %2140 = vadd.xlane.f32.xlu0 %v2138
    %v2141 = vpop.xlane.xlu0 %2140
    %2142 = vadd.xlane.f32.xlu0 %v2139
    %v2143 = vpop.xlane.xlu0 %2142
    %v2144 = vmul.f32 %v2141, %v428
    %v2145 = vmul.f32 %v2143, %v428
    %v2146 = vadd.f32 %v2144, 1e-05
    %v2147 = vadd.f32 %v2145, 1e-05
    %v2148 = vrsqrt.pop %v2146
    %v2149 = vmul.f32 %v2148, %v2146
    %v2150 = vmul.f32 %v2149, %v2148
    %v2151 = vmul.f32 0.5, %v2150
    %v2152 = vsub.f32 1.5, %v2151
    %v2153 = vmul.f32 %v2148, %v2152
    %vm2154 = vweird.f32 %v2146
    %vm2155 = vweird.f32 %v2148
    %vm2156 = vmor %vm2154, %vm2155
    %v2157 = vsel %vm2156, %v2148, %v2153
    %v2158 = vrsqrt.pop %v2147
    %v2159 = vmul.f32 %v2158, %v2147
    %v2160 = vmul.f32 %v2159, %v2158
    %v2161 = vmul.f32 0.5, %v2160
    %v2162 = vsub.f32 1.5, %v2161
    %v2163 = vmul.f32 %v2158, %v2162
    %vm2164 = vweird.f32 %v2147
    %vm2165 = vweird.f32 %v2158
    %vm2166 = vmor %vm2164, %vm2165
    %v2167 = vsel %vm2166, %v2158, %v2163
    %v2168 = vmul.f32 %v2136, %v2157
    %v2169 = vmul.f32 %v2137, %v2167
    %v2170 = vadd.f32 %v400, 1.0
    %v2171 = vadd.f32 %v402, 1.0
    %v2172 = vmul.f32 %v2168, %v2170
    %v2173 = vmul.f32 %v2169, %v2171
    %v2174 = vadd.f32 %v2172, %v414
    %v2175 = vadd.f32 %v2173, %v416
    %v2176 = vpack.c.bf16 %v2175, %v2174
    %s2177 = scalar_lea.vmem [#allocation7], 192
    %v2178 = vld [vmem:[%s2177] sm:$0xff]
    %v2179 = vld [vmem:[%s2177 + $0x8] sm:$0xf]
    %v2180 = vld [vmem:[%s2177 + $0xc] sm:$0xff]
    %v2181 = vld [vmem:[%s2177 + $0x14] sm:$0xf]
    %v2182 = vld [vmem:[%s2177 + $0x18] sm:$0xff]
    %v2183 = vld [vmem:[%s2177 + $0x20] sm:$0xf]
    %v2184 = vld [vmem:[%s2177 + $0x24] sm:$0xff]
    %v2185 = vld [vmem:[%s2177 + $0x2c] sm:$0xf]
    %v2186 = vld [vmem:[%s2177 + $0x30] sm:$0xff]
    %v2187 = vld [vmem:[%s2177 + $0x38] sm:$0xf]
    %v2188 = vld [vmem:[%s2177 + $0x3c] sm:$0xff]
    %v2189 = vld [vmem:[%s2177 + $0x44] sm:$0xf]
    %v2190 = vld [vmem:[%s2177 + $0x48] sm:$0xff]
    %v2191 = vld [vmem:[%s2177 + $0x50] sm:$0xf]
    %v2192 = vld [vmem:[%s2177 + $0x54] sm:$0xff]
    %v2193 = vld [vmem:[%s2177 + $0x5c] sm:$0xf]
    %v2194 = vld [vmem:[%s2177 + $0x60] sm:$0xff]
    %v2195 = vld [vmem:[%s2177 + $0x68] sm:$0xf]
    %v2196 = vld [vmem:[%s2177 + $0x6c] sm:$0xff]
    %v2197 = vld [vmem:[%s2177 + $0x74] sm:$0xf]
    %v2198 = vld [vmem:[%s2177 + $0x78] sm:$0xff]
    %v2199 = vld [vmem:[%s2177 + $0x80] sm:$0xf]
    %v2200 = vld [vmem:[%s2177 + $0x84] sm:$0xff]
    %v2201 = vld [vmem:[%s2177 + $0x8c] sm:$0xf]
    %v2202 = vld [vmem:[%s2177 + $0x90] sm:$0xff]
    %v2203 = vld [vmem:[%s2177 + $0x98] sm:$0xf]
    %v2204 = vld [vmem:[%s2177 + $0x9c] sm:$0xff]
    %v2205 = vld [vmem:[%s2177 + $0xa4] sm:$0xf]
    %v2206 = vld [vmem:[%s2177 + $0xa8] sm:$0xff]
    %v2207 = vld [vmem:[%s2177 + $0xb0] sm:$0xf]
    %v2208 = vld [vmem:[%s2177 + $0xb4] sm:$0xff]
    %v2209 = vld [vmem:[%s2177 + $0xbc] sm:$0xf]
    %s2210 = scalar_lea.vmem %s5, 3
    %v2211 = vld [vmem:[%s2210] sm:$0x7]
    %v2213 = vperm.slane %v2211, 0
    %v2214 = vperm.slane %v2211, 1
    %v2215 = vperm.slane %v2211, 2
    %v2251 = vunpack.c.l.b16 %v2178
    %v2252 = vunpack.c.h.b16 %v2178
    %v2253 = vunpack.c.l.b16 %v2179
    %v2254 = vunpack.c.l.b16 %v2180
    %v2255 = vunpack.c.h.b16 %v2180
    %v2256 = vunpack.c.l.b16 %v2181
    %v2257 = vunpack.c.l.b16 %v2182
    %v2258 = vunpack.c.h.b16 %v2182
    %v2259 = vunpack.c.l.b16 %v2183
    %v2260 = vunpack.c.l.b16 %v2184
    %v2261 = vunpack.c.h.b16 %v2184
    %v2262 = vunpack.c.l.b16 %v2185
    %v2263 = vunpack.c.l.b16 %v2186
    %v2264 = vunpack.c.h.b16 %v2186
    %v2265 = vunpack.c.l.b16 %v2187
    %v2266 = vunpack.c.l.b16 %v2188
    %v2267 = vunpack.c.h.b16 %v2188
    %v2268 = vunpack.c.l.b16 %v2189
    %v2269 = vunpack.c.l.b16 %v2190
    %v2270 = vunpack.c.h.b16 %v2190
    %v2271 = vunpack.c.l.b16 %v2191
    %v2272 = vunpack.c.l.b16 %v2192
    %v2273 = vunpack.c.h.b16 %v2192
    %v2274 = vunpack.c.l.b16 %v2193
    %v2275 = vunpack.c.l.b16 %v2194
    %v2276 = vunpack.c.h.b16 %v2194
    %v2277 = vunpack.c.l.b16 %v2195
    %v2278 = vunpack.c.l.b16 %v2196
    %v2279 = vunpack.c.h.b16 %v2196
    %v2280 = vunpack.c.l.b16 %v2197
    %v2281 = vunpack.c.l.b16 %v2198
    %v2282 = vunpack.c.h.b16 %v2198
    %v2283 = vunpack.c.l.b16 %v2199
    %v2284 = vunpack.c.l.b16 %v2200
    %v2285 = vunpack.c.h.b16 %v2200
    %v2286 = vunpack.c.l.b16 %v2201
    %v2287 = vunpack.c.l.b16 %v2202
    %v2288 = vunpack.c.h.b16 %v2202
    %v2289 = vunpack.c.l.b16 %v2203
    %v2290 = vunpack.c.l.b16 %v2204
    %v2291 = vunpack.c.h.b16 %v2204
    %v2292 = vunpack.c.l.b16 %v2205
    %v2293 = vunpack.c.l.b16 %v2206
    %v2294 = vunpack.c.h.b16 %v2206
    %v2295 = vunpack.c.l.b16 %v2207
    %v2296 = vunpack.c.l.b16 %v2208
    %v2297 = vunpack.c.h.b16 %v2208
    %v2298 = vunpack.c.l.b16 %v2209
    %v2299 = vpack.c.b16 %v2254, %v2251
    %v2300 = vpack.c.b16 %v2255, %v2252
    %v2301 = vpack.c.b16 %v2256, %v2253
    %v2302 = vpack.c.b16 %v2260, %v2257
    %v2303 = vpack.c.b16 %v2261, %v2258
    %v2304 = vpack.c.b16 %v2262, %v2259
    %v2305 = vpack.c.b16 %v2266, %v2263
    %v2306 = vpack.c.b16 %v2267, %v2264
    %v2307 = vpack.c.b16 %v2268, %v2265
    %v2308 = vpack.c.b16 %v2272, %v2269
    %v2309 = vpack.c.b16 %v2273, %v2270
    %v2310 = vpack.c.b16 %v2274, %v2271
    %v2311 = vpack.c.b16 %v2278, %v2275
    %v2312 = vpack.c.b16 %v2279, %v2276
    %v2313 = vpack.c.b16 %v2280, %v2277
    %v2314 = vpack.c.b16 %v2284, %v2281
    %v2315 = vpack.c.b16 %v2285, %v2282
    %v2316 = vpack.c.b16 %v2286, %v2283
    %v2317 = vpack.c.b16 %v2290, %v2287
    %v2318 = vpack.c.b16 %v2291, %v2288
    %v2319 = vpack.c.b16 %v2292, %v2289
    %v2320 = vpack.c.b16 %v2296, %v2293
    %v2321 = vpack.c.b16 %v2297, %v2294
    %v2322 = vpack.c.b16 %v2298, %v2295
    %2347 = vmatpush.bf16.msra.mxu0 %v2320
    %2348 = vmatpush.bf16.msra.mxu0 %v2317
    %2349 = vmatpush.bf16.msra.mxu0 %v2314
    %2350 = vmatpush.bf16.msra.mxu0 %v2311
    %2351 = vmatpush.bf16.msra.mxu0 %v2308
    %2352 = vmatpush.bf16.msra.mxu0 %v2305
    %2353 = vmatpush.bf16.msra.mxu0 %v2302
    %2354 = vmatpush.bf16.msra.mxu0 %v2299
    %2355 = vmatmul.bf16.gmra.mxu0 %v2176
    %v2356 = vpop.f32.mrf.mxu0
    %v2357 = vadd.f32 %v2213, %v2356
    %v2358 = vpop.f32.mrf.mxu0
    %v2359 = vadd.f32 %v2213, %v2358
    %2360 = vdwg.mxu0
    %2361 = vmatpush.bf16.msra.mxu0 %v2321
    %2362 = vmatpush.bf16.msra.mxu0 %v2318
    %2363 = vmatpush.bf16.msra.mxu0 %v2315
    %2364 = vmatpush.bf16.msra.mxu0 %v2312
    %2365 = vmatpush.bf16.msra.mxu0 %v2309
    %2366 = vmatpush.bf16.msra.mxu0 %v2306
    %2367 = vmatpush.bf16.msra.mxu0 %v2303
    %2368 = vmatpush.bf16.msra.mxu0 %v2300
    %2369 = vmatmul.bf16.gmra.mxu0 %v2176
    %v2370 = vpop.f32.mrf.mxu0
    %v2371 = vadd.f32 %v2214, %v2370
    %v2372 = vpop.f32.mrf.mxu0
    %v2373 = vadd.f32 %v2214, %v2372
    %2374 = vdwg.mxu0
    %2375 = vmatpush.bf16.msra.mxu0 %v2322
    %2376 = vmatpush.bf16.msra.mxu0 %v2319
    %2377 = vmatpush.bf16.msra.mxu0 %v2316
    %2378 = vmatpush.bf16.msra.mxu0 %v2313
    %2379 = vmatpush.bf16.msra.mxu0 %v2310
    %2380 = vmatpush.bf16.msra.mxu0 %v2307
    %2381 = vmatpush.bf16.msra.mxu0 %v2304
    %2382 = vmatpush.bf16.msra.mxu0 %v2301
    %2383 = vmatmul.bf16.gmra.mxu0 %v2176
    %v2384 = vpop.f32.mrf.mxu0
    %v2385 = vadd.f32 %v2215, %v2384
    %v2386 = vpop.f32.mrf.mxu0
    %v2387 = vadd.f32 %v2215, %v2386
    %2388 = vdwg.mxu0
    %2391 = vrot.lane.b32.xlu0 %v2357, 96
    %v2392 = vpop.permute.xlu0 %2391
    %2393 = vrot.lane.b32.xlu0 %v2359, 96
    %v2394 = vpop.permute.xlu0 %2393
    %2395 = vrot.lane.b32.xlu0 %v2357, 64
    %v2396 = vpop.permute.xlu0 %2395
    %2397 = vrot.lane.b32.xlu0 %v2359, 64
    %v2398 = vpop.permute.xlu0 %2397
    %2399 = vrot.lane.b32.xlu0 %v2357, 32
    %v2400 = vpop.permute.xlu0 %2399
    %2401 = vrot.lane.b32.xlu0 %v2359, 32
    %v2402 = vpop.permute.xlu0 %2401
    %2405 = vrot.lane.b32.xlu0 %v2371, 96
    %v2406 = vpop.permute.xlu0 %2405
    %2407 = vrot.lane.b32.xlu0 %v2373, 96
    %v2408 = vpop.permute.xlu0 %2407
    %2409 = vrot.lane.b32.xlu0 %v2371, 64
    %v2410 = vpop.permute.xlu0 %2409
    %2411 = vrot.lane.b32.xlu0 %v2373, 64
    %v2412 = vpop.permute.xlu0 %2411
    %2413 = vrot.lane.b32.xlu0 %v2371, 32
    %v2414 = vpop.permute.xlu0 %2413
    %2415 = vrot.lane.b32.xlu0 %v2373, 32
    %v2416 = vpop.permute.xlu0 %2415
    %2419 = vrot.lane.b32.xlu0 %v2385, 96
    %v2420 = vpop.permute.xlu0 %2419
    %2421 = vrot.lane.b32.xlu0 %v2387, 96
    %v2422 = vpop.permute.xlu0 %2421
    %2425 = vrot.lane.b32.xlu0 %v2385, 64
    %v2426 = vpop.permute.xlu0 %2425
    %2427 = vrot.lane.b32.xlu0 %v2387, 64
    %v2428 = vpop.permute.xlu0 %2427
    %2431 = vrot.lane.b32.xlu0 %v2385, 32
    %v2432 = vpop.permute.xlu0 %2431
    %2433 = vrot.lane.b32.xlu0 %v2387, 32
    %v2434 = vpop.permute.xlu0 %2433
    %v2437 = vsel %vm730, %v2357, 0
    %v2439 = vsel %vm730, %v2371, 0
    %2441 = vmatpush.xpose.msra.mxu0 0.0
    %2442 = vmatpush.xpose.msra.mxu0 0.0
    %2443 = vmatpush.xpose.msra.mxu0 0.0
    %2444 = vmatpush.xpose.msra.mxu0 0.0
    %2445 = vmatpush.xpose.msra.mxu0 0.0
    %2446 = vmatpush.xpose.msra.mxu0 0.0
    %2447 = vmatpush.xpose.msra.mxu0 0.0
    %2448 = vmatpush.xpose.msra.mxu0 0.0
    %2449 = vmatpush.xpose.msra.mxu0 0.0
    %2450 = vmatpush.xpose.msra.mxu0 0.0
    %2451 = vmatpush.xpose.msra.mxu0 0.0
    %2452 = vmatpush.xpose.msra.mxu0 0.0
    %2453 = vmatpush.xpose.msra.mxu0 0.0
    %2454 = vmatpush.xpose.msra.mxu0 0.0
    %2455 = vmatpush.xpose.msra.mxu0 0.0
    %2456 = vmatpush.xpose.msra.mxu0 %v2439
    %2457 = vmatmul.f32.gmra.mxu0 %v2437
    %v2458 = vpop.f32.mrf.mxu0
    %v2459 = vadd.f32 0.0, %v2458
    %2460 = vdwg.mxu0
    %v2461 = vsel %vm730, %v2359, 0
    %v2463 = vsel %vm730, %v2373, 0
    %2465 = vmatpush.xpose.msra.mxu0 0.0
    %2466 = vmatpush.xpose.msra.mxu0 0.0
    %2467 = vmatpush.xpose.msra.mxu0 0.0
    %2468 = vmatpush.xpose.msra.mxu0 0.0
    %2469 = vmatpush.xpose.msra.mxu0 0.0
    %2470 = vmatpush.xpose.msra.mxu0 0.0
    %2471 = vmatpush.xpose.msra.mxu0 0.0
    %2472 = vmatpush.xpose.msra.mxu0 0.0
    %2473 = vmatpush.xpose.msra.mxu0 0.0
    %2474 = vmatpush.xpose.msra.mxu0 0.0
    %2475 = vmatpush.xpose.msra.mxu0 0.0
    %2476 = vmatpush.xpose.msra.mxu0 0.0
    %2477 = vmatpush.xpose.msra.mxu0 0.0
    %2478 = vmatpush.xpose.msra.mxu0 0.0
    %2479 = vmatpush.xpose.msra.mxu0 0.0
    %2480 = vmatpush.xpose.msra.mxu0 %v2463
    %2481 = vmatmul.f32.gmra.mxu0 %v2461
    %v2482 = vpop.f32.mrf.mxu0
    %v2483 = vadd.f32 0.0, %v2482
    %2484 = vdwg.mxu0
    %v2485 = vsel %vm730, %v2392, 0
    %v2487 = vsel %vm730, %v2406, 0
    %2489 = vmatpush.xpose.msra.mxu0 0.0
    %2490 = vmatpush.xpose.msra.mxu0 0.0
    %2491 = vmatpush.xpose.msra.mxu0 0.0
    %2492 = vmatpush.xpose.msra.mxu0 0.0
    %2493 = vmatpush.xpose.msra.mxu0 0.0
    %2494 = vmatpush.xpose.msra.mxu0 0.0
    %2495 = vmatpush.xpose.msra.mxu0 0.0
    %2496 = vmatpush.xpose.msra.mxu0 0.0
    %2497 = vmatpush.xpose.msra.mxu0 0.0
    %2498 = vmatpush.xpose.msra.mxu0 0.0
    %2499 = vmatpush.xpose.msra.mxu0 0.0
    %2500 = vmatpush.xpose.msra.mxu0 0.0
    %2501 = vmatpush.xpose.msra.mxu0 0.0
    %2502 = vmatpush.xpose.msra.mxu0 0.0
    %2503 = vmatpush.xpose.msra.mxu0 0.0
    %2504 = vmatpush.xpose.msra.mxu0 %v2487
    %2505 = vmatmul.f32.gmra.mxu0 %v2485
    %v2506 = vpop.f32.mrf.mxu0
    %v2507 = vadd.f32 0.0, %v2506
    %2508 = vdwg.mxu0
    %v2509 = vsel %vm730, %v2394, 0
    %v2511 = vsel %vm730, %v2408, 0
    %2513 = vmatpush.xpose.msra.mxu0 0.0
    %2514 = vmatpush.xpose.msra.mxu0 0.0
    %2515 = vmatpush.xpose.msra.mxu0 0.0
    %2516 = vmatpush.xpose.msra.mxu0 0.0
    %2517 = vmatpush.xpose.msra.mxu0 0.0
    %2518 = vmatpush.xpose.msra.mxu0 0.0
    %2519 = vmatpush.xpose.msra.mxu0 0.0
    %2520 = vmatpush.xpose.msra.mxu0 0.0
    %2521 = vmatpush.xpose.msra.mxu0 0.0
    %2522 = vmatpush.xpose.msra.mxu0 0.0
    %2523 = vmatpush.xpose.msra.mxu0 0.0
    %2524 = vmatpush.xpose.msra.mxu0 0.0
    %2525 = vmatpush.xpose.msra.mxu0 0.0
    %2526 = vmatpush.xpose.msra.mxu0 0.0
    %2527 = vmatpush.xpose.msra.mxu0 0.0
    %2528 = vmatpush.xpose.msra.mxu0 %v2511
    %2529 = vmatmul.f32.gmra.mxu0 %v2509
    %v2530 = vpop.f32.mrf.mxu0
    %v2531 = vadd.f32 0.0, %v2530
    %2532 = vdwg.mxu0
    %v2533 = vsel %vm730, %v2396, 0
    %v2535 = vsel %vm730, %v2410, 0
    %2537 = vmatpush.xpose.msra.mxu0 0.0
    %2538 = vmatpush.xpose.msra.mxu0 0.0
    %2539 = vmatpush.xpose.msra.mxu0 0.0
    %2540 = vmatpush.xpose.msra.mxu0 0.0
    %2541 = vmatpush.xpose.msra.mxu0 0.0
    %2542 = vmatpush.xpose.msra.mxu0 0.0
    %2543 = vmatpush.xpose.msra.mxu0 0.0
    %2544 = vmatpush.xpose.msra.mxu0 0.0
    %2545 = vmatpush.xpose.msra.mxu0 0.0
    %2546 = vmatpush.xpose.msra.mxu0 0.0
    %2547 = vmatpush.xpose.msra.mxu0 0.0
    %2548 = vmatpush.xpose.msra.mxu0 0.0
    %2549 = vmatpush.xpose.msra.mxu0 0.0
    %2550 = vmatpush.xpose.msra.mxu0 0.0
    %2551 = vmatpush.xpose.msra.mxu0 0.0
    %2552 = vmatpush.xpose.msra.mxu0 %v2535
    %2553 = vmatmul.f32.gmra.mxu0 %v2533
    %v2554 = vpop.f32.mrf.mxu0
    %v2555 = vadd.f32 0.0, %v2554
    %2556 = vdwg.mxu0
    %v2557 = vsel %vm730, %v2398, 0
    %v2559 = vsel %vm730, %v2412, 0
    %2561 = vmatpush.xpose.msra.mxu0 0.0
    %2562 = vmatpush.xpose.msra.mxu0 0.0
    %2563 = vmatpush.xpose.msra.mxu0 0.0
    %2564 = vmatpush.xpose.msra.mxu0 0.0
    %2565 = vmatpush.xpose.msra.mxu0 0.0
    %2566 = vmatpush.xpose.msra.mxu0 0.0
    %2567 = vmatpush.xpose.msra.mxu0 0.0
    %2568 = vmatpush.xpose.msra.mxu0 0.0
    %2569 = vmatpush.xpose.msra.mxu0 0.0
    %2570 = vmatpush.xpose.msra.mxu0 0.0
    %2571 = vmatpush.xpose.msra.mxu0 0.0
    %2572 = vmatpush.xpose.msra.mxu0 0.0
    %2573 = vmatpush.xpose.msra.mxu0 0.0
    %2574 = vmatpush.xpose.msra.mxu0 0.0
    %2575 = vmatpush.xpose.msra.mxu0 0.0
    %2576 = vmatpush.xpose.msra.mxu0 %v2559
    %2577 = vmatmul.f32.gmra.mxu0 %v2557
    %v2578 = vpop.f32.mrf.mxu0
    %v2579 = vadd.f32 0.0, %v2578
    %2580 = vdwg.mxu0
    %v2581 = vsel %vm730, %v2400, 0
    %v2583 = vsel %vm730, %v2414, 0
    %2585 = vmatpush.xpose.msra.mxu0 0.0
    %2586 = vmatpush.xpose.msra.mxu0 0.0
    %2587 = vmatpush.xpose.msra.mxu0 0.0
    %2588 = vmatpush.xpose.msra.mxu0 0.0
    %2589 = vmatpush.xpose.msra.mxu0 0.0
    %2590 = vmatpush.xpose.msra.mxu0 0.0
    %2591 = vmatpush.xpose.msra.mxu0 0.0
    %2592 = vmatpush.xpose.msra.mxu0 0.0
    %2593 = vmatpush.xpose.msra.mxu0 0.0
    %2594 = vmatpush.xpose.msra.mxu0 0.0
    %2595 = vmatpush.xpose.msra.mxu0 0.0
    %2596 = vmatpush.xpose.msra.mxu0 0.0
    %2597 = vmatpush.xpose.msra.mxu0 0.0
    %2598 = vmatpush.xpose.msra.mxu0 0.0
    %2599 = vmatpush.xpose.msra.mxu0 0.0
    %2600 = vmatpush.xpose.msra.mxu0 %v2583
    %2601 = vmatmul.f32.gmra.mxu0 %v2581
    %v2602 = vpop.f32.mrf.mxu0
    %v2603 = vadd.f32 0.0, %v2602
    %2604 = vdwg.mxu0
    %v2605 = vsel %vm730, %v2402, 0
    %v2607 = vsel %vm730, %v2416, 0
    %2609 = vmatpush.xpose.msra.mxu0 0.0
    %2610 = vmatpush.xpose.msra.mxu0 0.0
    %2611 = vmatpush.xpose.msra.mxu0 0.0
    %2612 = vmatpush.xpose.msra.mxu0 0.0
    %2613 = vmatpush.xpose.msra.mxu0 0.0
    %2614 = vmatpush.xpose.msra.mxu0 0.0
    %2615 = vmatpush.xpose.msra.mxu0 0.0
    %2616 = vmatpush.xpose.msra.mxu0 0.0
    %2617 = vmatpush.xpose.msra.mxu0 0.0
    %2618 = vmatpush.xpose.msra.mxu0 0.0
    %2619 = vmatpush.xpose.msra.mxu0 0.0
    %2620 = vmatpush.xpose.msra.mxu0 0.0
    %2621 = vmatpush.xpose.msra.mxu0 0.0
    %2622 = vmatpush.xpose.msra.mxu0 0.0
    %2623 = vmatpush.xpose.msra.mxu0 0.0
    %2624 = vmatpush.xpose.msra.mxu0 %v2607
    %2625 = vmatmul.f32.gmra.mxu0 %v2605
    %v2626 = vpop.f32.mrf.mxu0
    %v2627 = vadd.f32 0.0, %v2626
    %2628 = vdwg.mxu0
    %v2629 = vmul.f32 %v2459, 0.17677669
    %v2630 = vmul.f32 %v2483, 0.17677669
    %v2631 = vmul.f32 %v2507, 0.17677669
    %v2632 = vmul.f32 %v2531, 0.17677669
    %v2633 = vmul.f32 %v2555, 0.17677669
    %v2634 = vmul.f32 %v2579, 0.17677669
    %v2635 = vmul.f32 %v2603, 0.17677669
    %v2636 = vmul.f32 %v2627, 0.17677669
    %v2637 = vsel %vm931, %v2629, -inf
    %2638 = vmax.xlane.f32.xlu0 %v2637
    %v2639 = vpop.xlane.xlu0 %2638
    %v2640 = vsel %vm931, %v2630, -inf
    %2641 = vmax.xlane.f32.xlu0 %v2640
    %v2642 = vpop.xlane.xlu0 %2641
    %v2643 = vsel %vm931, %v2631, -inf
    %2644 = vmax.xlane.f32.xlu0 %v2643
    %v2645 = vpop.xlane.xlu0 %2644
    %v2646 = vsel %vm931, %v2632, -inf
    %2647 = vmax.xlane.f32.xlu0 %v2646
    %v2648 = vpop.xlane.xlu0 %2647
    %v2649 = vsel %vm931, %v2633, -inf
    %2650 = vmax.xlane.f32.xlu0 %v2649
    %v2651 = vpop.xlane.xlu0 %2650
    %v2652 = vsel %vm931, %v2634, -inf
    %2653 = vmax.xlane.f32.xlu0 %v2652
    %v2654 = vpop.xlane.xlu0 %2653
    %v2655 = vsel %vm931, %v2635, -inf
    %2656 = vmax.xlane.f32.xlu0 %v2655
    %v2657 = vpop.xlane.xlu0 %2656
    %v2658 = vsel %vm931, %v2636, -inf
    %2659 = vmax.xlane.f32.xlu0 %v2658
    %v2660 = vpop.xlane.xlu0 %2659
    %v2661 = vsub.f32 %v2629, %v2639
    %v2662 = vsub.f32 %v2630, %v2642
    %v2663 = vsub.f32 %v2631, %v2645
    %v2664 = vsub.f32 %v2632, %v2648
    %v2665 = vsub.f32 %v2633, %v2651
    %v2666 = vsub.f32 %v2634, %v2654
    %v2667 = vsub.f32 %v2635, %v2657
    %v2668 = vsub.f32 %v2636, %v2660
    %v2669 = vmul.f32 %v2661, 1.442695
    %v2670 = vpow.pop %v2669
    %v2671 = vmul.f32 %v2662, 1.442695
    %v2672 = vpow.pop %v2671
    %v2673 = vmul.f32 %v2663, 1.442695
    %v2674 = vpow.pop %v2673
    %v2675 = vmul.f32 %v2664, 1.442695
    %v2676 = vpow.pop %v2675
    %v2677 = vmul.f32 %v2665, 1.442695
    %v2678 = vpow.pop %v2677
    %v2679 = vmul.f32 %v2666, 1.442695
    %v2680 = vpow.pop %v2679
    %v2681 = vmul.f32 %v2667, 1.442695
    %v2682 = vpow.pop %v2681
    %v2683 = vmul.f32 %v2668, 1.442695
    %v2684 = vpow.pop %v2683
    %v2685 = vsel %vm931, %v2670, 0.0
    %2686 = vadd.xlane.f32.xlu0 %v2685
    %v2687 = vpop.xlane.xlu0 %2686
    %v2688 = vsel %vm931, %v2672, 0.0
    %2689 = vadd.xlane.f32.xlu0 %v2688
    %v2690 = vpop.xlane.xlu0 %2689
    %v2691 = vsel %vm931, %v2674, 0.0
    %2692 = vadd.xlane.f32.xlu0 %v2691
    %v2693 = vpop.xlane.xlu0 %2692
    %v2694 = vsel %vm931, %v2676, 0.0
    %2695 = vadd.xlane.f32.xlu0 %v2694
    %v2696 = vpop.xlane.xlu0 %2695
    %v2697 = vsel %vm931, %v2678, 0.0
    %2698 = vadd.xlane.f32.xlu0 %v2697
    %v2699 = vpop.xlane.xlu0 %2698
    %v2700 = vsel %vm931, %v2680, 0.0
    %2701 = vadd.xlane.f32.xlu0 %v2700
    %v2702 = vpop.xlane.xlu0 %2701
    %v2703 = vsel %vm931, %v2682, 0.0
    %2704 = vadd.xlane.f32.xlu0 %v2703
    %v2705 = vpop.xlane.xlu0 %2704
    %v2706 = vsel %vm931, %v2684, 0.0
    %2707 = vadd.xlane.f32.xlu0 %v2706
    %v2708 = vpop.xlane.xlu0 %2707
    %v2709 = vrcp.pop %v2687
    %v2710 = vmul.f32 %v2687, %v2709
    %v2711 = vsub.f32 1.0, %v2710
    %v2712 = vmul.f32 %v2709, %v2711
    %v2713 = vadd.f32 %v2709, %v2712
    %vm2714 = vweird.f32 %v2687
    %vm2715 = vweird.f32 %v2709
    %vm2716 = vmor %vm2714, %vm2715
    %v2717 = vsel %vm2716, %v2709, %v2713
    %v2718 = vand.u32 2147483647, %v2687
    %vm2719 = vcmp.eq.f32.partialorder %v2718, 8.507059e+37
    %v2720 = vand.u32 %v2687, 2147483648
    %v2721 = vor.u32 1.1754944e-38, %v2720
    %v2722 = vsel %vm2719, %v2721, %v2717
    %v2723 = vmul.f32 %v2670, %v2722
    %v2724 = vrcp.pop %v2690
    %v2725 = vmul.f32 %v2690, %v2724
    %v2726 = vsub.f32 1.0, %v2725
    %v2727 = vmul.f32 %v2724, %v2726
    %v2728 = vadd.f32 %v2724, %v2727
    %vm2729 = vweird.f32 %v2690
    %vm2730 = vweird.f32 %v2724
    %vm2731 = vmor %vm2729, %vm2730
    %v2732 = vsel %vm2731, %v2724, %v2728
    %v2733 = vand.u32 2147483647, %v2690
    %vm2734 = vcmp.eq.f32.partialorder %v2733, 8.507059e+37
    %v2735 = vand.u32 %v2690, 2147483648
    %v2736 = vor.u32 1.1754944e-38, %v2735
    %v2737 = vsel %vm2734, %v2736, %v2732
    %v2738 = vmul.f32 %v2672, %v2737
    %v2739 = vrcp.pop %v2693
    %v2740 = vmul.f32 %v2693, %v2739
    %v2741 = vsub.f32 1.0, %v2740
    %v2742 = vmul.f32 %v2739, %v2741
    %v2743 = vadd.f32 %v2739, %v2742
    %vm2744 = vweird.f32 %v2693
    %vm2745 = vweird.f32 %v2739
    %vm2746 = vmor %vm2744, %vm2745
    %v2747 = vsel %vm2746, %v2739, %v2743
    %v2748 = vand.u32 2147483647, %v2693
    %vm2749 = vcmp.eq.f32.partialorder %v2748, 8.507059e+37
    %v2750 = vand.u32 %v2693, 2147483648
    %v2751 = vor.u32 1.1754944e-38, %v2750
    %v2752 = vsel %vm2749, %v2751, %v2747
    %v2753 = vmul.f32 %v2674, %v2752
    %v2754 = vrcp.pop %v2696
    %v2755 = vmul.f32 %v2696, %v2754
    %v2756 = vsub.f32 1.0, %v2755
    %v2757 = vmul.f32 %v2754, %v2756
    %v2758 = vadd.f32 %v2754, %v2757
    %vm2759 = vweird.f32 %v2696
    %vm2760 = vweird.f32 %v2754
    %vm2761 = vmor %vm2759, %vm2760
    %v2762 = vsel %vm2761, %v2754, %v2758
    %v2763 = vand.u32 2147483647, %v2696
    %vm2764 = vcmp.eq.f32.partialorder %v2763, 8.507059e+37
    %v2765 = vand.u32 %v2696, 2147483648
    %v2766 = vor.u32 1.1754944e-38, %v2765
    %v2767 = vsel %vm2764, %v2766, %v2762
    %v2768 = vmul.f32 %v2676, %v2767
    %v2769 = vrcp.pop %v2699
    %v2770 = vmul.f32 %v2699, %v2769
    %v2771 = vsub.f32 1.0, %v2770
    %v2772 = vmul.f32 %v2769, %v2771
    %v2773 = vadd.f32 %v2769, %v2772
    %vm2774 = vweird.f32 %v2699
    %vm2775 = vweird.f32 %v2769
    %vm2776 = vmor %vm2774, %vm2775
    %v2777 = vsel %vm2776, %v2769, %v2773
    %v2778 = vand.u32 2147483647, %v2699
    %vm2779 = vcmp.eq.f32.partialorder %v2778, 8.507059e+37
    %v2780 = vand.u32 %v2699, 2147483648
    %v2781 = vor.u32 1.1754944e-38, %v2780
    %v2782 = vsel %vm2779, %v2781, %v2777
    %v2783 = vmul.f32 %v2678, %v2782
    %v2784 = vrcp.pop %v2702
    %v2785 = vmul.f32 %v2702, %v2784
    %v2786 = vsub.f32 1.0, %v2785
    %v2787 = vmul.f32 %v2784, %v2786
    %v2788 = vadd.f32 %v2784, %v2787
    %vm2789 = vweird.f32 %v2702
    %vm2790 = vweird.f32 %v2784
    %vm2791 = vmor %vm2789, %vm2790
    %v2792 = vsel %vm2791, %v2784, %v2788
    %v2793 = vand.u32 2147483647, %v2702
    %vm2794 = vcmp.eq.f32.partialorder %v2793, 8.507059e+37
    %v2795 = vand.u32 %v2702, 2147483648
    %v2796 = vor.u32 1.1754944e-38, %v2795
    %v2797 = vsel %vm2794, %v2796, %v2792
    %v2798 = vmul.f32 %v2680, %v2797
    %v2799 = vrcp.pop %v2705
    %v2800 = vmul.f32 %v2705, %v2799
    %v2801 = vsub.f32 1.0, %v2800
    %v2802 = vmul.f32 %v2799, %v2801
    %v2803 = vadd.f32 %v2799, %v2802
    %vm2804 = vweird.f32 %v2705
    %vm2805 = vweird.f32 %v2799
    %vm2806 = vmor %vm2804, %vm2805
    %v2807 = vsel %vm2806, %v2799, %v2803
    %v2808 = vand.u32 2147483647, %v2705
    %vm2809 = vcmp.eq.f32.partialorder %v2808, 8.507059e+37
    %v2810 = vand.u32 %v2705, 2147483648
    %v2811 = vor.u32 1.1754944e-38, %v2810
    %v2812 = vsel %vm2809, %v2811, %v2807
    %v2813 = vmul.f32 %v2682, %v2812
    %v2814 = vrcp.pop %v2708
    %v2815 = vmul.f32 %v2708, %v2814
    %v2816 = vsub.f32 1.0, %v2815
    %v2817 = vmul.f32 %v2814, %v2816
    %v2818 = vadd.f32 %v2814, %v2817
    %vm2819 = vweird.f32 %v2708
    %vm2820 = vweird.f32 %v2814
    %vm2821 = vmor %vm2819, %vm2820
    %v2822 = vsel %vm2821, %v2814, %v2818
    %v2823 = vand.u32 2147483647, %v2708
    %vm2824 = vcmp.eq.f32.partialorder %v2823, 8.507059e+37
    %v2825 = vand.u32 %v2708, 2147483648
    %v2826 = vor.u32 1.1754944e-38, %v2825
    %v2827 = vsel %vm2824, %v2826, %v2822
    %v2828 = vmul.f32 %v2684, %v2827
    %v2830 = vsel %vm931, %v2723, 0
    %2832 = vmatpush.msra.mxu0 0.0
    %2833 = vmatpush.msra.mxu0 0.0
    %2834 = vmatpush.msra.mxu0 0.0
    %2835 = vmatpush.msra.mxu0 0.0
    %2836 = vmatpush.msra.mxu0 0.0
    %2837 = vmatpush.msra.mxu0 0.0
    %2838 = vmatpush.msra.mxu0 0.0
    %2839 = vmatpush.msra.mxu0 0.0
    %2840 = vmatpush.msra.mxu0 0.0
    %2841 = vmatpush.msra.mxu0 0.0
    %2842 = vmatpush.msra.mxu0 0.0
    %2843 = vmatpush.msra.mxu0 0.0
    %2844 = vmatpush.msra.mxu0 0.0
    %2845 = vmatpush.msra.mxu0 0.0
    %2846 = vmatpush.msra.mxu0 0.0
    %2847 = vmatpush.msra.mxu0 %v2385
    %2848 = vmatmul.f32.gmra.mxu0 %v2830
    %v2849 = vpop.f32.mrf.mxu0
    %v2850 = vadd.f32 0.0, %v2849
    %2851 = vdwg.mxu0
    %v2853 = vsel %vm931, %v2738, 0
    %2855 = vmatpush.msra.mxu0 0.0
    %2856 = vmatpush.msra.mxu0 0.0
    %2857 = vmatpush.msra.mxu0 0.0
    %2858 = vmatpush.msra.mxu0 0.0
    %2859 = vmatpush.msra.mxu0 0.0
    %2860 = vmatpush.msra.mxu0 0.0
    %2861 = vmatpush.msra.mxu0 0.0
    %2862 = vmatpush.msra.mxu0 0.0
    %2863 = vmatpush.msra.mxu0 0.0
    %2864 = vmatpush.msra.mxu0 0.0
    %2865 = vmatpush.msra.mxu0 0.0
    %2866 = vmatpush.msra.mxu0 0.0
    %2867 = vmatpush.msra.mxu0 0.0
    %2868 = vmatpush.msra.mxu0 0.0
    %2869 = vmatpush.msra.mxu0 0.0
    %2870 = vmatpush.msra.mxu0 %v2387
    %2871 = vmatmul.f32.gmra.mxu0 %v2853
    %v2872 = vpop.f32.mrf.mxu0
    %v2873 = vadd.f32 0.0, %v2872
    %2874 = vdwg.mxu0
    %v2876 = vsel %vm931, %v2753, 0
    %2878 = vmatpush.msra.mxu0 0.0
    %2879 = vmatpush.msra.mxu0 0.0
    %2880 = vmatpush.msra.mxu0 0.0
    %2881 = vmatpush.msra.mxu0 0.0
    %2882 = vmatpush.msra.mxu0 0.0
    %2883 = vmatpush.msra.mxu0 0.0
    %2884 = vmatpush.msra.mxu0 0.0
    %2885 = vmatpush.msra.mxu0 0.0
    %2886 = vmatpush.msra.mxu0 0.0
    %2887 = vmatpush.msra.mxu0 0.0
    %2888 = vmatpush.msra.mxu0 0.0
    %2889 = vmatpush.msra.mxu0 0.0
    %2890 = vmatpush.msra.mxu0 0.0
    %2891 = vmatpush.msra.mxu0 0.0
    %2892 = vmatpush.msra.mxu0 0.0
    %2893 = vmatpush.msra.mxu0 %v2420
    %2894 = vmatmul.f32.gmra.mxu0 %v2876
    %v2895 = vpop.f32.mrf.mxu0
    %v2896 = vadd.f32 0.0, %v2895
    %2897 = vdwg.mxu0
    %v2899 = vsel %vm931, %v2768, 0
    %2901 = vmatpush.msra.mxu0 0.0
    %2902 = vmatpush.msra.mxu0 0.0
    %2903 = vmatpush.msra.mxu0 0.0
    %2904 = vmatpush.msra.mxu0 0.0
    %2905 = vmatpush.msra.mxu0 0.0
    %2906 = vmatpush.msra.mxu0 0.0
    %2907 = vmatpush.msra.mxu0 0.0
    %2908 = vmatpush.msra.mxu0 0.0
    %2909 = vmatpush.msra.mxu0 0.0
    %2910 = vmatpush.msra.mxu0 0.0
    %2911 = vmatpush.msra.mxu0 0.0
    %2912 = vmatpush.msra.mxu0 0.0
    %2913 = vmatpush.msra.mxu0 0.0
    %2914 = vmatpush.msra.mxu0 0.0
    %2915 = vmatpush.msra.mxu0 0.0
    %2916 = vmatpush.msra.mxu0 %v2422
    %2917 = vmatmul.f32.gmra.mxu0 %v2899
    %v2918 = vpop.f32.mrf.mxu0
    %v2919 = vadd.f32 0.0, %v2918
    %2920 = vdwg.mxu0
    %v2922 = vsel %vm931, %v2783, 0
    %2924 = vmatpush.msra.mxu0 0.0
    %2925 = vmatpush.msra.mxu0 0.0
    %2926 = vmatpush.msra.mxu0 0.0
    %2927 = vmatpush.msra.mxu0 0.0
    %2928 = vmatpush.msra.mxu0 0.0
    %2929 = vmatpush.msra.mxu0 0.0
    %2930 = vmatpush.msra.mxu0 0.0
    %2931 = vmatpush.msra.mxu0 0.0
    %2932 = vmatpush.msra.mxu0 0.0
    %2933 = vmatpush.msra.mxu0 0.0
    %2934 = vmatpush.msra.mxu0 0.0
    %2935 = vmatpush.msra.mxu0 0.0
    %2936 = vmatpush.msra.mxu0 0.0
    %2937 = vmatpush.msra.mxu0 0.0
    %2938 = vmatpush.msra.mxu0 0.0
    %2939 = vmatpush.msra.mxu0 %v2426
    %2940 = vmatmul.f32.gmra.mxu0 %v2922
    %v2941 = vpop.f32.mrf.mxu0
    %v2942 = vadd.f32 0.0, %v2941
    %2943 = vdwg.mxu0
    %v2945 = vsel %vm931, %v2798, 0
    %2947 = vmatpush.msra.mxu0 0.0
    %2948 = vmatpush.msra.mxu0 0.0
    %2949 = vmatpush.msra.mxu0 0.0
    %2950 = vmatpush.msra.mxu0 0.0
    %2951 = vmatpush.msra.mxu0 0.0
    %2952 = vmatpush.msra.mxu0 0.0
    %2953 = vmatpush.msra.mxu0 0.0
    %2954 = vmatpush.msra.mxu0 0.0
    %2955 = vmatpush.msra.mxu0 0.0
    %2956 = vmatpush.msra.mxu0 0.0
    %2957 = vmatpush.msra.mxu0 0.0
    %2958 = vmatpush.msra.mxu0 0.0
    %2959 = vmatpush.msra.mxu0 0.0
    %2960 = vmatpush.msra.mxu0 0.0
    %2961 = vmatpush.msra.mxu0 0.0
    %2962 = vmatpush.msra.mxu0 %v2428
    %2963 = vmatmul.f32.gmra.mxu0 %v2945
    %v2964 = vpop.f32.mrf.mxu0
    %v2965 = vadd.f32 0.0, %v2964
    %2966 = vdwg.mxu0
    %v2968 = vsel %vm931, %v2813, 0
    %2970 = vmatpush.msra.mxu0 0.0
    %2971 = vmatpush.msra.mxu0 0.0
    %2972 = vmatpush.msra.mxu0 0.0
    %2973 = vmatpush.msra.mxu0 0.0
    %2974 = vmatpush.msra.mxu0 0.0
    %2975 = vmatpush.msra.mxu0 0.0
    %2976 = vmatpush.msra.mxu0 0.0
    %2977 = vmatpush.msra.mxu0 0.0
    %2978 = vmatpush.msra.mxu0 0.0
    %2979 = vmatpush.msra.mxu0 0.0
    %2980 = vmatpush.msra.mxu0 0.0
    %2981 = vmatpush.msra.mxu0 0.0
    %2982 = vmatpush.msra.mxu0 0.0
    %2983 = vmatpush.msra.mxu0 0.0
    %2984 = vmatpush.msra.mxu0 0.0
    %2985 = vmatpush.msra.mxu0 %v2432
    %2986 = vmatmul.f32.gmra.mxu0 %v2968
    %v2987 = vpop.f32.mrf.mxu0
    %v2988 = vadd.f32 0.0, %v2987
    %2989 = vdwg.mxu0
    %v2991 = vsel %vm931, %v2828, 0
    %2993 = vmatpush.msra.mxu0 0.0
    %2994 = vmatpush.msra.mxu0 0.0
    %2995 = vmatpush.msra.mxu0 0.0
    %2996 = vmatpush.msra.mxu0 0.0
    %2997 = vmatpush.msra.mxu0 0.0
    %2998 = vmatpush.msra.mxu0 0.0
    %2999 = vmatpush.msra.mxu0 0.0
    %3000 = vmatpush.msra.mxu0 0.0
    %3001 = vmatpush.msra.mxu0 0.0
    %3002 = vmatpush.msra.mxu0 0.0
    %3003 = vmatpush.msra.mxu0 0.0
    %3004 = vmatpush.msra.mxu0 0.0
    %3005 = vmatpush.msra.mxu0 0.0
    %3006 = vmatpush.msra.mxu0 0.0
    %3007 = vmatpush.msra.mxu0 0.0
    %3008 = vmatpush.msra.mxu0 %v2434
    %3009 = vmatmul.f32.gmra.mxu0 %v2991
    %v3010 = vpop.f32.mrf.mxu0
    %v3011 = vadd.f32 0.0, %v3010
    %3012 = vdwg.mxu0
    %3015 = vrot.lane.b32.xlu0 %v2896, 32
    %v3016 = vpop.permute.xlu0 %3015
    %3017 = vrot.lane.b32.xlu0 %v2919, 32
    %v3018 = vpop.permute.xlu0 %3017
    %3023 = vrot.lane.b32.xlu0 %v2942, 64
    %v3024 = vpop.permute.xlu0 %3023
    %3025 = vrot.lane.b32.xlu0 %v2965, 64
    %v3026 = vpop.permute.xlu0 %3025
    %3031 = vrot.lane.b32.xlu0 %v2988, 96
    %v3032 = vpop.permute.xlu0 %3031
    %3033 = vrot.lane.b32.xlu0 %v3011, 96
    %v3034 = vpop.permute.xlu0 %3033
    %v3037 = vsel %vm730, %v2850, %v3016
    %v3038 = vsel %vm730, %v2873, %v3018
    %v3039 = vsel %vm1334, %v3037, %v3024
    %v3040 = vsel %vm1334, %v3038, %v3026
    %v3041 = vsel %vm1337, %v3039, %v3032
    %v3042 = vsel %vm1337, %v3040, %v3034
    %v3043 = vpack.c.bf16 %v3042, %v3041
    %s3044 = scalar_lea.vmem [#allocation8], 64
    %v3045 = vld [vmem:[%s3044] sm:$0xf]
    %v3046 = vld [vmem:[%s3044 + $0x4] sm:$0xf]
    %v3047 = vld [vmem:[%s3044 + $0x8] sm:$0xf]
    %v3048 = vld [vmem:[%s3044 + $0xc] sm:$0xf]
    %v3049 = vld [vmem:[%s3044 + $0x10] sm:$0xf]
    %v3050 = vld [vmem:[%s3044 + $0x14] sm:$0xf]
    %v3051 = vld [vmem:[%s3044 + $0x18] sm:$0xf]
    %v3052 = vld [vmem:[%s3044 + $0x1c] sm:$0xf]
    %v3053 = vld [vmem:[%s3044 + $0x20] sm:$0xf]
    %v3054 = vld [vmem:[%s3044 + $0x24] sm:$0xf]
    %v3055 = vld [vmem:[%s3044 + $0x28] sm:$0xf]
    %v3056 = vld [vmem:[%s3044 + $0x2c] sm:$0xf]
    %v3057 = vld [vmem:[%s3044 + $0x30] sm:$0xf]
    %v3058 = vld [vmem:[%s3044 + $0x34] sm:$0xf]
    %v3059 = vld [vmem:[%s3044 + $0x38] sm:$0xf]
    %v3060 = vld [vmem:[%s3044 + $0x3c] sm:$0xf]
    %s3061 = scalar_lea.vmem %s7, 1
    %v3062 = vld [vmem:[%s3061] sm:$0x1]
    %v3064 = vperm.slane %v3062, 0
    %v3082 = vunpack.c.l.b16 %v3045
    %v3083 = vunpack.c.l.b16 %v3046
    %v3084 = vunpack.c.l.b16 %v3047
    %v3085 = vunpack.c.l.b16 %v3048
    %v3086 = vunpack.c.l.b16 %v3049
    %v3087 = vunpack.c.l.b16 %v3050
    %v3088 = vunpack.c.l.b16 %v3051
    %v3089 = vunpack.c.l.b16 %v3052
    %v3090 = vunpack.c.l.b16 %v3053
    %v3091 = vunpack.c.l.b16 %v3054
    %v3092 = vunpack.c.l.b16 %v3055
    %v3093 = vunpack.c.l.b16 %v3056
    %v3094 = vunpack.c.l.b16 %v3057
    %v3095 = vunpack.c.l.b16 %v3058
    %v3096 = vunpack.c.l.b16 %v3059
    %v3097 = vunpack.c.l.b16 %v3060
    %v3098 = vpack.c.b16 %v3083, %v3082
    %v3099 = vpack.c.b16 %v3085, %v3084
    %v3100 = vpack.c.b16 %v3087, %v3086
    %v3101 = vpack.c.b16 %v3089, %v3088
    %v3102 = vpack.c.b16 %v3091, %v3090
    %v3103 = vpack.c.b16 %v3093, %v3092
    %v3104 = vpack.c.b16 %v3095, %v3094
    %v3105 = vpack.c.b16 %v3097, %v3096
    %3114 = vmatpush.bf16.msra.mxu0 %v3105
    %3115 = vmatpush.bf16.msra.mxu0 %v3104
    %3116 = vmatpush.bf16.msra.mxu0 %v3103
    %3117 = vmatpush.bf16.msra.mxu0 %v3102
    %3118 = vmatpush.bf16.msra.mxu0 %v3101
    %3119 = vmatpush.bf16.msra.mxu0 %v3100
    %3120 = vmatpush.bf16.msra.mxu0 %v3099
    %3121 = vmatpush.bf16.msra.mxu0 %v3098
    %3122 = vmatmul.bf16.gmra.mxu0 %v3043
    %v3123 = vpop.f32.mrf.mxu0
    %v3124 = vadd.f32 %v3064, %v3123
    %v3125 = vpop.f32.mrf.mxu0
    %v3126 = vadd.f32 %v3064, %v3125
    %3127 = vdwg.mxu0
    %v3128 = vadd.f32 %v2128, %v3124
    %v3129 = vadd.f32 %v2129, %v3126
    %3130 = vadd.xlane.f32.xlu0 %v3128
    %v3131 = vpop.xlane.xlu0 %3130
    %3132 = vadd.xlane.f32.xlu0 %v3129
    %v3133 = vpop.xlane.xlu0 %3132
    %v3134 = vmul.f32 %v3131, %v428
    %v3135 = vmul.f32 %v3133, %v428
    %v3136 = vsub.f32 %v3128, %v3134
    %v3137 = vsub.f32 %v3129, %v3135
    %v3138 = vmul.f32 %v3136, %v3136
    %v3139 = vmul.f32 %v3137, %v3137
    %3140 = vadd.xlane.f32.xlu0 %v3138
    %v3141 = vpop.xlane.xlu0 %3140
    %3142 = vadd.xlane.f32.xlu0 %v3139
    %v3143 = vpop.xlane.xlu0 %3142
    %v3144 = vmul.f32 %v3141, %v428
    %v3145 = vmul.f32 %v3143, %v428
    %v3146 = vadd.f32 %v3144, 1e-05
    %v3147 = vadd.f32 %v3145, 1e-05
    %v3148 = vrsqrt.pop %v3146
    %v3149 = vmul.f32 %v3148, %v3146
    %v3150 = vmul.f32 %v3149, %v3148
    %v3151 = vmul.f32 0.5, %v3150
    %v3152 = vsub.f32 1.5, %v3151
    %v3153 = vmul.f32 %v3148, %v3152
    %vm3154 = vweird.f32 %v3146
    %vm3155 = vweird.f32 %v3148
    %vm3156 = vmor %vm3154, %vm3155
    %v3157 = vsel %vm3156, %v3148, %v3153
    %v3158 = vrsqrt.pop %v3147
    %v3159 = vmul.f32 %v3158, %v3147
    %v3160 = vmul.f32 %v3159, %v3158
    %v3161 = vmul.f32 0.5, %v3160
    %v3162 = vsub.f32 1.5, %v3161
    %v3163 = vmul.f32 %v3158, %v3162
    %vm3164 = vweird.f32 %v3147
    %vm3165 = vweird.f32 %v3158
    %vm3166 = vmor %vm3164, %vm3165
    %v3167 = vsel %vm3166, %v3158, %v3163
    %v3168 = vmul.f32 %v3136, %v3157
    %v3169 = vmul.f32 %v3137, %v3167
    %s3170 = scalar_lea.vmem %s8, 1
    %v3171 = vld [vmem:[%s3170] sm:$0x1]
    %v3173 = vperm.slane %v3171, 0
    %v3175 = vmul.f32 %v3168, %v3173
    %v3176 = vmul.f32 %v3169, %v3173
    %s3177 = scalar_lea.vmem %s9, 1
    %v3178 = vld [vmem:[%s3177] sm:$0x1]
    %v3180 = vperm.slane %v3178, 0
    %v3182 = vadd.f32 %v3175, %v3180
    %v3183 = vadd.f32 %v3176, %v3180
    %v3184 = vpack.c.bf16 %v3183, %v3182
    %s3185 = scalar_lea.vmem [#allocation10], 256
    %v3186 = vld [vmem:[%s3185] sm:$0xff]
    %v3187 = vld [vmem:[%s3185 + $0x8] sm:$0xff]
    %v3188 = vld [vmem:[%s3185 + $0x10] sm:$0xff]
    %v3189 = vld [vmem:[%s3185 + $0x18] sm:$0xff]
    %v3190 = vld [vmem:[%s3185 + $0x20] sm:$0xff]
    %v3191 = vld [vmem:[%s3185 + $0x28] sm:$0xff]
    %v3192 = vld [vmem:[%s3185 + $0x30] sm:$0xff]
    %v3193 = vld [vmem:[%s3185 + $0x38] sm:$0xff]
    %v3194 = vld [vmem:[%s3185 + $0x40] sm:$0xff]
    %v3195 = vld [vmem:[%s3185 + $0x48] sm:$0xff]
    %v3196 = vld [vmem:[%s3185 + $0x50] sm:$0xff]
    %v3197 = vld [vmem:[%s3185 + $0x58] sm:$0xff]
    %v3198 = vld [vmem:[%s3185 + $0x60] sm:$0xff]
    %v3199 = vld [vmem:[%s3185 + $0x68] sm:$0xff]
    %v3200 = vld [vmem:[%s3185 + $0x70] sm:$0xff]
    %v3201 = vld [vmem:[%s3185 + $0x78] sm:$0xff]
    %v3202 = vld [vmem:[%s3185 + $0x80] sm:$0xff]
    %v3203 = vld [vmem:[%s3185 + $0x88] sm:$0xff]
    %v3204 = vld [vmem:[%s3185 + $0x90] sm:$0xff]
    %v3205 = vld [vmem:[%s3185 + $0x98] sm:$0xff]
    %v3206 = vld [vmem:[%s3185 + $0xa0] sm:$0xff]
    %v3207 = vld [vmem:[%s3185 + $0xa8] sm:$0xff]
    %v3208 = vld [vmem:[%s3185 + $0xb0] sm:$0xff]
    %v3209 = vld [vmem:[%s3185 + $0xb8] sm:$0xff]
    %v3210 = vld [vmem:[%s3185 + $0xc0] sm:$0xff]
    %v3211 = vld [vmem:[%s3185 + $0xc8] sm:$0xff]
    %v3212 = vld [vmem:[%s3185 + $0xd0] sm:$0xff]
    %v3213 = vld [vmem:[%s3185 + $0xd8] sm:$0xff]
    %v3214 = vld [vmem:[%s3185 + $0xe0] sm:$0xff]
    %v3215 = vld [vmem:[%s3185 + $0xe8] sm:$0xff]
    %v3216 = vld [vmem:[%s3185 + $0xf0] sm:$0xff]
    %v3217 = vld [vmem:[%s3185 + $0xf8] sm:$0xff]
    %s3218 = scalar_lea.vmem %s11, 4
    %v3219 = vld [vmem:[%s3218] sm:$0xf]
    %v3221 = vperm.slane %v3219, 0
    %v3222 = vperm.slane %v3219, 1
    %v3223 = vperm.slane %v3219, 2
    %v3224 = vperm.slane %v3219, 3
    %v3261 = vunpack.c.l.b16 %v3186
    %v3262 = vunpack.c.h.b16 %v3186
    %v3263 = vunpack.c.l.b16 %v3187
    %v3264 = vunpack.c.h.b16 %v3187
    %v3265 = vunpack.c.l.b16 %v3188
    %v3266 = vunpack.c.h.b16 %v3188
    %v3267 = vunpack.c.l.b16 %v3189
    %v3268 = vunpack.c.h.b16 %v3189
    %v3269 = vunpack.c.l.b16 %v3190
    %v3270 = vunpack.c.h.b16 %v3190
    %v3271 = vunpack.c.l.b16 %v3191
    %v3272 = vunpack.c.h.b16 %v3191
    %v3273 = vunpack.c.l.b16 %v3192
    %v3274 = vunpack.c.h.b16 %v3192
    %v3275 = vunpack.c.l.b16 %v3193
    %v3276 = vunpack.c.h.b16 %v3193
    %v3277 = vunpack.c.l.b16 %v3194
    %v3278 = vunpack.c.h.b16 %v3194
    %v3279 = vunpack.c.l.b16 %v3195
    %v3280 = vunpack.c.h.b16 %v3195
    %v3281 = vunpack.c.l.b16 %v3196
    %v3282 = vunpack.c.h.b16 %v3196
    %v3283 = vunpack.c.l.b16 %v3197
    %v3284 = vunpack.c.h.b16 %v3197
    %v3285 = vunpack.c.l.b16 %v3198
    %v3286 = vunpack.c.h.b16 %v3198
    %v3287 = vunpack.c.l.b16 %v3199
    %v3288 = vunpack.c.h.b16 %v3199
    %v3289 = vunpack.c.l.b16 %v3200
    %v3290 = vunpack.c.h.b16 %v3200
    %v3291 = vunpack.c.l.b16 %v3201
    %v3292 = vunpack.c.h.b16 %v3201
    %v3293 = vunpack.c.l.b16 %v3202
    %v3294 = vunpack.c.h.b16 %v3202
    %v3295 = vunpack.c.l.b16 %v3203
    %v3296 = vunpack.c.h.b16 %v3203
    %v3297 = vunpack.c.l.b16 %v3204
    %v3298 = vunpack.c.h.b16 %v3204
    %v3299 = vunpack.c.l.b16 %v3205
    %v3300 = vunpack.c.h.b16 %v3205
    %v3301 = vunpack.c.l.b16 %v3206
    %v3302 = vunpack.c.h.b16 %v3206
    %v3303 = vunpack.c.l.b16 %v3207
    %v3304 = vunpack.c.h.b16 %v3207
    %v3305 = vunpack.c.l.b16 %v3208
    %v3306 = vunpack.c.h.b16 %v3208
    %v3307 = vunpack.c.l.b16 %v3209
    %v3308 = vunpack.c.h.b16 %v3209
    %v3309 = vunpack.c.l.b16 %v3210
    %v3310 = vunpack.c.h.b16 %v3210
    %v3311 = vunpack.c.l.b16 %v3211
    %v3312 = vunpack.c.h.b16 %v3211
    %v3313 = vunpack.c.l.b16 %v3212
    %v3314 = vunpack.c.h.b16 %v3212
    %v3315 = vunpack.c.l.b16 %v3213
    %v3316 = vunpack.c.h.b16 %v3213
    %v3317 = vunpack.c.l.b16 %v3214
    %v3318 = vunpack.c.h.b16 %v3214
    %v3319 = vunpack.c.l.b16 %v3215
    %v3320 = vunpack.c.h.b16 %v3215
    %v3321 = vunpack.c.l.b16 %v3216
    %v3322 = vunpack.c.h.b16 %v3216
    %v3323 = vunpack.c.l.b16 %v3217
    %v3324 = vunpack.c.h.b16 %v3217
    %v3325 = vpack.c.b16 %v3265, %v3261
    %v3326 = vpack.c.b16 %v3266, %v3262
    %v3327 = vpack.c.b16 %v3267, %v3263
    %v3328 = vpack.c.b16 %v3268, %v3264
    %v3329 = vpack.c.b16 %v3273, %v3269
    %v3330 = vpack.c.b16 %v3274, %v3270
    %v3331 = vpack.c.b16 %v3275, %v3271
    %v3332 = vpack.c.b16 %v3276, %v3272
    %v3333 = vpack.c.b16 %v3281, %v3277
    %v3334 = vpack.c.b16 %v3282, %v3278
    %v3335 = vpack.c.b16 %v3283, %v3279
    %v3336 = vpack.c.b16 %v3284, %v3280
    %v3337 = vpack.c.b16 %v3289, %v3285
    %v3338 = vpack.c.b16 %v3290, %v3286
    %v3339 = vpack.c.b16 %v3291, %v3287
    %v3340 = vpack.c.b16 %v3292, %v3288
    %v3341 = vpack.c.b16 %v3297, %v3293
    %v3342 = vpack.c.b16 %v3298, %v3294
    %v3343 = vpack.c.b16 %v3299, %v3295
    %v3344 = vpack.c.b16 %v3300, %v3296
    %v3345 = vpack.c.b16 %v3305, %v3301
    %v3346 = vpack.c.b16 %v3306, %v3302
    %v3347 = vpack.c.b16 %v3307, %v3303
    %v3348 = vpack.c.b16 %v3308, %v3304
    %v3349 = vpack.c.b16 %v3313, %v3309
    %v3350 = vpack.c.b16 %v3314, %v3310
    %v3351 = vpack.c.b16 %v3315, %v3311
    %v3352 = vpack.c.b16 %v3316, %v3312
    %v3353 = vpack.c.b16 %v3321, %v3317
    %v3354 = vpack.c.b16 %v3322, %v3318
    %v3355 = vpack.c.b16 %v3323, %v3319
    %v3356 = vpack.c.b16 %v3324, %v3320
    %3389 = vmatpush.bf16.msra.mxu0 %v3353
    %3390 = vmatpush.bf16.msra.mxu0 %v3349
    %3391 = vmatpush.bf16.msra.mxu0 %v3345
    %3392 = vmatpush.bf16.msra.mxu0 %v3341
    %3393 = vmatpush.bf16.msra.mxu0 %v3337
    %3394 = vmatpush.bf16.msra.mxu0 %v3333
    %3395 = vmatpush.bf16.msra.mxu0 %v3329
    %3396 = vmatpush.bf16.msra.mxu0 %v3325
    %3397 = vmatmul.bf16.gmra.mxu0 %v3184
    %v3398 = vpop.f32.mrf.mxu0
    %v3399 = vadd.f32 %v3221, %v3398
    %v3400 = vpop.f32.mrf.mxu0
    %v3401 = vadd.f32 %v3221, %v3400
    %3402 = vdwg.mxu0
    %3403 = vmatpush.bf16.msra.mxu0 %v3354
    %3404 = vmatpush.bf16.msra.mxu0 %v3350
    %3405 = vmatpush.bf16.msra.mxu0 %v3346
    %3406 = vmatpush.bf16.msra.mxu0 %v3342
    %3407 = vmatpush.bf16.msra.mxu0 %v3338
    %3408 = vmatpush.bf16.msra.mxu0 %v3334
    %3409 = vmatpush.bf16.msra.mxu0 %v3330
    %3410 = vmatpush.bf16.msra.mxu0 %v3326
    %3411 = vmatmul.bf16.gmra.mxu0 %v3184
    %v3412 = vpop.f32.mrf.mxu0
    %v3413 = vadd.f32 %v3222, %v3412
    %v3414 = vpop.f32.mrf.mxu0
    %v3415 = vadd.f32 %v3222, %v3414
    %3416 = vdwg.mxu0
    %3417 = vmatpush.bf16.msra.mxu0 %v3355
    %3418 = vmatpush.bf16.msra.mxu0 %v3351
    %3419 = vmatpush.bf16.msra.mxu0 %v3347
    %3420 = vmatpush.bf16.msra.mxu0 %v3343
    %3421 = vmatpush.bf16.msra.mxu0 %v3339
    %3422 = vmatpush.bf16.msra.mxu0 %v3335
    %3423 = vmatpush.bf16.msra.mxu0 %v3331
    %3424 = vmatpush.bf16.msra.mxu0 %v3327
    %3425 = vmatmul.bf16.gmra.mxu0 %v3184
    %v3426 = vpop.f32.mrf.mxu0
    %v3427 = vadd.f32 %v3223, %v3426
    %v3428 = vpop.f32.mrf.mxu0
    %v3429 = vadd.f32 %v3223, %v3428
    %3430 = vdwg.mxu0
    %3431 = vmatpush.bf16.msra.mxu0 %v3356
    %3432 = vmatpush.bf16.msra.mxu0 %v3352
    %3433 = vmatpush.bf16.msra.mxu0 %v3348
    %3434 = vmatpush.bf16.msra.mxu0 %v3344
    %3435 = vmatpush.bf16.msra.mxu0 %v3340
    %3436 = vmatpush.bf16.msra.mxu0 %v3336
    %3437 = vmatpush.bf16.msra.mxu0 %v3332
    %3438 = vmatpush.bf16.msra.mxu0 %v3328
    %3439 = vmatmul.bf16.gmra.mxu0 %v3184
    %v3440 = vpop.f32.mrf.mxu0
    %v3441 = vadd.f32 %v3224, %v3440
    %v3442 = vpop.f32.mrf.mxu0
    %v3443 = vadd.f32 %v3224, %v3442
    %3444 = vdwg.mxu0
    %v3445 = vmul.f32 %v3399, 0.5
    %v3446 = vmul.f32 %v3413, 0.5
    %v3447 = vmul.f32 %v3427, 0.5
    %v3448 = vmul.f32 %v3441, 0.5
    %v3449 = vmul.f32 %v3401, 0.5
    %v3450 = vmul.f32 %v3415, 0.5
    %v3451 = vmul.f32 %v3429, 0.5
    %v3452 = vmul.f32 %v3443, 0.5
    %v3453 = vmul.f32 %v3399, 0.044715
    %v3454 = vmul.f32 %v3413, 0.044715
    %v3455 = vmul.f32 %v3427, 0.044715
    %v3456 = vmul.f32 %v3441, 0.044715
    %v3457 = vmul.f32 %v3401, 0.044715
    %v3458 = vmul.f32 %v3415, 0.044715
    %v3459 = vmul.f32 %v3429, 0.044715
    %v3460 = vmul.f32 %v3443, 0.044715
    %v3461 = vmul.f32 %v3453, %v3399
    %v3462 = vmul.f32 %v3454, %v3413
    %v3463 = vmul.f32 %v3455, %v3427
    %v3464 = vmul.f32 %v3456, %v3441
    %v3465 = vmul.f32 %v3457, %v3401
    %v3466 = vmul.f32 %v3458, %v3415
    %v3467 = vmul.f32 %v3459, %v3429
    %v3468 = vmul.f32 %v3460, %v3443
    %v3469 = vmul.f32 %v3461, %v3399
    %v3470 = vmul.f32 %v3462, %v3413
    %v3471 = vmul.f32 %v3463, %v3427
    %v3472 = vmul.f32 %v3464, %v3441
    %v3473 = vmul.f32 %v3465, %v3401
    %v3474 = vmul.f32 %v3466, %v3415
    %v3475 = vmul.f32 %v3467, %v3429
    %v3476 = vmul.f32 %v3468, %v3443
    %v3477 = vadd.f32 %v3399, %v3469
    %v3478 = vadd.f32 %v3413, %v3470
    %v3479 = vadd.f32 %v3427, %v3471
    %v3480 = vadd.f32 %v3441, %v3472
    %v3481 = vadd.f32 %v3401, %v3473
    %v3482 = vadd.f32 %v3415, %v3474
    %v3483 = vadd.f32 %v3429, %v3475
    %v3484 = vadd.f32 %v3443, %v3476
    %v3485 = vmul.f32 %v3477, 0.7978846
    %v3486 = vmul.f32 %v3478, 0.7978846
    %v3487 = vmul.f32 %v3479, 0.7978846
    %v3488 = vmul.f32 %v3480, 0.7978846
    %v3489 = vmul.f32 %v3481, 0.7978846
    %v3490 = vmul.f32 %v3482, 0.7978846
    %v3491 = vmul.f32 %v3483, 0.7978846
    %v3492 = vmul.f32 %v3484, 0.7978846
    %v3493 = vtanh.pop %v3485
    %v3494 = vtanh.pop %v3486
    %v3495 = vtanh.pop %v3487
    %v3496 = vtanh.pop %v3488
    %v3497 = vtanh.pop %v3489
    %v3498 = vtanh.pop %v3490
    %v3499 = vtanh.pop %v3491
    %v3500 = vtanh.pop %v3492
    %v3501 = vadd.f32 %v3493, 1.0
    %v3502 = vadd.f32 %v3494, 1.0
    %v3503 = vadd.f32 %v3495, 1.0
    %v3504 = vadd.f32 %v3496, 1.0
    %v3505 = vadd.f32 %v3497, 1.0
    %v3506 = vadd.f32 %v3498, 1.0
    %v3507 = vadd.f32 %v3499, 1.0
    %v3508 = vadd.f32 %v3500, 1.0
    %v3509 = vmul.f32 %v3445, %v3501
    %v3510 = vmul.f32 %v3446, %v3502
    %v3511 = vmul.f32 %v3447, %v3503
    %v3512 = vmul.f32 %v3448, %v3504
    %v3513 = vmul.f32 %v3449, %v3505
    %v3514 = vmul.f32 %v3450, %v3506
    %v3515 = vmul.f32 %v3451, %v3507
    %v3516 = vmul.f32 %v3452, %v3508
    %v3517 = vpack.c.bf16 %v3513, %v3509
    %v3518 = vpack.c.bf16 %v3514, %v3510
    %v3519 = vpack.c.bf16 %v3515, %v3511
    %v3520 = vpack.c.bf16 %v3516, %v3512
    %s3521 = scalar_lea.vmem [#allocation11], 256
    %v3522 = vld [vmem:[%s3521] sm:$0xf]
    %v3523 = vld [vmem:[%s3521 + $0x4] sm:$0xf]
    %v3524 = vld [vmem:[%s3521 + $0x8] sm:$0xf]
    %v3525 = vld [vmem:[%s3521 + $0xc] sm:$0xf]
    %v3526 = vld [vmem:[%s3521 + $0x10] sm:$0xf]
    %v3527 = vld [vmem:[%s3521 + $0x14] sm:$0xf]
    %v3528 = vld [vmem:[%s3521 + $0x18] sm:$0xf]
    %v3529 = vld [vmem:[%s3521 + $0x1c] sm:$0xf]
    %v3530 = vld [vmem:[%s3521 + $0x20] sm:$0xf]
    %v3531 = vld [vmem:[%s3521 + $0x24] sm:$0xf]
    %v3532 = vld [vmem:[%s3521 + $0x28] sm:$0xf]
    %v3533 = vld [vmem:[%s3521 + $0x2c] sm:$0xf]
    %v3534 = vld [vmem:[%s3521 + $0x30] sm:$0xf]
    %v3535 = vld [vmem:[%s3521 + $0x34] sm:$0xf]
    %v3536 = vld [vmem:[%s3521 + $0x38] sm:$0xf]
    %v3537 = vld [vmem:[%s3521 + $0x3c] sm:$0xf]
    %v3538 = vld [vmem:[%s3521 + $0x40] sm:$0xf]
    %v3539 = vld [vmem:[%s3521 + $0x44] sm:$0xf]
    %v3540 = vld [vmem:[%s3521 + $0x48] sm:$0xf]
    %v3541 = vld [vmem:[%s3521 + $0x4c] sm:$0xf]
    %v3542 = vld [vmem:[%s3521 + $0x50] sm:$0xf]
    %v3543 = vld [vmem:[%s3521 + $0x54] sm:$0xf]
    %v3544 = vld [vmem:[%s3521 + $0x58] sm:$0xf]
    %v3545 = vld [vmem:[%s3521 + $0x5c] sm:$0xf]
    %v3546 = vld [vmem:[%s3521 + $0x60] sm:$0xf]
    %v3547 = vld [vmem:[%s3521 + $0x64] sm:$0xf]
    %v3548 = vld [vmem:[%s3521 + $0x68] sm:$0xf]
    %v3549 = vld [vmem:[%s3521 + $0x6c] sm:$0xf]
    %v3550 = vld [vmem:[%s3521 + $0x70] sm:$0xf]
    %v3551 = vld [vmem:[%s3521 + $0x74] sm:$0xf]
    %v3552 = vld [vmem:[%s3521 + $0x78] sm:$0xf]
    %v3553 = vld [vmem:[%s3521 + $0x7c] sm:$0xf]
    %v3554 = vld [vmem:[%s3521 + $0x80] sm:$0xf]
    %v3555 = vld [vmem:[%s3521 + $0x84] sm:$0xf]
    %v3556 = vld [vmem:[%s3521 + $0x88] sm:$0xf]
    %v3557 = vld [vmem:[%s3521 + $0x8c] sm:$0xf]
    %v3558 = vld [vmem:[%s3521 + $0x90] sm:$0xf]
    %v3559 = vld [vmem:[%s3521 + $0x94] sm:$0xf]
    %v3560 = vld [vmem:[%s3521 + $0x98] sm:$0xf]
    %v3561 = vld [vmem:[%s3521 + $0x9c] sm:$0xf]
    %v3562 = vld [vmem:[%s3521 + $0xa0] sm:$0xf]
    %v3563 = vld [vmem:[%s3521 + $0xa4] sm:$0xf]
    %v3564 = vld [vmem:[%s3521 + $0xa8] sm:$0xf]
    %v3565 = vld [vmem:[%s3521 + $0xac] sm:$0xf]
    %v3566 = vld [vmem:[%s3521 + $0xb0] sm:$0xf]
    %v3567 = vld [vmem:[%s3521 + $0xb4] sm:$0xf]
    %v3568 = vld [vmem:[%s3521 + $0xb8] sm:$0xf]
    %v3569 = vld [vmem:[%s3521 + $0xbc] sm:$0xf]
    %v3570 = vld [vmem:[%s3521 + $0xc0] sm:$0xf]
    %v3571 = vld [vmem:[%s3521 + $0xc4] sm:$0xf]
    %v3572 = vld [vmem:[%s3521 + $0xc8] sm:$0xf]
    %v3573 = vld [vmem:[%s3521 + $0xcc] sm:$0xf]
    %v3574 = vld [vmem:[%s3521 + $0xd0] sm:$0xf]
    %v3575 = vld [vmem:[%s3521 + $0xd4] sm:$0xf]
    %v3576 = vld [vmem:[%s3521 + $0xd8] sm:$0xf]
    %v3577 = vld [vmem:[%s3521 + $0xdc] sm:$0xf]
    %v3578 = vld [vmem:[%s3521 + $0xe0] sm:$0xf]
    %v3579 = vld [vmem:[%s3521 + $0xe4] sm:$0xf]
    %v3580 = vld [vmem:[%s3521 + $0xe8] sm:$0xf]
    %v3581 = vld [vmem:[%s3521 + $0xec] sm:$0xf]
    %v3582 = vld [vmem:[%s3521 + $0xf0] sm:$0xf]
    %v3583 = vld [vmem:[%s3521 + $0xf4] sm:$0xf]
    %v3584 = vld [vmem:[%s3521 + $0xf8] sm:$0xf]
    %v3585 = vld [vmem:[%s3521 + $0xfc] sm:$0xf]
    %s3586 = scalar_lea.vmem [#allocation13], 1
    %v3587 = vld [vmem:[%s3586] sm:$0x1]
    %v3589 = vperm.slane %v3587, 0
    %v3655 = vunpack.c.l.b16 %v3522
    %v3656 = vunpack.c.l.b16 %v3523
    %v3657 = vunpack.c.l.b16 %v3524
    %v3658 = vunpack.c.l.b16 %v3525
    %v3659 = vunpack.c.l.b16 %v3526
    %v3660 = vunpack.c.l.b16 %v3527
    %v3661 = vunpack.c.l.b16 %v3528
    %v3662 = vunpack.c.l.b16 %v3529
    %v3663 = vunpack.c.l.b16 %v3530
    %v3664 = vunpack.c.l.b16 %v3531
    %v3665 = vunpack.c.l.b16 %v3532
    %v3666 = vunpack.c.l.b16 %v3533
    %v3667 = vunpack.c.l.b16 %v3534
    %v3668 = vunpack.c.l.b16 %v3535
    %v3669 = vunpack.c.l.b16 %v3536
    %v3670 = vunpack.c.l.b16 %v3537
    %v3671 = vunpack.c.l.b16 %v3538
    %v3672 = vunpack.c.l.b16 %v3539
    %v3673 = vunpack.c.l.b16 %v3540
    %v3674 = vunpack.c.l.b16 %v3541
    %v3675 = vunpack.c.l.b16 %v3542
    %v3676 = vunpack.c.l.b16 %v3543
    %v3677 = vunpack.c.l.b16 %v3544
    %v3678 = vunpack.c.l.b16 %v3545
    %v3679 = vunpack.c.l.b16 %v3546
    %v3680 = vunpack.c.l.b16 %v3547
    %v3681 = vunpack.c.l.b16 %v3548
    %v3682 = vunpack.c.l.b16 %v3549
    %v3683 = vunpack.c.l.b16 %v3550
    %v3684 = vunpack.c.l.b16 %v3551
    %v3685 = vunpack.c.l.b16 %v3552
    %v3686 = vunpack.c.l.b16 %v3553
    %v3687 = vunpack.c.l.b16 %v3554
    %v3688 = vunpack.c.l.b16 %v3555
    %v3689 = vunpack.c.l.b16 %v3556
    %v3690 = vunpack.c.l.b16 %v3557
    %v3691 = vunpack.c.l.b16 %v3558
    %v3692 = vunpack.c.l.b16 %v3559
    %v3693 = vunpack.c.l.b16 %v3560
    %v3694 = vunpack.c.l.b16 %v3561
    %v3695 = vunpack.c.l.b16 %v3562
    %v3696 = vunpack.c.l.b16 %v3563
    %v3697 = vunpack.c.l.b16 %v3564
    %v3698 = vunpack.c.l.b16 %v3565
    %v3699 = vunpack.c.l.b16 %v3566
    %v3700 = vunpack.c.l.b16 %v3567
    %v3701 = vunpack.c.l.b16 %v3568
    %v3702 = vunpack.c.l.b16 %v3569
    %v3703 = vunpack.c.l.b16 %v3570
    %v3704 = vunpack.c.l.b16 %v3571
    %v3705 = vunpack.c.l.b16 %v3572
    %v3706 = vunpack.c.l.b16 %v3573
    %v3707 = vunpack.c.l.b16 %v3574
    %v3708 = vunpack.c.l.b16 %v3575
    %v3709 = vunpack.c.l.b16 %v3576
    %v3710 = vunpack.c.l.b16 %v3577
    %v3711 = vunpack.c.l.b16 %v3578
    %v3712 = vunpack.c.l.b16 %v3579
    %v3713 = vunpack.c.l.b16 %v3580
    %v3714 = vunpack.c.l.b16 %v3581
    %v3715 = vunpack.c.l.b16 %v3582
    %v3716 = vunpack.c.l.b16 %v3583
    %v3717 = vunpack.c.l.b16 %v3584
    %v3718 = vunpack.c.l.b16 %v3585
    %v3719 = vpack.c.b16 %v3656, %v3655
    %v3720 = vpack.c.b16 %v3658, %v3657
    %v3721 = vpack.c.b16 %v3660, %v3659
    %v3722 = vpack.c.b16 %v3662, %v3661
    %v3723 = vpack.c.b16 %v3664, %v3663
    %v3724 = vpack.c.b16 %v3666, %v3665
    %v3725 = vpack.c.b16 %v3668, %v3667
    %v3726 = vpack.c.b16 %v3670, %v3669
    %v3727 = vpack.c.b16 %v3672, %v3671
    %v3728 = vpack.c.b16 %v3674, %v3673
    %v3729 = vpack.c.b16 %v3676, %v3675
    %v3730 = vpack.c.b16 %v3678, %v3677
    %v3731 = vpack.c.b16 %v3680, %v3679
    %v3732 = vpack.c.b16 %v3682, %v3681
    %v3733 = vpack.c.b16 %v3684, %v3683
    %v3734 = vpack.c.b16 %v3686, %v3685
    %v3735 = vpack.c.b16 %v3688, %v3687
    %v3736 = vpack.c.b16 %v3690, %v3689
    %v3737 = vpack.c.b16 %v3692, %v3691
    %v3738 = vpack.c.b16 %v3694, %v3693
    %v3739 = vpack.c.b16 %v3696, %v3695
    %v3740 = vpack.c.b16 %v3698, %v3697
    %v3741 = vpack.c.b16 %v3700, %v3699
    %v3742 = vpack.c.b16 %v3702, %v3701
    %v3743 = vpack.c.b16 %v3704, %v3703
    %v3744 = vpack.c.b16 %v3706, %v3705
    %v3745 = vpack.c.b16 %v3708, %v3707
    %v3746 = vpack.c.b16 %v3710, %v3709
    %v3747 = vpack.c.b16 %v3712, %v3711
    %v3748 = vpack.c.b16 %v3714, %v3713
    %v3749 = vpack.c.b16 %v3716, %v3715
    %v3750 = vpack.c.b16 %v3718, %v3717
    %3783 = vmatpush.bf16.msra.mxu0 %v3726
    %3784 = vmatpush.bf16.msra.mxu0 %v3725
    %3785 = vmatpush.bf16.msra.mxu0 %v3724
    %3786 = vmatpush.bf16.msra.mxu0 %v3723
    %3787 = vmatpush.bf16.msra.mxu0 %v3722
    %3788 = vmatpush.bf16.msra.mxu0 %v3721
    %3789 = vmatpush.bf16.msra.mxu0 %v3720
    %3790 = vmatpush.bf16.msra.mxu0 %v3719
    %3791 = vmatmul.bf16.gmra.mxu0 %v3517
    %v3792 = vpop.f32.mrf.mxu0
    %v3793 = vadd.f32 %v3589, %v3792
    %v3794 = vpop.f32.mrf.mxu0
    %v3795 = vadd.f32 %v3589, %v3794
    %3796 = vdwg.mxu0
    %3797 = vmatpush.bf16.msra.mxu0 %v3734
    %3798 = vmatpush.bf16.msra.mxu0 %v3733
    %3799 = vmatpush.bf16.msra.mxu0 %v3732
    %3800 = vmatpush.bf16.msra.mxu0 %v3731
    %3801 = vmatpush.bf16.msra.mxu0 %v3730
    %3802 = vmatpush.bf16.msra.mxu0 %v3729
    %3803 = vmatpush.bf16.msra.mxu0 %v3728
    %3804 = vmatpush.bf16.msra.mxu0 %v3727
    %3805 = vmatmul.bf16.gmra.mxu0 %v3518
    %v3806 = vpop.f32.mrf.mxu0
    %v3807 = vadd.f32 %v3793, %v3806
    %v3808 = vpop.f32.mrf.mxu0
    %v3809 = vadd.f32 %v3795, %v3808
    %3810 = vdwg.mxu0
    %3811 = vmatpush.bf16.msra.mxu0 %v3742
    %3812 = vmatpush.bf16.msra.mxu0 %v3741
    %3813 = vmatpush.bf16.msra.mxu0 %v3740
    %3814 = vmatpush.bf16.msra.mxu0 %v3739
    %3815 = vmatpush.bf16.msra.mxu0 %v3738
    %3816 = vmatpush.bf16.msra.mxu0 %v3737
    %3817 = vmatpush.bf16.msra.mxu0 %v3736
    %3818 = vmatpush.bf16.msra.mxu0 %v3735
    %3819 = vmatmul.bf16.gmra.mxu0 %v3519
    %v3820 = vpop.f32.mrf.mxu0
    %v3821 = vadd.f32 %v3807, %v3820
    %v3822 = vpop.f32.mrf.mxu0
    %v3823 = vadd.f32 %v3809, %v3822
    %3824 = vdwg.mxu0
    %3825 = vmatpush.bf16.msra.mxu0 %v3750
    %3826 = vmatpush.bf16.msra.mxu0 %v3749
    %3827 = vmatpush.bf16.msra.mxu0 %v3748
    %3828 = vmatpush.bf16.msra.mxu0 %v3747
    %3829 = vmatpush.bf16.msra.mxu0 %v3746
    %3830 = vmatpush.bf16.msra.mxu0 %v3745
    %3831 = vmatpush.bf16.msra.mxu0 %v3744
    %3832 = vmatpush.bf16.msra.mxu0 %v3743
    %3833 = vmatmul.bf16.gmra.mxu0 %v3520
    %v3834 = vpop.f32.mrf.mxu0
    %v3835 = vadd.f32 %v3821, %v3834
    %v3836 = vpop.f32.mrf.mxu0
    %v3837 = vadd.f32 %v3823, %v3836
    %3838 = vdwg.mxu0
    %v3839 = vadd.f32 %v3128, %v3835
    %v3840 = vadd.f32 %v3129, %v3837
    %3841 = vst [vmem:[#allocation14] sm:$0xff] %v3839
    %3842 = vst [vmem:[#allocation14 + $0x8] sm:$0xff] %v3840
    // Predicated region
    $region86: #{encoder_forward.1} parent=1 // pred_check
      _
    $region87: #{encoder_forward.1} parent=1 // pred_check_branch
      %3844 = sbr.rel (0) target = $region89
    $region88: #{encoder_forward.1} parent=1 // pred_region
      %3846 = vsyncadd [#allocation4], 0
      %s3847 = sshll.u32 [#allocation14], 4
      %s3848 = int_to_ptr.vmem [resolvable:$true] %s3847
      %s3849 = sshll.u32 %s14, 4
      %s3850 = int_to_ptr.hbm [resolvable:$true] %s3849
      %3855 = dma.vmem_to_hbm [thread:$0]  %s3848, 256, %s3850, [#allocation4], 128, 128, 8
    $region89: #{encoder_forward.1} parent=1 // pred_fallthru
      _
    // Predicated region
    $region90: #{encoder_forward.1} parent=1 // pred_check
      _
    $region91: #{encoder_forward.1} parent=1 // pred_check_branch
      %3857 = sbr.rel (0) target = $region93
    $region92: #{encoder_forward.1} parent=1 // pred_region
      %3859 = dma.done [#allocation4], 256
    $region93: #{encoder_forward.1} parent=1 // pred_fallthru
      _
    %3860 = vsyncpa [#allocation3], 1
    %3861 = vsyncpa [#allocation6], 1
    %3862 = vsyncpa [#allocation9], 1
    %3863 = vsyncpa [#allocation12], 1
    %3864 = vsyncpa [#allocation4], 1

</llo_original>
